<compile_context>
chip_gen: v6e
topology: v6e:2x2x1
jax: 0.10.0
libtpu: 0.0.40
codegen_flags: <defaults>
</compile_context>

<pallas_src>
import jax
import jax.numpy as jnp
from jax.experimental import pallas as pl
from jax.experimental.pallas import tpu as pltpu

# bf16 MXU feed with f32 accumulation (MXUs are bf16-native; halves weight/patch
# VMEM + DMA bytes).  Set to jnp.float32 to match the f32 PyTorch numerics closely.
MXU_DTYPE = jnp.bfloat16


# ----------------------------------------------------------------------------
# Kernel
# ----------------------------------------------------------------------------
def _skconv_tile(center, w_ref, b_ref, fcw_ref, fcb_ref, fsw_ref, fsb_ref):
    """One SKConv (4 conv branches, BN/ReLU folded, SK attention) on a VMEM tile.

    center: (TB, Ho, Wo, C) f32 value.  Returns (TB, Ho*Wo, Cout) f32.
    """
    TB, Ho, Wo, C = center.shape
    HW = Ho * Wo
    M = TB * HW
    Cout4 = w_ref.shape[2]
    Cout = Cout4 // 4
    dt = w_ref.dtype

    # zero halo (padding = 3) built in VMEM via two concats (no HBM, no scratch)
    zw = jnp.zeros((TB, Ho, 3, C), dt)
    xc = jnp.concatenate([zw, center.astype(dt), zw], axis=2)       # (TB, Ho, Wo+6, C)
    zh = jnp.zeros((TB, 3, Wo + 6, C), dt)
    padded = jnp.concatenate([zh, xc, zh], axis=1)                  # (TB, Ho+6, Wo+6, C)

    # in-kernel im2col along the width axis only:
    # wide[b, h, x, dx*C + c] == padded[b, h, x + dx, c]
    wide = jnp.concatenate(
        [padded[:, :, dx:dx + Wo, :] for dx in range(7)], axis=-1)  # (TB, Ho+6, Wo, 7C)

    # all four branches at once: 7 matmuls (one per kernel row), K = 7*C
    acc = jnp.zeros((M, Cout4), jnp.float32)
    for dy in range(7):
        xw = wide[:, dy:dy + Ho].reshape(M, 7 * C)
        acc = acc + jnp.dot(xw, w_ref[dy], preferred_element_type=jnp.float32)
    feats = jnp.maximum(acc + b_ref[...], 0.0)                      # bias+BN folded, ReLU

    # SK attention: spatial mean -> fc -> per-branch fcs -> softmax over branches
    feats3 = feats.reshape(TB, HW, Cout4)                           # leading split (free)
    s_all = jnp.mean(feats3, axis=1)                                # (TB, 4*Cout)
    feats_s = s_all.reshape(TB, 4, Cout).sum(axis=1)                # (TB, Cout) == mean(feats_U)
    feats_z = jnp.dot(feats_s.astype(dt), fcw_ref[...],
                      preferred_element_type=jnp.float32) + fcb_ref[...]      # (TB, d)
    logits = jnp.dot(feats_z.astype(dt), fsw_ref[...],
                     preferred_element_type=jnp.float32) + fsb_ref[...]       # (TB, 4*Cout)
    lg = logits.reshape(TB, 4, Cout)
    e = jnp.exp(lg - jnp.max(lg, axis=1, keepdims=True))
    attn = e * pl.reciprocal(jnp.sum(e, axis=1, keepdims=True), approx=True)
    attn_row = attn.reshape(TB, 1, Cout4)                           # one attention row

    weighted = feats3 * attn_row                                    # single broadcast pass
    out = weighted.reshape(TB, HW, 4, Cout).sum(axis=2)             # single 4-way reduce
    return out                                                      # (TB, HW, Cout) f32


def down_kernel(x_ref,
                w1_ref, b1_ref, fc1w_ref, fc1b_ref, fs1w_ref, fs1b_ref,
                w2_ref, b2_ref, fc2w_ref, fc2b_ref, fs2w_ref, fs2b_ref,
                o_ref):
    TB, Ho, _, Wo, C2 = x_ref.shape
    Cin = C2 // 2
    Cout = w1_ref.shape[2] // 4

    # fused 2x2 max-pool (the input block already exposes the pooling window)
    x = x_ref[...]                                                  # (TB, Ho, 2, Wo, 2*Cin)
    rows = jnp.maximum(x[:, :, 0], x[:, :, 1])                      # max over row pair
    pooled = jnp.maximum(rows[..., :Cin], rows[..., Cin:])          # max over column pair

    # DoubleConv = SKConv -> SKConv, intermediate stays resident in VMEM
    y1 = _skconv_tile(pooled, w1_ref, b1_ref, fc1w_ref, fc1b_ref, fs1w_ref, fs1b_ref)
    y2 = _skconv_tile(y1.reshape(TB, Ho, Wo, Cout),
                      w2_ref, b2_ref, fc2w_ref, fc2b_ref, fs2w_ref, fs2b_ref)

    o_ref[...] = y2.reshape(o_ref.shape).astype(o_ref.dtype)


# ----------------------------------------------------------------------------
# Wrapper glue: layout, VMEM-budgeted batch blocking, pallas_call
# ----------------------------------------------------------------------------
def _vmem_capacity_bytes():
    try:
        return int(pltpu.get_tpu_info().vmem_capacity_bytes)
    except Exception:
        return 64 << 20        # v7x-safe fallback


def _pick_tb(n, Ho, Wo, cin, cout, esize, budget):
    """Largest batch block that fits the VMEM budget, with >= 2 grid steps if possible."""
    HW = Ho * Wo
    Hp, Wp = Ho + 6, Wo + 6
    per = (2 * 4 * HW * cin * 4              # raw input block (f32, double-buffered)
           + 2 * HW * cout * 4               # output block (f32, double-buffered)
           + Hp * Wp * (cin + cout) * esize  # padded tiles
           + Hp * Wo * 7 * max(cin, cout) * esize   # width-im2col working set
           + 6 * HW * 4 * cout * 4)          # acc/feats/weighted f32 temporaries
    fixed = (2 * 7 * 7 * (cin + cout) * 4 * cout * esize   # conv weights (2x buffered)
             + (4 << 20))                                   # fc/fcs + headroom
    avail = max(per, budget - fixed)
    tb = max(1, min(n, avail // per))
    if n >= 2:
        tb = min(tb, n // 2)                 # >= 2 grid steps so both v7x TCs get work
    while n % tb:
        tb -= 1
    return int(tb)


def _skconv_args(p):
    return (p["w_all"].astype(MXU_DTYPE), p["b_all"],
            p["fc_w"].astype(MXU_DTYPE), p["fc_b"],
            p["fcs_w"].astype(MXU_DTYPE), p["fcs_b"])


def _const_spec(a):
    # Full-array block, constant index map (fetched once, held resident).
    return pl.BlockSpec(a.shape, lambda i: (0,) * a.ndim)


def down_forward(x_nchw, params):
    x = jnp.transpose(x_nchw, (0, 2, 3, 1))                # NCHW -> NHWC
    N, H, W, Cin = x.shape
    Ho, Wo = H // 2, W // 2                                # TODO(synk): even H, W assumed
    HW = Ho * Wo
    Cout = params["sk1"]["w_all"].shape[2] // 4

    # Free, contiguous reshape exposing the 2x2 pooling window.
    xr = x.reshape(N, Ho, 2, Wo, 2 * Cin)

    esize = jnp.dtype(MXU_DTYPE).itemsize
    cap = _vmem_capacity_bytes()
    TB = _pick_tb(N, Ho, Wo, Cin, Cout, esize, cap * 3 // 4)

    consts = (*_skconv_args(params["sk1"]), *_skconv_args(params["sk2"]))

    # Lane-dense output slab: flat (1, HW*Cout) rows when Cout is below a full lane
    # vector, native (HW, Cout) when it already is lane-dense.
    if Cout % 128 == 0:
        out_shape = (N, HW, Cout)
        out_block = (TB, HW, Cout)
    else:
        out_shape = (N, 1, HW * Cout)
        out_block = (TB, 1, HW * Cout)

    out = pl.pallas_call(
        down_kernel,
        out_shape=jax.ShapeDtypeStruct(out_shape, jnp.float32),
        grid=(N // TB,),
        in_specs=[pl.BlockSpec((TB, Ho, 2, Wo, 2 * Cin),
                               lambda i: (i, 0, 0, 0, 0))]
                 + [_const_spec(a) for a in consts],
        out_specs=pl.BlockSpec(out_block, lambda i: (i, 0, 0)),
        compiler_params=pltpu.CompilerParams(
            dimension_semantics=("parallel",),
            vmem_limit_bytes=int(cap * 7 // 8)),
    )(xr, *consts)

    out = out.reshape(N, Ho, Wo, Cout)                     # free reshape
    return jnp.transpose(out, (0, 3, 1, 2))                # NHWC -> NCHW


# ----------------------------------------------------------------------------
# Deterministic synthetic parameters (shapes match the module), packed for the
# fused kernel: BN folded (eval mode), each k x k kernel zero-embedded in 7 x 7,
# the 4 branches concatenated along the output axis, weights reshaped per
# kernel-row to (7, 7*cin, 4*cout) to match the in-kernel width-im2col.
# ----------------------------------------------------------------------------
def init_skconv_params(key, cin, cout, reduction=16, L=32):
    d = max(cin // reduction, L)
    keys = iter(jax.random.split(key, 32))
    eps = 1e-5
    w_cols, b_cols = [], []
    for k in (1, 3, 5, 7):
        w = jax.random.normal(next(keys), (k, k, cin, cout), jnp.float32)
        w = w * (1.0 / (k * k * cin) ** 0.5)
        b = 0.05 * jax.random.normal(next(keys), (cout,), jnp.float32)
        gamma = 1.0 + 0.1 * jax.random.normal(next(keys), (cout,), jnp.float32)
        beta = 0.05 * jax.random.normal(next(keys), (cout,), jnp.float32)
        mean = 0.05 * jax.random.normal(next(keys), (cout,), jnp.float32)
        var = 1.0 + jnp.abs(0.1 * jax.random.normal(next(keys), (cout,), jnp.float32))
        scale = gamma / jnp.sqrt(var + eps)                # fold BN (eval mode)
        w_f = w * scale[None, None, None, :]
        b_f = (b - mean) * scale + beta
        off = 3 - k // 2                                   # center k x k in 7 x 7
        w7 = jnp.zeros((7, 7, cin, cout), jnp.float32)
        w7 = w7.at[off:off + k, off:off + k].set(w_f)
        w_cols.append(w7)
        b_cols.append(b_f)
    w_all = jnp.concatenate(w_cols, axis=-1)               # (7, 7, cin, 4*cout)

    fcs_w = jax.random.normal(next(keys), (4, d, cout), jnp.float32) / d ** 0.5
    fcs_b = 0.05 * jax.random.normal(next(keys), (4, cout), jnp.float32)
    return {
        "w_all": w_all.reshape(7, 7 * cin, 4 * cout),      # per-row packed conv weight
        "b_all": jnp.concatenate(b_cols)[None, :],         # (1, 4*cout)
        "fc_w": jax.random.normal(next(keys), (cout, d), jnp.float32) / cout ** 0.5,
        "fc_b": 0.05 * jax.random.normal(next(keys), (1, d), jnp.float32),
        "fcs_w": jnp.concatenate(list(fcs_w), axis=1),     # (d, 4*cout)
        "fcs_b": fcs_b.reshape(1, 4 * cout),               # (1, 4*cout)
    }


if __name__ == "__main__":
    N, Cin, Cout, H, W = 2, 4, 8, 16, 16
    key = jax.random.PRNGKey(0)
    kx, k1, k2 = jax.random.split(key, 3)
    x = jax.random.normal(kx, (N, Cin, H, W), jnp.float32)
    params = {
        "sk1": init_skconv_params(k1, Cin, Cout),   # DoubleConv first SKConv
        "sk2": init_skconv_params(k2, Cout, Cout),  # DoubleConv second SKConv
    }
    y = jax.jit(down_forward)(x, params)
    jax.block_until_ready(y)
    assert y.shape == (N, Cout, H // 2, W // 2) and y.dtype == jnp.float32
    print("KERNEL_OK")
</pallas_src>

<mosaic_0001>
module attributes {stable_mosaic.version = 11 : i64} {
  func.func @down_kernel(%arg0: i32, %arg1: memref<1x8x2x8x8xf32, #tpu.memory_space<vmem>>, %arg2: memref<7x28x32xbf16, #tpu.memory_space<vmem>>, %arg3: memref<1x32xf32, #tpu.memory_space<vmem>>, %arg4: memref<8x32xbf16, #tpu.memory_space<vmem>>, %arg5: memref<1x32xf32, #tpu.memory_space<vmem>>, %arg6: memref<32x32xbf16, #tpu.memory_space<vmem>>, %arg7: memref<1x32xf32, #tpu.memory_space<vmem>>, %arg8: memref<7x56x32xbf16, #tpu.memory_space<vmem>>, %arg9: memref<1x32xf32, #tpu.memory_space<vmem>>, %arg10: memref<8x32xbf16, #tpu.memory_space<vmem>>, %arg11: memref<1x32xf32, #tpu.memory_space<vmem>>, %arg12: memref<32x32xbf16, #tpu.memory_space<vmem>>, %arg13: memref<1x32xf32, #tpu.memory_space<vmem>>, %arg14: memref<1x1x512xf32, #tpu.memory_space<vmem>>) attributes {dimension_semantics = [#tpu.dimension_semantics<parallel>], iteration_bounds = array<i64: 2>, scalar_prefetch = 0 : i64, scratch_operands = 0 : i64, tpu.core_type = #tpu.core_type<tc>, window_params = [{transform_indices = @transform_0, window_bounds = array<i64: 1, 8, 2, 8, 8>}, {pipeline_mode = #tpu.pipeline_mode<synchronous>, transform_indices = @transform_1, window_bounds = array<i64: 7, 28, 32>}, {pipeline_mode = #tpu.pipeline_mode<synchronous>, transform_indices = @transform_2, window_bounds = array<i64: 1, 32>}, {pipeline_mode = #tpu.pipeline_mode<synchronous>, transform_indices = @transform_3, window_bounds = array<i64: 8, 32>}, {pipeline_mode = #tpu.pipeline_mode<synchronous>, transform_indices = @transform_4, window_bounds = array<i64: 1, 32>}, {pipeline_mode = #tpu.pipeline_mode<synchronous>, transform_indices = @transform_5, window_bounds = array<i64: 32, 32>}, {pipeline_mode = #tpu.pipeline_mode<synchronous>, transform_indices = @transform_6, window_bounds = array<i64: 1, 32>}, {pipeline_mode = #tpu.pipeline_mode<synchronous>, transform_indices = @transform_7, window_bounds = array<i64: 7, 56, 32>}, {pipeline_mode = #tpu.pipeline_mode<synchronous>, transform_indices = @transform_8, window_bounds = array<i64: 1, 32>}, {pipeline_mode = #tpu.pipeline_mode<synchronous>, transform_indices = @transform_9, window_bounds = array<i64: 8, 32>}, {pipeline_mode = #tpu.pipeline_mode<synchronous>, transform_indices = @transform_10, window_bounds = array<i64: 1, 32>}, {pipeline_mode = #tpu.pipeline_mode<synchronous>, transform_indices = @transform_11, window_bounds = array<i64: 32, 32>}, {pipeline_mode = #tpu.pipeline_mode<synchronous>, transform_indices = @transform_12, window_bounds = array<i64: 1, 32>}, {transform_indices = @transform_13, window_bounds = array<i64: 1, 1, 512>}]} {
    %c0 = arith.constant 0 : index
    %c0_0 = arith.constant 0 : index
    %c0_1 = arith.constant 0 : index
    %c0_2 = arith.constant 0 : index
    %c0_3 = arith.constant 0 : index
    %0 = vector.load %arg1[%c0, %c0_0, %c0_1, %c0_2, %c0_3] : memref<1x8x2x8x8xf32, #tpu.memory_space<vmem>>, vector<1x8x2x8x8xf32>
    %1 = vector.extract_strided_slice %0 {offsets = [0, 0, 0, 0, 0], sizes = [1, 8, 1, 8, 8], strides = [1, 1, 1, 1, 1]} : vector<1x8x2x8x8xf32> to vector<1x8x1x8x8xf32>
    %2 = vector.shape_cast %1 : vector<1x8x1x8x8xf32> to vector<1x8x8x8xf32>
    %3 = vector.extract_strided_slice %0 {offsets = [0, 0, 1, 0, 0], sizes = [1, 8, 1, 8, 8], strides = [1, 1, 1, 1, 1]} : vector<1x8x2x8x8xf32> to vector<1x8x1x8x8xf32>
    %4 = vector.shape_cast %3 : vector<1x8x1x8x8xf32> to vector<1x8x8x8xf32>
    %5 = arith.maximumf %2, %4 : vector<1x8x8x8xf32>
    %6 = vector.extract_strided_slice %5 {offsets = [0, 0, 0, 0], sizes = [1, 8, 8, 4], strides = [1, 1, 1, 1]} : vector<1x8x8x8xf32> to vector<1x8x8x4xf32>
    %7 = vector.extract_strided_slice %5 {offsets = [0, 0, 0, 4], sizes = [1, 8, 8, 4], strides = [1, 1, 1, 1]} : vector<1x8x8x8xf32> to vector<1x8x8x4xf32>
    %8 = arith.maximumf %6, %7 : vector<1x8x8x4xf32>
    %cst = arith.constant 0.000000e+00 : bf16
    %9 = vector.broadcast %cst : bf16 to vector<1x8x3x4xbf16>
    %10 = arith.truncf %8 : vector<1x8x8x4xf32> to vector<1x8x8x4xbf16>
    %11 = tpu.concatenate %9, %10, %9 in 2 : vector<1x8x3x4xbf16>, vector<1x8x8x4xbf16>, vector<1x8x3x4xbf16> -> vector<1x8x14x4xbf16>
    %cst_4 = arith.constant 0.000000e+00 : bf16
    %12 = vector.broadcast %cst_4 : bf16 to vector<1x3x14x4xbf16>
    %13 = tpu.concatenate %12, %11, %12 in 1 : vector<1x3x14x4xbf16>, vector<1x8x14x4xbf16>, vector<1x3x14x4xbf16> -> vector<1x14x14x4xbf16>
    %14 = vector.extract_strided_slice %13 {offsets = [0, 0, 0, 0], sizes = [1, 14, 8, 4], strides = [1, 1, 1, 1]} : vector<1x14x14x4xbf16> to vector<1x14x8x4xbf16>
    %15 = vector.extract_strided_slice %13 {offsets = [0, 0, 1, 0], sizes = [1, 14, 8, 4], strides = [1, 1, 1, 1]} : vector<1x14x14x4xbf16> to vector<1x14x8x4xbf16>
    %16 = vector.extract_strided_slice %13 {offsets = [0, 0, 2, 0], sizes = [1, 14, 8, 4], strides = [1, 1, 1, 1]} : vector<1x14x14x4xbf16> to vector<1x14x8x4xbf16>
    %17 = vector.extract_strided_slice %13 {offsets = [0, 0, 3, 0], sizes = [1, 14, 8, 4], strides = [1, 1, 1, 1]} : vector<1x14x14x4xbf16> to vector<1x14x8x4xbf16>
    %18 = vector.extract_strided_slice %13 {offsets = [0, 0, 4, 0], sizes = [1, 14, 8, 4], strides = [1, 1, 1, 1]} : vector<1x14x14x4xbf16> to vector<1x14x8x4xbf16>
    %19 = vector.extract_strided_slice %13 {offsets = [0, 0, 5, 0], sizes = [1, 14, 8, 4], strides = [1, 1, 1, 1]} : vector<1x14x14x4xbf16> to vector<1x14x8x4xbf16>
    %20 = vector.extract_strided_slice %13 {offsets = [0, 0, 6, 0], sizes = [1, 14, 8, 4], strides = [1, 1, 1, 1]} : vector<1x14x14x4xbf16> to vector<1x14x8x4xbf16>
    %21 = tpu.concatenate %14, %15, %16, %17, %18, %19, %20 in 3 : vector<1x14x8x4xbf16>, vector<1x14x8x4xbf16>, vector<1x14x8x4xbf16>, vector<1x14x8x4xbf16>, vector<1x14x8x4xbf16>, vector<1x14x8x4xbf16>, vector<1x14x8x4xbf16> -> vector<1x14x8x28xbf16>
    %cst_5 = arith.constant 0.000000e+00 : f32
    %22 = vector.broadcast %cst_5 : f32 to vector<64x32xf32>
    %23 = vector.extract_strided_slice %21 {offsets = [0, 0, 0, 0], sizes = [1, 8, 8, 28], strides = [1, 1, 1, 1]} : vector<1x14x8x28xbf16> to vector<1x8x8x28xbf16>
    %24 = vector.shape_cast %23 : vector<1x8x8x28xbf16> to vector<64x28xbf16>
    %c0_6 = arith.constant 0 : index
    %c0_7 = arith.constant 0 : index
    %c0_8 = arith.constant 0 : index
    %25 = vector.load %arg2[%c0_6, %c0_7, %c0_8] : memref<7x28x32xbf16, #tpu.memory_space<vmem>>, vector<1x28x32xbf16>
    %26 = vector.shape_cast %25 : vector<1x28x32xbf16> to vector<28x32xbf16>
    %cst_9 = arith.constant dense<0.000000e+00> : vector<64x32xf32>
    %27 = tpu.matmul %24, %26, %cst_9 {dimension_numbers = #tpu.dot_dimension_numbers<[1], [0], [0], [1], [0, 0, 1, 1], [], []>} : vector<64x28xbf16>, vector<28x32xbf16>, vector<64x32xf32> -> vector<64x32xf32>
    %28 = arith.addf %22, %27 : vector<64x32xf32>
    %29 = vector.extract_strided_slice %21 {offsets = [0, 1, 0, 0], sizes = [1, 8, 8, 28], strides = [1, 1, 1, 1]} : vector<1x14x8x28xbf16> to vector<1x8x8x28xbf16>
    %30 = vector.shape_cast %29 : vector<1x8x8x28xbf16> to vector<64x28xbf16>
    %c1 = arith.constant 1 : index
    %c0_10 = arith.constant 0 : index
    %c0_11 = arith.constant 0 : index
    %31 = vector.load %arg2[%c1, %c0_10, %c0_11] : memref<7x28x32xbf16, #tpu.memory_space<vmem>>, vector<1x28x32xbf16>
    %32 = vector.shape_cast %31 : vector<1x28x32xbf16> to vector<28x32xbf16>
    %cst_12 = arith.constant dense<0.000000e+00> : vector<64x32xf32>
    %33 = tpu.matmul %30, %32, %cst_12 {dimension_numbers = #tpu.dot_dimension_numbers<[1], [0], [0], [1], [0, 0, 1, 1], [], []>} : vector<64x28xbf16>, vector<28x32xbf16>, vector<64x32xf32> -> vector<64x32xf32>
    %34 = arith.addf %28, %33 : vector<64x32xf32>
    %35 = vector.extract_strided_slice %21 {offsets = [0, 2, 0, 0], sizes = [1, 8, 8, 28], strides = [1, 1, 1, 1]} : vector<1x14x8x28xbf16> to vector<1x8x8x28xbf16>
    %36 = vector.shape_cast %35 : vector<1x8x8x28xbf16> to vector<64x28xbf16>
    %c2 = arith.constant 2 : index
    %c0_13 = arith.constant 0 : index
    %c0_14 = arith.constant 0 : index
    %37 = vector.load %arg2[%c2, %c0_13, %c0_14] : memref<7x28x32xbf16, #tpu.memory_space<vmem>>, vector<1x28x32xbf16>
    %38 = vector.shape_cast %37 : vector<1x28x32xbf16> to vector<28x32xbf16>
    %cst_15 = arith.constant dense<0.000000e+00> : vector<64x32xf32>
    %39 = tpu.matmul %36, %38, %cst_15 {dimension_numbers = #tpu.dot_dimension_numbers<[1], [0], [0], [1], [0, 0, 1, 1], [], []>} : vector<64x28xbf16>, vector<28x32xbf16>, vector<64x32xf32> -> vector<64x32xf32>
    %40 = arith.addf %34, %39 : vector<64x32xf32>
    %41 = vector.extract_strided_slice %21 {offsets = [0, 3, 0, 0], sizes = [1, 8, 8, 28], strides = [1, 1, 1, 1]} : vector<1x14x8x28xbf16> to vector<1x8x8x28xbf16>
    %42 = vector.shape_cast %41 : vector<1x8x8x28xbf16> to vector<64x28xbf16>
    %c3 = arith.constant 3 : index
    %c0_16 = arith.constant 0 : index
    %c0_17 = arith.constant 0 : index
    %43 = vector.load %arg2[%c3, %c0_16, %c0_17] : memref<7x28x32xbf16, #tpu.memory_space<vmem>>, vector<1x28x32xbf16>
    %44 = vector.shape_cast %43 : vector<1x28x32xbf16> to vector<28x32xbf16>
    %cst_18 = arith.constant dense<0.000000e+00> : vector<64x32xf32>
    %45 = tpu.matmul %42, %44, %cst_18 {dimension_numbers = #tpu.dot_dimension_numbers<[1], [0], [0], [1], [0, 0, 1, 1], [], []>} : vector<64x28xbf16>, vector<28x32xbf16>, vector<64x32xf32> -> vector<64x32xf32>
    %46 = arith.addf %40, %45 : vector<64x32xf32>
    %47 = vector.extract_strided_slice %21 {offsets = [0, 4, 0, 0], sizes = [1, 8, 8, 28], strides = [1, 1, 1, 1]} : vector<1x14x8x28xbf16> to vector<1x8x8x28xbf16>
    %48 = vector.shape_cast %47 : vector<1x8x8x28xbf16> to vector<64x28xbf16>
    %c4 = arith.constant 4 : index
    %c0_19 = arith.constant 0 : index
    %c0_20 = arith.constant 0 : index
    %49 = vector.load %arg2[%c4, %c0_19, %c0_20] : memref<7x28x32xbf16, #tpu.memory_space<vmem>>, vector<1x28x32xbf16>
    %50 = vector.shape_cast %49 : vector<1x28x32xbf16> to vector<28x32xbf16>
    %cst_21 = arith.constant dense<0.000000e+00> : vector<64x32xf32>
    %51 = tpu.matmul %48, %50, %cst_21 {dimension_numbers = #tpu.dot_dimension_numbers<[1], [0], [0], [1], [0, 0, 1, 1], [], []>} : vector<64x28xbf16>, vector<28x32xbf16>, vector<64x32xf32> -> vector<64x32xf32>
    %52 = arith.addf %46, %51 : vector<64x32xf32>
    %53 = vector.extract_strided_slice %21 {offsets = [0, 5, 0, 0], sizes = [1, 8, 8, 28], strides = [1, 1, 1, 1]} : vector<1x14x8x28xbf16> to vector<1x8x8x28xbf16>
    %54 = vector.shape_cast %53 : vector<1x8x8x28xbf16> to vector<64x28xbf16>
    %c5 = arith.constant 5 : index
    %c0_22 = arith.constant 0 : index
    %c0_23 = arith.constant 0 : index
    %55 = vector.load %arg2[%c5, %c0_22, %c0_23] : memref<7x28x32xbf16, #tpu.memory_space<vmem>>, vector<1x28x32xbf16>
    %56 = vector.shape_cast %55 : vector<1x28x32xbf16> to vector<28x32xbf16>
    %cst_24 = arith.constant dense<0.000000e+00> : vector<64x32xf32>
    %57 = tpu.matmul %54, %56, %cst_24 {dimension_numbers = #tpu.dot_dimension_numbers<[1], [0], [0], [1], [0, 0, 1, 1], [], []>} : vector<64x28xbf16>, vector<28x32xbf16>, vector<64x32xf32> -> vector<64x32xf32>
    %58 = arith.addf %52, %57 : vector<64x32xf32>
    %59 = vector.extract_strided_slice %21 {offsets = [0, 6, 0, 0], sizes = [1, 8, 8, 28], strides = [1, 1, 1, 1]} : vector<1x14x8x28xbf16> to vector<1x8x8x28xbf16>
    %60 = vector.shape_cast %59 : vector<1x8x8x28xbf16> to vector<64x28xbf16>
    %c6 = arith.constant 6 : index
    %c0_25 = arith.constant 0 : index
    %c0_26 = arith.constant 0 : index
    %61 = vector.load %arg2[%c6, %c0_25, %c0_26] : memref<7x28x32xbf16, #tpu.memory_space<vmem>>, vector<1x28x32xbf16>
    %62 = vector.shape_cast %61 : vector<1x28x32xbf16> to vector<28x32xbf16>
    %cst_27 = arith.constant dense<0.000000e+00> : vector<64x32xf32>
    %63 = tpu.matmul %60, %62, %cst_27 {dimension_numbers = #tpu.dot_dimension_numbers<[1], [0], [0], [1], [0, 0, 1, 1], [], []>} : vector<64x28xbf16>, vector<28x32xbf16>, vector<64x32xf32> -> vector<64x32xf32>
    %64 = arith.addf %58, %63 : vector<64x32xf32>
    %c0_28 = arith.constant 0 : index
    %c0_29 = arith.constant 0 : index
    %65 = vector.load %arg3[%c0_28, %c0_29] : memref<1x32xf32, #tpu.memory_space<vmem>>, vector<1x32xf32>
    %66 = vector.broadcast %65 : vector<1x32xf32> to vector<64x32xf32>
    %67 = arith.addf %64, %66 : vector<64x32xf32>
    %cst_30 = arith.constant 0.000000e+00 : f32
    %68 = vector.broadcast %cst_30 : f32 to vector<64x32xf32>
    %69 = arith.maximumf %67, %68 : vector<64x32xf32>
    %70 = vector.shape_cast %69 : vector<64x32xf32> to vector<1x64x32xf32>
    %cst_31 = arith.constant dense<0.000000e+00> : vector<1x32xf32>
    %71 = vector.multi_reduction <add>, %70, %cst_31 [1] : vector<1x64x32xf32> to vector<1x32xf32>
    %cst_32 = arith.constant 6.400000e+01 : f32
    %72 = vector.broadcast %cst_32 : f32 to vector<1x32xf32>
    %73 = arith.divf %71, %72 : vector<1x32xf32>
    %74 = vector.shape_cast %73 : vector<1x32xf32> to vector<1x4x8xf32>
    %cst_33 = arith.constant dense<0.000000e+00> : vector<1x8xf32>
    %75 = vector.multi_reduction <add>, %74, %cst_33 [1] : vector<1x4x8xf32> to vector<1x8xf32>
    %76 = arith.truncf %75 : vector<1x8xf32> to vector<1x8xbf16>
    %c0_34 = arith.constant 0 : index
    %c0_35 = arith.constant 0 : index
    %77 = vector.load %arg4[%c0_34, %c0_35] : memref<8x32xbf16, #tpu.memory_space<vmem>>, vector<8x32xbf16>
    %cst_36 = arith.constant dense<0.000000e+00> : vector<1x32xf32>
    %78 = tpu.matmul %76, %77, %cst_36 {dimension_numbers = #tpu.dot_dimension_numbers<[1], [0], [0], [1], [0, 0, 1, 1], [], []>} : vector<1x8xbf16>, vector<8x32xbf16>, vector<1x32xf32> -> vector<1x32xf32>
    %c0_37 = arith.constant 0 : index
    %c0_38 = arith.constant 0 : index
    %79 = vector.load %arg5[%c0_37, %c0_38] : memref<1x32xf32, #tpu.memory_space<vmem>>, vector<1x32xf32>
    %80 = arith.addf %78, %79 : vector<1x32xf32>
    %81 = arith.truncf %80 : vector<1x32xf32> to vector<1x32xbf16>
    %c0_39 = arith.constant 0 : index
    %c0_40 = arith.constant 0 : index
    %82 = vector.load %arg6[%c0_39, %c0_40] : memref<32x32xbf16, #tpu.memory_space<vmem>>, vector<32x32xbf16>
    %cst_41 = arith.constant dense<0.000000e+00> : vector<1x32xf32>
    %83 = tpu.matmul %81, %82, %cst_41 {dimension_numbers = #tpu.dot_dimension_numbers<[1], [0], [0], [1], [0, 0, 1, 1], [], []>} : vector<1x32xbf16>, vector<32x32xbf16>, vector<1x32xf32> -> vector<1x32xf32>
    %c0_42 = arith.constant 0 : index
    %c0_43 = arith.constant 0 : index
    %84 = vector.load %arg7[%c0_42, %c0_43] : memref<1x32xf32, #tpu.memory_space<vmem>>, vector<1x32xf32>
    %85 = arith.addf %83, %84 : vector<1x32xf32>
    %86 = vector.shape_cast %85 : vector<1x32xf32> to vector<1x4x8xf32>
    %cst_44 = arith.constant dense<0xFF800000> : vector<1x8xf32>
    %87 = vector.multi_reduction <maximumf>, %86, %cst_44 [1] : vector<1x4x8xf32> to vector<1x8xf32>
    %88 = vector.shape_cast %87 : vector<1x8xf32> to vector<1x1x8xf32>
    %89 = vector.broadcast %88 : vector<1x1x8xf32> to vector<1x4x8xf32>
    %90 = arith.subf %86, %89 : vector<1x4x8xf32>
    %91 = math.exp %90 : vector<1x4x8xf32>
    %cst_45 = arith.constant dense<0.000000e+00> : vector<1x8xf32>
    %92 = vector.multi_reduction <add>, %91, %cst_45 [1] : vector<1x4x8xf32> to vector<1x8xf32>
    %93 = vector.shape_cast %92 : vector<1x8xf32> to vector<1x1x8xf32>
    %94 = tpu.reciprocal %93 {approx = true} : vector<1x1x8xf32> -> vector<1x1x8xf32>
    %95 = vector.broadcast %94 : vector<1x1x8xf32> to vector<1x4x8xf32>
    %96 = arith.mulf %91, %95 : vector<1x4x8xf32>
    %97 = vector.shape_cast %96 : vector<1x4x8xf32> to vector<1x1x32xf32>
    %98 = vector.broadcast %97 : vector<1x1x32xf32> to vector<1x64x32xf32>
    %99 = arith.mulf %70, %98 : vector<1x64x32xf32>
    %100 = vector.shape_cast %99 : vector<1x64x32xf32> to vector<1x64x4x8xf32>
    %cst_46 = arith.constant dense<0.000000e+00> : vector<1x64x8xf32>
    %101 = vector.multi_reduction <add>, %100, %cst_46 [2] : vector<1x64x4x8xf32> to vector<1x64x8xf32>
    %102 = vector.shape_cast %101 : vector<1x64x8xf32> to vector<1x8x8x8xf32>
    %cst_47 = arith.constant 0.000000e+00 : bf16
    %103 = vector.broadcast %cst_47 : bf16 to vector<1x8x3x8xbf16>
    %104 = arith.truncf %102 : vector<1x8x8x8xf32> to vector<1x8x8x8xbf16>
    %105 = tpu.concatenate %103, %104, %103 in 2 : vector<1x8x3x8xbf16>, vector<1x8x8x8xbf16>, vector<1x8x3x8xbf16> -> vector<1x8x14x8xbf16>
    %cst_48 = arith.constant 0.000000e+00 : bf16
    %106 = vector.broadcast %cst_48 : bf16 to vector<1x3x14x8xbf16>
    %107 = tpu.concatenate %106, %105, %106 in 1 : vector<1x3x14x8xbf16>, vector<1x8x14x8xbf16>, vector<1x3x14x8xbf16> -> vector<1x14x14x8xbf16>
    %108 = vector.extract_strided_slice %107 {offsets = [0, 0, 0, 0], sizes = [1, 14, 8, 8], strides = [1, 1, 1, 1]} : vector<1x14x14x8xbf16> to vector<1x14x8x8xbf16>
    %109 = vector.extract_strided_slice %107 {offsets = [0, 0, 1, 0], sizes = [1, 14, 8, 8], strides = [1, 1, 1, 1]} : vector<1x14x14x8xbf16> to vector<1x14x8x8xbf16>
    %110 = vector.extract_strided_slice %107 {offsets = [0, 0, 2, 0], sizes = [1, 14, 8, 8], strides = [1, 1, 1, 1]} : vector<1x14x14x8xbf16> to vector<1x14x8x8xbf16>
    %111 = vector.extract_strided_slice %107 {offsets = [0, 0, 3, 0], sizes = [1, 14, 8, 8], strides = [1, 1, 1, 1]} : vector<1x14x14x8xbf16> to vector<1x14x8x8xbf16>
    %112 = vector.extract_strided_slice %107 {offsets = [0, 0, 4, 0], sizes = [1, 14, 8, 8], strides = [1, 1, 1, 1]} : vector<1x14x14x8xbf16> to vector<1x14x8x8xbf16>
    %113 = vector.extract_strided_slice %107 {offsets = [0, 0, 5, 0], sizes = [1, 14, 8, 8], strides = [1, 1, 1, 1]} : vector<1x14x14x8xbf16> to vector<1x14x8x8xbf16>
    %114 = vector.extract_strided_slice %107 {offsets = [0, 0, 6, 0], sizes = [1, 14, 8, 8], strides = [1, 1, 1, 1]} : vector<1x14x14x8xbf16> to vector<1x14x8x8xbf16>
    %115 = tpu.concatenate %108, %109, %110, %111, %112, %113, %114 in 3 : vector<1x14x8x8xbf16>, vector<1x14x8x8xbf16>, vector<1x14x8x8xbf16>, vector<1x14x8x8xbf16>, vector<1x14x8x8xbf16>, vector<1x14x8x8xbf16>, vector<1x14x8x8xbf16> -> vector<1x14x8x56xbf16>
    %cst_49 = arith.constant 0.000000e+00 : f32
    %116 = vector.broadcast %cst_49 : f32 to vector<64x32xf32>
    %117 = vector.extract_strided_slice %115 {offsets = [0, 0, 0, 0], sizes = [1, 8, 8, 56], strides = [1, 1, 1, 1]} : vector<1x14x8x56xbf16> to vector<1x8x8x56xbf16>
    %118 = vector.shape_cast %117 : vector<1x8x8x56xbf16> to vector<64x56xbf16>
    %c0_50 = arith.constant 0 : index
    %c0_51 = arith.constant 0 : index
    %c0_52 = arith.constant 0 : index
    %119 = vector.load %arg8[%c0_50, %c0_51, %c0_52] : memref<7x56x32xbf16, #tpu.memory_space<vmem>>, vector<1x56x32xbf16>
    %120 = vector.shape_cast %119 : vector<1x56x32xbf16> to vector<56x32xbf16>
    %cst_53 = arith.constant dense<0.000000e+00> : vector<64x32xf32>
    %121 = tpu.matmul %118, %120, %cst_53 {dimension_numbers = #tpu.dot_dimension_numbers<[1], [0], [0], [1], [0, 0, 1, 1], [], []>} : vector<64x56xbf16>, vector<56x32xbf16>, vector<64x32xf32> -> vector<64x32xf32>
    %122 = arith.addf %116, %121 : vector<64x32xf32>
    %123 = vector.extract_strided_slice %115 {offsets = [0, 1, 0, 0], sizes = [1, 8, 8, 56], strides = [1, 1, 1, 1]} : vector<1x14x8x56xbf16> to vector<1x8x8x56xbf16>
    %124 = vector.shape_cast %123 : vector<1x8x8x56xbf16> to vector<64x56xbf16>
    %c1_54 = arith.constant 1 : index
    %c0_55 = arith.constant 0 : index
    %c0_56 = arith.constant 0 : index
    %125 = vector.load %arg8[%c1_54, %c0_55, %c0_56] : memref<7x56x32xbf16, #tpu.memory_space<vmem>>, vector<1x56x32xbf16>
    %126 = vector.shape_cast %125 : vector<1x56x32xbf16> to vector<56x32xbf16>
    %cst_57 = arith.constant dense<0.000000e+00> : vector<64x32xf32>
    %127 = tpu.matmul %124, %126, %cst_57 {dimension_numbers = #tpu.dot_dimension_numbers<[1], [0], [0], [1], [0, 0, 1, 1], [], []>} : vector<64x56xbf16>, vector<56x32xbf16>, vector<64x32xf32> -> vector<64x32xf32>
    %128 = arith.addf %122, %127 : vector<64x32xf32>
    %129 = vector.extract_strided_slice %115 {offsets = [0, 2, 0, 0], sizes = [1, 8, 8, 56], strides = [1, 1, 1, 1]} : vector<1x14x8x56xbf16> to vector<1x8x8x56xbf16>
    %130 = vector.shape_cast %129 : vector<1x8x8x56xbf16> to vector<64x56xbf16>
    %c2_58 = arith.constant 2 : index
    %c0_59 = arith.constant 0 : index
    %c0_60 = arith.constant 0 : index
    %131 = vector.load %arg8[%c2_58, %c0_59, %c0_60] : memref<7x56x32xbf16, #tpu.memory_space<vmem>>, vector<1x56x32xbf16>
    %132 = vector.shape_cast %131 : vector<1x56x32xbf16> to vector<56x32xbf16>
    %cst_61 = arith.constant dense<0.000000e+00> : vector<64x32xf32>
    %133 = tpu.matmul %130, %132, %cst_61 {dimension_numbers = #tpu.dot_dimension_numbers<[1], [0], [0], [1], [0, 0, 1, 1], [], []>} : vector<64x56xbf16>, vector<56x32xbf16>, vector<64x32xf32> -> vector<64x32xf32>
    %134 = arith.addf %128, %133 : vector<64x32xf32>
    %135 = vector.extract_strided_slice %115 {offsets = [0, 3, 0, 0], sizes = [1, 8, 8, 56], strides = [1, 1, 1, 1]} : vector<1x14x8x56xbf16> to vector<1x8x8x56xbf16>
    %136 = vector.shape_cast %135 : vector<1x8x8x56xbf16> to vector<64x56xbf16>
    %c3_62 = arith.constant 3 : index
    %c0_63 = arith.constant 0 : index
    %c0_64 = arith.constant 0 : index
    %137 = vector.load %arg8[%c3_62, %c0_63, %c0_64] : memref<7x56x32xbf16, #tpu.memory_space<vmem>>, vector<1x56x32xbf16>
    %138 = vector.shape_cast %137 : vector<1x56x32xbf16> to vector<56x32xbf16>
    %cst_65 = arith.constant dense<0.000000e+00> : vector<64x32xf32>
    %139 = tpu.matmul %136, %138, %cst_65 {dimension_numbers = #tpu.dot_dimension_numbers<[1], [0], [0], [1], [0, 0, 1, 1], [], []>} : vector<64x56xbf16>, vector<56x32xbf16>, vector<64x32xf32> -> vector<64x32xf32>
    %140 = arith.addf %134, %139 : vector<64x32xf32>
    %141 = vector.extract_strided_slice %115 {offsets = [0, 4, 0, 0], sizes = [1, 8, 8, 56], strides = [1, 1, 1, 1]} : vector<1x14x8x56xbf16> to vector<1x8x8x56xbf16>
    %142 = vector.shape_cast %141 : vector<1x8x8x56xbf16> to vector<64x56xbf16>
    %c4_66 = arith.constant 4 : index
    %c0_67 = arith.constant 0 : index
    %c0_68 = arith.constant 0 : index
    %143 = vector.load %arg8[%c4_66, %c0_67, %c0_68] : memref<7x56x32xbf16, #tpu.memory_space<vmem>>, vector<1x56x32xbf16>
    %144 = vector.shape_cast %143 : vector<1x56x32xbf16> to vector<56x32xbf16>
    %cst_69 = arith.constant dense<0.000000e+00> : vector<64x32xf32>
    %145 = tpu.matmul %142, %144, %cst_69 {dimension_numbers = #tpu.dot_dimension_numbers<[1], [0], [0], [1], [0, 0, 1, 1], [], []>} : vector<64x56xbf16>, vector<56x32xbf16>, vector<64x32xf32> -> vector<64x32xf32>
    %146 = arith.addf %140, %145 : vector<64x32xf32>
    %147 = vector.extract_strided_slice %115 {offsets = [0, 5, 0, 0], sizes = [1, 8, 8, 56], strides = [1, 1, 1, 1]} : vector<1x14x8x56xbf16> to vector<1x8x8x56xbf16>
    %148 = vector.shape_cast %147 : vector<1x8x8x56xbf16> to vector<64x56xbf16>
    %c5_70 = arith.constant 5 : index
    %c0_71 = arith.constant 0 : index
    %c0_72 = arith.constant 0 : index
    %149 = vector.load %arg8[%c5_70, %c0_71, %c0_72] : memref<7x56x32xbf16, #tpu.memory_space<vmem>>, vector<1x56x32xbf16>
    %150 = vector.shape_cast %149 : vector<1x56x32xbf16> to vector<56x32xbf16>
    %cst_73 = arith.constant dense<0.000000e+00> : vector<64x32xf32>
    %151 = tpu.matmul %148, %150, %cst_73 {dimension_numbers = #tpu.dot_dimension_numbers<[1], [0], [0], [1], [0, 0, 1, 1], [], []>} : vector<64x56xbf16>, vector<56x32xbf16>, vector<64x32xf32> -> vector<64x32xf32>
    %152 = arith.addf %146, %151 : vector<64x32xf32>
    %153 = vector.extract_strided_slice %115 {offsets = [0, 6, 0, 0], sizes = [1, 8, 8, 56], strides = [1, 1, 1, 1]} : vector<1x14x8x56xbf16> to vector<1x8x8x56xbf16>
    %154 = vector.shape_cast %153 : vector<1x8x8x56xbf16> to vector<64x56xbf16>
    %c6_74 = arith.constant 6 : index
    %c0_75 = arith.constant 0 : index
    %c0_76 = arith.constant 0 : index
    %155 = vector.load %arg8[%c6_74, %c0_75, %c0_76] : memref<7x56x32xbf16, #tpu.memory_space<vmem>>, vector<1x56x32xbf16>
    %156 = vector.shape_cast %155 : vector<1x56x32xbf16> to vector<56x32xbf16>
    %cst_77 = arith.constant dense<0.000000e+00> : vector<64x32xf32>
    %157 = tpu.matmul %154, %156, %cst_77 {dimension_numbers = #tpu.dot_dimension_numbers<[1], [0], [0], [1], [0, 0, 1, 1], [], []>} : vector<64x56xbf16>, vector<56x32xbf16>, vector<64x32xf32> -> vector<64x32xf32>
    %158 = arith.addf %152, %157 : vector<64x32xf32>
    %c0_78 = arith.constant 0 : index
    %c0_79 = arith.constant 0 : index
    %159 = vector.load %arg9[%c0_78, %c0_79] : memref<1x32xf32, #tpu.memory_space<vmem>>, vector<1x32xf32>
    %160 = vector.broadcast %159 : vector<1x32xf32> to vector<64x32xf32>
    %161 = arith.addf %158, %160 : vector<64x32xf32>
    %cst_80 = arith.constant 0.000000e+00 : f32
    %162 = vector.broadcast %cst_80 : f32 to vector<64x32xf32>
    %163 = arith.maximumf %161, %162 : vector<64x32xf32>
    %164 = vector.shape_cast %163 : vector<64x32xf32> to vector<1x64x32xf32>
    %cst_81 = arith.constant dense<0.000000e+00> : vector<1x32xf32>
    %165 = vector.multi_reduction <add>, %164, %cst_81 [1] : vector<1x64x32xf32> to vector<1x32xf32>
    %cst_82 = arith.constant 6.400000e+01 : f32
    %166 = vector.broadcast %cst_82 : f32 to vector<1x32xf32>
    %167 = arith.divf %165, %166 : vector<1x32xf32>
    %168 = vector.shape_cast %167 : vector<1x32xf32> to vector<1x4x8xf32>
    %cst_83 = arith.constant dense<0.000000e+00> : vector<1x8xf32>
    %169 = vector.multi_reduction <add>, %168, %cst_83 [1] : vector<1x4x8xf32> to vector<1x8xf32>
    %170 = arith.truncf %169 : vector<1x8xf32> to vector<1x8xbf16>
    %c0_84 = arith.constant 0 : index
    %c0_85 = arith.constant 0 : index
    %171 = vector.load %arg10[%c0_84, %c0_85] : memref<8x32xbf16, #tpu.memory_space<vmem>>, vector<8x32xbf16>
    %cst_86 = arith.constant dense<0.000000e+00> : vector<1x32xf32>
    %172 = tpu.matmul %170, %171, %cst_86 {dimension_numbers = #tpu.dot_dimension_numbers<[1], [0], [0], [1], [0, 0, 1, 1], [], []>} : vector<1x8xbf16>, vector<8x32xbf16>, vector<1x32xf32> -> vector<1x32xf32>
    %c0_87 = arith.constant 0 : index
    %c0_88 = arith.constant 0 : index
    %173 = vector.load %arg11[%c0_87, %c0_88] : memref<1x32xf32, #tpu.memory_space<vmem>>, vector<1x32xf32>
    %174 = arith.addf %172, %173 : vector<1x32xf32>
    %175 = arith.truncf %174 : vector<1x32xf32> to vector<1x32xbf16>
    %c0_89 = arith.constant 0 : index
    %c0_90 = arith.constant 0 : index
    %176 = vector.load %arg12[%c0_89, %c0_90] : memref<32x32xbf16, #tpu.memory_space<vmem>>, vector<32x32xbf16>
    %cst_91 = arith.constant dense<0.000000e+00> : vector<1x32xf32>
    %177 = tpu.matmul %175, %176, %cst_91 {dimension_numbers = #tpu.dot_dimension_numbers<[1], [0], [0], [1], [0, 0, 1, 1], [], []>} : vector<1x32xbf16>, vector<32x32xbf16>, vector<1x32xf32> -> vector<1x32xf32>
    %c0_92 = arith.constant 0 : index
    %c0_93 = arith.constant 0 : index
    %178 = vector.load %arg13[%c0_92, %c0_93] : memref<1x32xf32, #tpu.memory_space<vmem>>, vector<1x32xf32>
    %179 = arith.addf %177, %178 : vector<1x32xf32>
    %180 = vector.shape_cast %179 : vector<1x32xf32> to vector<1x4x8xf32>
    %cst_94 = arith.constant dense<0xFF800000> : vector<1x8xf32>
    %181 = vector.multi_reduction <maximumf>, %180, %cst_94 [1] : vector<1x4x8xf32> to vector<1x8xf32>
    %182 = vector.shape_cast %181 : vector<1x8xf32> to vector<1x1x8xf32>
    %183 = vector.broadcast %182 : vector<1x1x8xf32> to vector<1x4x8xf32>
    %184 = arith.subf %180, %183 : vector<1x4x8xf32>
    %185 = math.exp %184 : vector<1x4x8xf32>
    %cst_95 = arith.constant dense<0.000000e+00> : vector<1x8xf32>
    %186 = vector.multi_reduction <add>, %185, %cst_95 [1] : vector<1x4x8xf32> to vector<1x8xf32>
    %187 = vector.shape_cast %186 : vector<1x8xf32> to vector<1x1x8xf32>
    %188 = tpu.reciprocal %187 {approx = true} : vector<1x1x8xf32> -> vector<1x1x8xf32>
    %189 = vector.broadcast %188 : vector<1x1x8xf32> to vector<1x4x8xf32>
    %190 = arith.mulf %185, %189 : vector<1x4x8xf32>
    %191 = vector.shape_cast %190 : vector<1x4x8xf32> to vector<1x1x32xf32>
    %192 = vector.broadcast %191 : vector<1x1x32xf32> to vector<1x64x32xf32>
    %193 = arith.mulf %164, %192 : vector<1x64x32xf32>
    %194 = vector.shape_cast %193 : vector<1x64x32xf32> to vector<1x64x4x8xf32>
    %cst_96 = arith.constant dense<0.000000e+00> : vector<1x64x8xf32>
    %195 = vector.multi_reduction <add>, %194, %cst_96 [2] : vector<1x64x4x8xf32> to vector<1x64x8xf32>
    %196 = vector.shape_cast %195 : vector<1x64x8xf32> to vector<1x1x512xf32>
    %c0_97 = arith.constant 0 : index
    %c0_98 = arith.constant 0 : index
    %c0_99 = arith.constant 0 : index
    %197 = vector.load %arg14[%c0_97, %c0_98, %c0_99] : memref<1x1x512xf32, #tpu.memory_space<vmem>>, vector<1x1x512xf32>
    tpu.vector_store %arg14[%c0_97, %c0_98, %c0_99], %196 {strides = array<i32>} : memref<1x1x512xf32, #tpu.memory_space<vmem>>, vector<1x1x512xf32>,
    return
  }
  func.func @transform_0(%arg0: i32) -> (i32, i32, i32, i32, i32) {
    %c0_i32 = arith.constant 0 : i32
    %c0_i32_0 = arith.constant 0 : i32
    %c0_i32_1 = arith.constant 0 : i32
    %c0_i32_2 = arith.constant 0 : i32
    %c0_i32_3 = arith.constant 0 : i32
    return %arg0, %c0_i32, %c0_i32_0, %c0_i32_1, %c0_i32_2 : i32, i32, i32, i32, i32
  }
  func.func @transform_1(%arg0: i32) -> (i32, i32, i32) {
    %c0_i32 = arith.constant 0 : i32
    %c0_i32_0 = arith.constant 0 : i32
    %c0_i32_1 = arith.constant 0 : i32
    %c0_i32_2 = arith.constant 0 : i32
    return %c0_i32, %c0_i32_0, %c0_i32_1 : i32, i32, i32
  }
  func.func @transform_2(%arg0: i32) -> (i32, i32) {
    %c0_i32 = arith.constant 0 : i32
    %c0_i32_0 = arith.constant 0 : i32
    %c0_i32_1 = arith.constant 0 : i32
    return %c0_i32, %c0_i32_0 : i32, i32
  }
  func.func @transform_3(%arg0: i32) -> (i32, i32) {
    %c0_i32 = arith.constant 0 : i32
    %c0_i32_0 = arith.constant 0 : i32
    %c0_i32_1 = arith.constant 0 : i32
    return %c0_i32, %c0_i32_0 : i32, i32
  }
  func.func @transform_4(%arg0: i32) -> (i32, i32) {
    %c0_i32 = arith.constant 0 : i32
    %c0_i32_0 = arith.constant 0 : i32
    %c0_i32_1 = arith.constant 0 : i32
    return %c0_i32, %c0_i32_0 : i32, i32
  }
  func.func @transform_5(%arg0: i32) -> (i32, i32) {
    %c0_i32 = arith.constant 0 : i32
    %c0_i32_0 = arith.constant 0 : i32
    %c0_i32_1 = arith.constant 0 : i32
    return %c0_i32, %c0_i32_0 : i32, i32
  }
  func.func @transform_6(%arg0: i32) -> (i32, i32) {
    %c0_i32 = arith.constant 0 : i32
    %c0_i32_0 = arith.constant 0 : i32
    %c0_i32_1 = arith.constant 0 : i32
    return %c0_i32, %c0_i32_0 : i32, i32
  }
  func.func @transform_7(%arg0: i32) -> (i32, i32, i32) {
    %c0_i32 = arith.constant 0 : i32
    %c0_i32_0 = arith.constant 0 : i32
    %c0_i32_1 = arith.constant 0 : i32
    %c0_i32_2 = arith.constant 0 : i32
    return %c0_i32, %c0_i32_0, %c0_i32_1 : i32, i32, i32
  }
  func.func @transform_8(%arg0: i32) -> (i32, i32) {
    %c0_i32 = arith.constant 0 : i32
    %c0_i32_0 = arith.constant 0 : i32
    %c0_i32_1 = arith.constant 0 : i32
    return %c0_i32, %c0_i32_0 : i32, i32
  }
  func.func @transform_9(%arg0: i32) -> (i32, i32) {
    %c0_i32 = arith.constant 0 : i32
    %c0_i32_0 = arith.constant 0 : i32
    %c0_i32_1 = arith.constant 0 : i32
    return %c0_i32, %c0_i32_0 : i32, i32
  }
  func.func @transform_10(%arg0: i32) -> (i32, i32) {
    %c0_i32 = arith.constant 0 : i32
    %c0_i32_0 = arith.constant 0 : i32
    %c0_i32_1 = arith.constant 0 : i32
    return %c0_i32, %c0_i32_0 : i32, i32
  }
  func.func @transform_11(%arg0: i32) -> (i32, i32) {
    %c0_i32 = arith.constant 0 : i32
    %c0_i32_0 = arith.constant 0 : i32
    %c0_i32_1 = arith.constant 0 : i32
    return %c0_i32, %c0_i32_0 : i32, i32
  }
  func.func @transform_12(%arg0: i32) -> (i32, i32) {
    %c0_i32 = arith.constant 0 : i32
    %c0_i32_0 = arith.constant 0 : i32
    %c0_i32_1 = arith.constant 0 : i32
    return %c0_i32, %c0_i32_0 : i32, i32
  }
  func.func @transform_13(%arg0: i32) -> (i32, i32, i32) {
    %c0_i32 = arith.constant 0 : i32
    %c0_i32_0 = arith.constant 0 : i32
    %c0_i32_1 = arith.constant 0 : i32
    return %arg0, %c0_i32, %c0_i32_0 : i32, i32, i32
  }
}

</mosaic_0001>

<llo_original>
// kernel: down_forward.1
$region0: #{down_forward.1}
  #allocation0 [shape = 'u32[]', space=smem, size = 0x4, offset = 0x4, fixed_abs, tag = 'smem constant byte address 0x4 - core index']
  #allocation1 [shape = 'u32[144,128]{1,0:T(1,128)}', space=vmem, size = 0x12000, scoped, tag = 'internal scratch']
  %s0 = inlined_call_operand.vmem [shape: f32[2,8,2,8,8], index: 0, kind: input, shape index: {}]
  %s1 = inlined_call_operand.vmem [shape: bf16[7,28,32], index: 1, kind: input, shape index: {}]
  %s2 = inlined_call_operand.vmem [shape: f32[1,32], index: 2, kind: input, shape index: {}]
  %s3 = inlined_call_operand.vmem [shape: bf16[8,32], index: 3, kind: input, shape index: {}]
  %s4 = inlined_call_operand.vmem [shape: f32[1,32], index: 4, kind: input, shape index: {}]
  %s5 = inlined_call_operand.vmem [shape: bf16[32,32], index: 5, kind: input, shape index: {}]
  %s6 = inlined_call_operand.vmem [shape: f32[1,32], index: 6, kind: input, shape index: {}]
  %s7 = inlined_call_operand.vmem [shape: bf16[7,56,32], index: 7, kind: input, shape index: {}]
  %s8 = inlined_call_operand.vmem [shape: f32[1,32], index: 8, kind: input, shape index: {}]
  %s9 = inlined_call_operand.vmem [shape: bf16[8,32], index: 9, kind: input, shape index: {}]
  %s10 = inlined_call_operand.vmem [shape: f32[1,32], index: 10, kind: input, shape index: {}]
  %s11 = inlined_call_operand.vmem [shape: bf16[32,32], index: 11, kind: input, shape index: {}]
  %s12 = inlined_call_operand.vmem [shape: f32[1,32], index: 12, kind: input, shape index: {}]
  %s13 = inlined_call_operand.vmem [shape: f32[2,1,512], index: 13, kind: output, shape index: {}]
  %s14 = sld [smem:[#allocation0]]
  $region85: #{down_forward.1} parent=0
    _
  %s16 = ssub.s32 1, %s14
  %s17 = scalar_select 0, %s16, %s14
  loop: start=0, step=1, limit=4
  $region2: #{down_forward.1} parent=0 // loop_pre_header
    _
  $region3: #{down_forward.1} parent=0 // loop_header
    %s19 = sphi 0, %s23
    %p20 = scmp.ge.s32.totalorder %s19, 4
    %s29 = sphi 0, %s31
    %s32 = sphi 0, %s29
    %s33 = sphi 0, %s32
    %s49 = sphi 0, %s33
    %s53 = sphi 0, %s53
    %s55 = sphi 0, %s53
    %s56 = sphi 0, %s55
    %s70 = sphi 0, %s56
    %s74 = sphi 0, %s74
    %s76 = sphi 0, %s74
    %s77 = sphi 0, %s76
    %s91 = sphi 0, %s77
    %s95 = sphi 0, %s95
    %s97 = sphi 0, %s95
    %s98 = sphi 0, %s97
    %s112 = sphi 0, %s98
    %s116 = sphi 0, %s116
    %s118 = sphi 0, %s116
    %s119 = sphi 0, %s118
    %s133 = sphi 0, %s119
    %s137 = sphi 0, %s137
    %s139 = sphi 0, %s137
    %s140 = sphi 0, %s139
    %s154 = sphi 0, %s140
    %s158 = sphi 0, %s158
    %s160 = sphi 0, %s158
    %s161 = sphi 0, %s160
    %s175 = sphi 0, %s161
    %s179 = sphi 0, %s179
    %s181 = sphi 0, %s179
    %s182 = sphi 0, %s181
    %s196 = sphi 0, %s182
    %s200 = sphi 0, %s200
    %s202 = sphi 0, %s200
    %s203 = sphi 0, %s202
    %s217 = sphi 0, %s203
    %s221 = sphi 0, %s221
    %s223 = sphi 0, %s221
    %s224 = sphi 0, %s223
    %s238 = sphi 0, %s224
    %s242 = sphi 0, %s242
    %s244 = sphi 0, %s242
    %s245 = sphi 0, %s244
    %s259 = sphi 0, %s245
    %s263 = sphi 0, %s263
    %s265 = sphi 0, %s263
    %s266 = sphi 0, %s265
    %s280 = sphi 0, %s266
    %s284 = sphi 0, %s284
    %s286 = sphi 0, %s284
    %s287 = sphi 0, %s286
    %s301 = sphi 0, %s287
    %s307 = sphi 0, %s309
    %s310 = sphi 0, %s307
    %s311 = sphi 0, %s310
    %s327 = sphi 0, %s311
  $region4: #{down_forward.1} parent=0 // loop_header_branch
    %22 = sbr.rel (%p20) target = $region8
  $region5: #{down_forward.1} parent=0 // loop_body
    %s24 = ssub.s32 %s19, 1
    %s25 = ssub.s32 %s19, 2
    %s26 = sadd.s32 %s19, 1
    %s27 = ssub.s32 %s19, %s26
    %p28 = scmp.eq.s32.totalorder %s27, 0
    %s30 = sadd.s32 %s29, 1
    %s31 = scalar_select %p28, %s29, %s30
    %p34 = pneg %p28
    %p35 = scmp.eq.s32.totalorder %s19, 1
    %p36 = por %p34, %p35
    %p37 = scmp.ne.s32.totalorder %s29, %s32
    %p38 = scmp.eq.s32.totalorder %s19, 0
    %p39 = por %p37, %p38
    %p40 = scmp.ne.s32.totalorder %s29, %s32
    %p41 = scmp.eq.s32.totalorder %s24, 1
    %p42 = por %p40, %p41
    %p43 = scmp.ne.s32.totalorder %s32, %s33
    %p44 = scmp.eq.s32.totalorder %s24, 0
    %p45 = por %p43, %p44
    %p46 = scmp.ne.s32.totalorder %s32, %s33
    %p47 = scmp.eq.s32.totalorder %s25, 1
    %p48 = por %p46, %p47
    %p50 = scmp.ne.s32.totalorder %s33, %s49
    %p51 = scmp.eq.s32.totalorder %s25, 0
    %p52 = por %p50, %p51
    %s54 = sadd.s32 %s53, 1
    %p57 = scmp.eq.s32.totalorder %s19, 1
    %p58 = scmp.ne.s32.totalorder %s53, %s55
    %p59 = scmp.eq.s32.totalorder %s19, 0
    %p60 = por %p58, %p59
    %p61 = scmp.ne.s32.totalorder %s53, %s55
    %p62 = scmp.eq.s32.totalorder %s24, 1
    %p63 = por %p61, %p62
    %p64 = scmp.ne.s32.totalorder %s55, %s56
    %p65 = scmp.eq.s32.totalorder %s24, 0
    %p66 = por %p64, %p65
    %p67 = scmp.ne.s32.totalorder %s55, %s56
    %p68 = scmp.eq.s32.totalorder %s25, 1
    %p69 = por %p67, %p68
    %p71 = scmp.ne.s32.totalorder %s56, %s70
    %p72 = scmp.eq.s32.totalorder %s25, 0
    %p73 = por %p71, %p72
    %s75 = sadd.s32 %s74, 1
    %p78 = scmp.eq.s32.totalorder %s19, 1
    %p79 = scmp.ne.s32.totalorder %s74, %s76
    %p80 = scmp.eq.s32.totalorder %s19, 0
    %p81 = por %p79, %p80
    %p82 = scmp.ne.s32.totalorder %s74, %s76
    %p83 = scmp.eq.s32.totalorder %s24, 1
    %p84 = por %p82, %p83
    %p85 = scmp.ne.s32.totalorder %s76, %s77
    %p86 = scmp.eq.s32.totalorder %s24, 0
    %p87 = por %p85, %p86
    %p88 = scmp.ne.s32.totalorder %s76, %s77
    %p89 = scmp.eq.s32.totalorder %s25, 1
    %p90 = por %p88, %p89
    %p92 = scmp.ne.s32.totalorder %s77, %s91
    %p93 = scmp.eq.s32.totalorder %s25, 0
    %p94 = por %p92, %p93
    %s96 = sadd.s32 %s95, 1
    %p99 = scmp.eq.s32.totalorder %s19, 1
    %p100 = scmp.ne.s32.totalorder %s95, %s97
    %p101 = scmp.eq.s32.totalorder %s19, 0
    %p102 = por %p100, %p101
    %p103 = scmp.ne.s32.totalorder %s95, %s97
    %p104 = scmp.eq.s32.totalorder %s24, 1
    %p105 = por %p103, %p104
    %p106 = scmp.ne.s32.totalorder %s97, %s98
    %p107 = scmp.eq.s32.totalorder %s24, 0
    %p108 = por %p106, %p107
    %p109 = scmp.ne.s32.totalorder %s97, %s98
    %p110 = scmp.eq.s32.totalorder %s25, 1
    %p111 = por %p109, %p110
    %p113 = scmp.ne.s32.totalorder %s98, %s112
    %p114 = scmp.eq.s32.totalorder %s25, 0
    %p115 = por %p113, %p114
    %s117 = sadd.s32 %s116, 1
    %p120 = scmp.eq.s32.totalorder %s19, 1
    %p121 = scmp.ne.s32.totalorder %s116, %s118
    %p122 = scmp.eq.s32.totalorder %s19, 0
    %p123 = por %p121, %p122
    %p124 = scmp.ne.s32.totalorder %s116, %s118
    %p125 = scmp.eq.s32.totalorder %s24, 1
    %p126 = por %p124, %p125
    %p127 = scmp.ne.s32.totalorder %s118, %s119
    %p128 = scmp.eq.s32.totalorder %s24, 0
    %p129 = por %p127, %p128
    %p130 = scmp.ne.s32.totalorder %s118, %s119
    %p131 = scmp.eq.s32.totalorder %s25, 1
    %p132 = por %p130, %p131
    %p134 = scmp.ne.s32.totalorder %s119, %s133
    %p135 = scmp.eq.s32.totalorder %s25, 0
    %p136 = por %p134, %p135
    %s138 = sadd.s32 %s137, 1
    %p141 = scmp.eq.s32.totalorder %s19, 1
    %p142 = scmp.ne.s32.totalorder %s137, %s139
    %p143 = scmp.eq.s32.totalorder %s19, 0
    %p144 = por %p142, %p143
    %p145 = scmp.ne.s32.totalorder %s137, %s139
    %p146 = scmp.eq.s32.totalorder %s24, 1
    %p147 = por %p145, %p146
    %p148 = scmp.ne.s32.totalorder %s139, %s140
    %p149 = scmp.eq.s32.totalorder %s24, 0
    %p150 = por %p148, %p149
    %p151 = scmp.ne.s32.totalorder %s139, %s140
    %p152 = scmp.eq.s32.totalorder %s25, 1
    %p153 = por %p151, %p152
    %p155 = scmp.ne.s32.totalorder %s140, %s154
    %p156 = scmp.eq.s32.totalorder %s25, 0
    %p157 = por %p155, %p156
    %s159 = sadd.s32 %s158, 1
    %p162 = scmp.eq.s32.totalorder %s19, 1
    %p163 = scmp.ne.s32.totalorder %s158, %s160
    %p164 = scmp.eq.s32.totalorder %s19, 0
    %p165 = por %p163, %p164
    %p166 = scmp.ne.s32.totalorder %s158, %s160
    %p167 = scmp.eq.s32.totalorder %s24, 1
    %p168 = por %p166, %p167
    %p169 = scmp.ne.s32.totalorder %s160, %s161
    %p170 = scmp.eq.s32.totalorder %s24, 0
    %p171 = por %p169, %p170
    %p172 = scmp.ne.s32.totalorder %s160, %s161
    %p173 = scmp.eq.s32.totalorder %s25, 1
    %p174 = por %p172, %p173
    %p176 = scmp.ne.s32.totalorder %s161, %s175
    %p177 = scmp.eq.s32.totalorder %s25, 0
    %p178 = por %p176, %p177
    %s180 = sadd.s32 %s179, 1
    %p183 = scmp.eq.s32.totalorder %s19, 1
    %p184 = scmp.ne.s32.totalorder %s179, %s181
    %p185 = scmp.eq.s32.totalorder %s19, 0
    %p186 = por %p184, %p185
    %p187 = scmp.ne.s32.totalorder %s179, %s181
    %p188 = scmp.eq.s32.totalorder %s24, 1
    %p189 = por %p187, %p188
    %p190 = scmp.ne.s32.totalorder %s181, %s182
    %p191 = scmp.eq.s32.totalorder %s24, 0
    %p192 = por %p190, %p191
    %p193 = scmp.ne.s32.totalorder %s181, %s182
    %p194 = scmp.eq.s32.totalorder %s25, 1
    %p195 = por %p193, %p194
    %p197 = scmp.ne.s32.totalorder %s182, %s196
    %p198 = scmp.eq.s32.totalorder %s25, 0
    %p199 = por %p197, %p198
    %s201 = sadd.s32 %s200, 1
    %p204 = scmp.eq.s32.totalorder %s19, 1
    %p205 = scmp.ne.s32.totalorder %s200, %s202
    %p206 = scmp.eq.s32.totalorder %s19, 0
    %p207 = por %p205, %p206
    %p208 = scmp.ne.s32.totalorder %s200, %s202
    %p209 = scmp.eq.s32.totalorder %s24, 1
    %p210 = por %p208, %p209
    %p211 = scmp.ne.s32.totalorder %s202, %s203
    %p212 = scmp.eq.s32.totalorder %s24, 0
    %p213 = por %p211, %p212
    %p214 = scmp.ne.s32.totalorder %s202, %s203
    %p215 = scmp.eq.s32.totalorder %s25, 1
    %p216 = por %p214, %p215
    %p218 = scmp.ne.s32.totalorder %s203, %s217
    %p219 = scmp.eq.s32.totalorder %s25, 0
    %p220 = por %p218, %p219
    %s222 = sadd.s32 %s221, 1
    %p225 = scmp.eq.s32.totalorder %s19, 1
    %p226 = scmp.ne.s32.totalorder %s221, %s223
    %p227 = scmp.eq.s32.totalorder %s19, 0
    %p228 = por %p226, %p227
    %p229 = scmp.ne.s32.totalorder %s221, %s223
    %p230 = scmp.eq.s32.totalorder %s24, 1
    %p231 = por %p229, %p230
    %p232 = scmp.ne.s32.totalorder %s223, %s224
    %p233 = scmp.eq.s32.totalorder %s24, 0
    %p234 = por %p232, %p233
    %p235 = scmp.ne.s32.totalorder %s223, %s224
    %p236 = scmp.eq.s32.totalorder %s25, 1
    %p237 = por %p235, %p236
    %p239 = scmp.ne.s32.totalorder %s224, %s238
    %p240 = scmp.eq.s32.totalorder %s25, 0
    %p241 = por %p239, %p240
    %s243 = sadd.s32 %s242, 1
    %p246 = scmp.eq.s32.totalorder %s19, 1
    %p247 = scmp.ne.s32.totalorder %s242, %s244
    %p248 = scmp.eq.s32.totalorder %s19, 0
    %p249 = por %p247, %p248
    %p250 = scmp.ne.s32.totalorder %s242, %s244
    %p251 = scmp.eq.s32.totalorder %s24, 1
    %p252 = por %p250, %p251
    %p253 = scmp.ne.s32.totalorder %s244, %s245
    %p254 = scmp.eq.s32.totalorder %s24, 0
    %p255 = por %p253, %p254
    %p256 = scmp.ne.s32.totalorder %s244, %s245
    %p257 = scmp.eq.s32.totalorder %s25, 1
    %p258 = por %p256, %p257
    %p260 = scmp.ne.s32.totalorder %s245, %s259
    %p261 = scmp.eq.s32.totalorder %s25, 0
    %p262 = por %p260, %p261
    %s264 = sadd.s32 %s263, 1
    %p267 = scmp.eq.s32.totalorder %s19, 1
    %p268 = scmp.ne.s32.totalorder %s263, %s265
    %p269 = scmp.eq.s32.totalorder %s19, 0
    %p270 = por %p268, %p269
    %p271 = scmp.ne.s32.totalorder %s263, %s265
    %p272 = scmp.eq.s32.totalorder %s24, 1
    %p273 = por %p271, %p272
    %p274 = scmp.ne.s32.totalorder %s265, %s266
    %p275 = scmp.eq.s32.totalorder %s24, 0
    %p276 = por %p274, %p275
    %p277 = scmp.ne.s32.totalorder %s265, %s266
    %p278 = scmp.eq.s32.totalorder %s25, 1
    %p279 = por %p277, %p278
    %p281 = scmp.ne.s32.totalorder %s266, %s280
    %p282 = scmp.eq.s32.totalorder %s25, 0
    %p283 = por %p281, %p282
    %s285 = sadd.s32 %s284, 1
    %p288 = scmp.eq.s32.totalorder %s19, 1
    %p289 = scmp.ne.s32.totalorder %s284, %s286
    %p290 = scmp.eq.s32.totalorder %s19, 0
    %p291 = por %p289, %p290
    %p292 = scmp.ne.s32.totalorder %s284, %s286
    %p293 = scmp.eq.s32.totalorder %s24, 1
    %p294 = por %p292, %p293
    %p295 = scmp.ne.s32.totalorder %s286, %s287
    %p296 = scmp.eq.s32.totalorder %s24, 0
    %p297 = por %p295, %p296
    %p298 = scmp.ne.s32.totalorder %s286, %s287
    %p299 = scmp.eq.s32.totalorder %s25, 1
    %p300 = por %p298, %p299
    %p302 = scmp.ne.s32.totalorder %s287, %s301
    %p303 = scmp.eq.s32.totalorder %s25, 0
    %p304 = por %p302, %p303
    %s305 = ssub.s32 %s19, %s26
    %p306 = scmp.eq.s32.totalorder %s305, 0
    %s308 = sadd.s32 %s307, 1
    %s309 = scalar_select %p306, %s307, %s308
    %p312 = pneg %p306
    %p313 = scmp.eq.s32.totalorder %s19, 1
    %p314 = por %p312, %p313
    %p315 = scmp.ne.s32.totalorder %s307, %s310
    %p316 = scmp.eq.s32.totalorder %s19, 0
    %p317 = por %p315, %p316
    %p318 = scmp.ne.s32.totalorder %s307, %s310
    %p319 = scmp.eq.s32.totalorder %s24, 1
    %p320 = por %p318, %p319
    %p321 = scmp.ne.s32.totalorder %s310, %s311
    %p322 = scmp.eq.s32.totalorder %s24, 0
    %p323 = por %p321, %p322
    %p324 = scmp.ne.s32.totalorder %s310, %s311
    %p325 = scmp.eq.s32.totalorder %s25, 1
    %p326 = por %p324, %p325
    %p328 = scmp.ne.s32.totalorder %s311, %s327
    %p329 = scmp.eq.s32.totalorder %s25, 0
    %p330 = por %p328, %p329
    %p331 = scmp.le.s32.totalorder 1, %s19
    %p332 = scmp.lt.s32.totalorder %s19, 3
    %p333 = pnand %p331, %p332
    %p334 = pneg %p333
    // Predicated region
    $region9: #{down_forward.1} parent=5 // pred_check
      _
    $region10: #{down_forward.1} parent=5 // pred_check_branch
      %336 = sbr.rel (%p333) target = $region12
    $region11: #{down_forward.1} parent=5 // pred_region
      %s337 = ssub.s32 %s19, 1
      // Predicated region
      $region13: #{down_forward.1} parent=11 // pred_check
        %p338 = pneg %p66
      $region14: #{down_forward.1} parent=11 // pred_check_branch
        %340 = sbr.rel (%p338) target = $region16
      $region15: #{down_forward.1} parent=11 // pred_region
        _
      $region16: #{down_forward.1} parent=11 // pred_fallthru
        _
      // Predicated region
      $region17: #{down_forward.1} parent=11 // pred_check
        %p341 = pneg %p87
      $region18: #{down_forward.1} parent=11 // pred_check_branch
        %343 = sbr.rel (%p341) target = $region20
      $region19: #{down_forward.1} parent=11 // pred_region
        _
      $region20: #{down_forward.1} parent=11 // pred_fallthru
        _
      // Predicated region
      $region21: #{down_forward.1} parent=11 // pred_check
        %p344 = pneg %p108
      $region22: #{down_forward.1} parent=11 // pred_check_branch
        %346 = sbr.rel (%p344) target = $region24
      $region23: #{down_forward.1} parent=11 // pred_region
        _
      $region24: #{down_forward.1} parent=11 // pred_fallthru
        _
      // Predicated region
      $region25: #{down_forward.1} parent=11 // pred_check
        %p347 = pneg %p129
      $region26: #{down_forward.1} parent=11 // pred_check_branch
        %349 = sbr.rel (%p347) target = $region28
      $region27: #{down_forward.1} parent=11 // pred_region
        _
      $region28: #{down_forward.1} parent=11 // pred_fallthru
        _
      // Predicated region
      $region29: #{down_forward.1} parent=11 // pred_check
        %p350 = pneg %p150
      $region30: #{down_forward.1} parent=11 // pred_check_branch
        %352 = sbr.rel (%p350) target = $region32
      $region31: #{down_forward.1} parent=11 // pred_region
        _
      $region32: #{down_forward.1} parent=11 // pred_fallthru
        _
      // Predicated region
      $region33: #{down_forward.1} parent=11 // pred_check
        %p353 = pneg %p171
      $region34: #{down_forward.1} parent=11 // pred_check_branch
        %355 = sbr.rel (%p353) target = $region36
      $region35: #{down_forward.1} parent=11 // pred_region
        _
      $region36: #{down_forward.1} parent=11 // pred_fallthru
        _
      // Predicated region
      $region37: #{down_forward.1} parent=11 // pred_check
        %p356 = pneg %p192
      $region38: #{down_forward.1} parent=11 // pred_check_branch
        %358 = sbr.rel (%p356) target = $region40
      $region39: #{down_forward.1} parent=11 // pred_region
        _
      $region40: #{down_forward.1} parent=11 // pred_fallthru
        _
      // Predicated region
      $region41: #{down_forward.1} parent=11 // pred_check
        %p359 = pneg %p213
      $region42: #{down_forward.1} parent=11 // pred_check_branch
        %361 = sbr.rel (%p359) target = $region44
      $region43: #{down_forward.1} parent=11 // pred_region
        _
      $region44: #{down_forward.1} parent=11 // pred_fallthru
        _
      // Predicated region
      $region45: #{down_forward.1} parent=11 // pred_check
        %p362 = pneg %p234
      $region46: #{down_forward.1} parent=11 // pred_check_branch
        %364 = sbr.rel (%p362) target = $region48
      $region47: #{down_forward.1} parent=11 // pred_region
        _
      $region48: #{down_forward.1} parent=11 // pred_fallthru
        _
      // Predicated region
      $region49: #{down_forward.1} parent=11 // pred_check
        %p365 = pneg %p255
      $region50: #{down_forward.1} parent=11 // pred_check_branch
        %367 = sbr.rel (%p365) target = $region52
      $region51: #{down_forward.1} parent=11 // pred_region
        _
      $region52: #{down_forward.1} parent=11 // pred_fallthru
        _
      // Predicated region
      $region53: #{down_forward.1} parent=11 // pred_check
        %p368 = pneg %p276
      $region54: #{down_forward.1} parent=11 // pred_check_branch
        %370 = sbr.rel (%p368) target = $region56
      $region55: #{down_forward.1} parent=11 // pred_region
        _
      $region56: #{down_forward.1} parent=11 // pred_fallthru
        _
      // Predicated region
      $region57: #{down_forward.1} parent=11 // pred_check
        %p371 = pneg %p297
      $region58: #{down_forward.1} parent=11 // pred_check_branch
        %373 = sbr.rel (%p371) target = $region60
      $region59: #{down_forward.1} parent=11 // pred_region
        _
      $region60: #{down_forward.1} parent=11 // pred_fallthru
        _
    $region12: #{down_forward.1} parent=5 // pred_fallthru
      _
    %p374 = scmp.lt.s32.totalorder %s19, 2
    // Predicated region
    $region61: #{down_forward.1} parent=5 // pred_check
      %p375 = pneg %p374
    $region62: #{down_forward.1} parent=5 // pred_check_branch
      %377 = sbr.rel (%p375) target = $region64
    $region63: #{down_forward.1} parent=5 // pred_region
      // Predicated region
      $region65: #{down_forward.1} parent=63 // pred_check
        %p378 = pneg %p39
      $region66: #{down_forward.1} parent=63 // pred_check_branch
        %380 = sbr.rel (%p378) target = $region68
      $region67: #{down_forward.1} parent=63 // pred_region
        %p381 = scmp.lt.s32.totalorder %s19, 1
        %s382 = scalar_select %p381, %s19, 1
        %s383 = smul.addr %s382, 16
        %s384 = smul.addr %s383, 8
        %s385 = scalar_lea.vmem %s0, %s384
      $region68: #{down_forward.1} parent=63 // pred_fallthru
        _
    $region64: #{down_forward.1} parent=5 // pred_fallthru
      _
    %p386 = scmp.le.s32.totalorder 1, %s19
    %p387 = scmp.lt.s32.totalorder %s19, 3
    %p388 = pnand %p386, %p387
    %p389 = pneg %p388
    // Predicated region
    $region69: #{down_forward.1} parent=5 // pred_check
      _
    $region70: #{down_forward.1} parent=5 // pred_check_branch
      %391 = sbr.rel (%p388) target = $region72
    $region71: #{down_forward.1} parent=5 // pred_region
      %s392 = ssub.s32 %s19, 1
      %p393 = scmp.lt.s32.totalorder %s24, 1
      %s394 = scalar_select %p393, %s24, 1
      %s395 = smul.addr %s394, 16
      %s396 = smul.addr %s395, 8
      %s397 = scalar_lea.vmem %s0, %s396
      %p398 = pneg %p45
      %p399 = pneg %p42
      %p400 = pneg %p66
      %p401 = pneg %p63
      %p402 = pneg %p87
      %p403 = pneg %p84
      %p404 = pneg %p108
      %p405 = pneg %p105
      %p406 = pneg %p129
      %p407 = pneg %p126
      %p408 = pneg %p150
      %p409 = pneg %p147
      %p410 = pneg %p171
      %p411 = pneg %p168
      %p412 = pneg %p192
      %p413 = pneg %p189
      %p414 = pneg %p213
      %p415 = pneg %p210
      %p416 = pneg %p234
      %p417 = pneg %p231
      %p418 = pneg %p255
      %p419 = pneg %p252
      %p420 = pneg %p276
      %p421 = pneg %p273
      %p422 = pneg %p297
      %p423 = pneg %p294
      %p424 = pneg %p323
      %p425 = pneg %p320
      %p426 = scmp.lt.s32.totalorder %s24, 1
      %s427 = scalar_select %p426, %s24, 1
      %s428 = smul.addr %s427, 4
      %s429 = scalar_lea.vmem %s13, %s428
      %p430 = scmp.lt.s32.totalorder %s24, 1
      %s431 = scalar_select %p430, %s24, 1
      %s432 = smul.addr %s431, 16
      %s433 = smul.addr %s432, 8
      %s434 = scalar_lea.vmem %s0, %s433
      %p435 = scmp.lt.s32.totalorder %s24, 1
      %s436 = scalar_select %p435, %s24, 1
      %s437 = smul.addr %s436, 4
      %s438 = scalar_lea.vmem %s13, %s437
      %v440 = vld [vmem:[%s434] sm:$0xff]
      %v441 = vld [vmem:[%s434 + $0x8] sm:$0xff]
      %v442 = vld [vmem:[%s434 + $0x10] sm:$0xff]
      %v443 = vld [vmem:[%s434 + $0x18] sm:$0xff]
      %v444 = vld [vmem:[%s434 + $0x20] sm:$0xff]
      %v445 = vld [vmem:[%s434 + $0x28] sm:$0xff]
      %v446 = vld [vmem:[%s434 + $0x30] sm:$0xff]
      %v447 = vld [vmem:[%s434 + $0x38] sm:$0xff]
      %v448 = vld [vmem:[%s434 + $0x40] sm:$0xff]
      %v449 = vld [vmem:[%s434 + $0x48] sm:$0xff]
      %v450 = vld [vmem:[%s434 + $0x50] sm:$0xff]
      %v451 = vld [vmem:[%s434 + $0x58] sm:$0xff]
      %v452 = vld [vmem:[%s434 + $0x60] sm:$0xff]
      %v453 = vld [vmem:[%s434 + $0x68] sm:$0xff]
      %v454 = vld [vmem:[%s434 + $0x70] sm:$0xff]
      %v455 = vld [vmem:[%s434 + $0x78] sm:$0xff]
      %v456 = vmax.f32 %v440, %v441
      %v457 = vmax.f32 %v442, %v443
      %v458 = vmax.f32 %v444, %v445
      %v459 = vmax.f32 %v446, %v447
      %v460 = vmax.f32 %v448, %v449
      %v461 = vmax.f32 %v450, %v451
      %v462 = vmax.f32 %v452, %v453
      %v463 = vmax.f32 %v454, %v455
      %472 = vrot.lane.b32.xlu0 %v456, 124
      %v473 = vpop.permute.xlu0 %472
      %474 = vrot.lane.b32.xlu0 %v457, 124
      %v475 = vpop.permute.xlu0 %474
      %476 = vrot.lane.b32.xlu0 %v458, 124
      %v477 = vpop.permute.xlu0 %476
      %478 = vrot.lane.b32.xlu0 %v459, 124
      %v479 = vpop.permute.xlu0 %478
      %480 = vrot.lane.b32.xlu0 %v460, 124
      %v481 = vpop.permute.xlu0 %480
      %482 = vrot.lane.b32.xlu0 %v461, 124
      %v483 = vpop.permute.xlu0 %482
      %484 = vrot.lane.b32.xlu0 %v462, 124
      %v485 = vpop.permute.xlu0 %484
      %486 = vrot.lane.b32.xlu0 %v463, 124
      %v487 = vpop.permute.xlu0 %486
      %v496 = vmax.f32 %v456, %v473
      %v497 = vmax.f32 %v457, %v475
      %v498 = vmax.f32 %v458, %v477
      %v499 = vmax.f32 %v459, %v479
      %v500 = vmax.f32 %v460, %v481
      %v501 = vmax.f32 %v461, %v483
      %v502 = vmax.f32 %v462, %v485
      %v503 = vmax.f32 %v463, %v487
      %v504 = vpack.c.bf16 %v496, %v496
      %v505 = vpack.c.bf16 %v497, %v497
      %v506 = vpack.c.bf16 %v498, %v498
      %v507 = vpack.c.bf16 %v499, %v499
      %v508 = vpack.c.bf16 %v500, %v500
      %v509 = vpack.c.bf16 %v501, %v501
      %v510 = vpack.c.bf16 %v502, %v502
      %v511 = vpack.c.bf16 %v503, %v503
      %v513 = vshrl.u32 %v504, 16
      %v515 = vrot.slane %v513, 6
      %v516 = vshll.u32 %v504, 16
      %v518 = vrot.slane %v516, 7
      %v519 = vor.u32 %v515, %v518
      %v521 = vshrl.u32 %v505, 16
      %v523 = vrot.slane %v521, 6
      %v524 = vshll.u32 %v505, 16
      %v526 = vrot.slane %v524, 7
      %v527 = vor.u32 %v523, %v526
      %v529 = vshrl.u32 %v506, 16
      %v531 = vrot.slane %v529, 6
      %v532 = vshll.u32 %v506, 16
      %v534 = vrot.slane %v532, 7
      %v535 = vor.u32 %v531, %v534
      %v537 = vshrl.u32 %v507, 16
      %v539 = vrot.slane %v537, 6
      %v540 = vshll.u32 %v507, 16
      %v542 = vrot.slane %v540, 7
      %v543 = vor.u32 %v539, %v542
      %v545 = vshrl.u32 %v508, 16
      %v547 = vrot.slane %v545, 6
      %v548 = vshll.u32 %v508, 16
      %v550 = vrot.slane %v548, 7
      %v551 = vor.u32 %v547, %v550
      %v553 = vshrl.u32 %v509, 16
      %v555 = vrot.slane %v553, 6
      %v556 = vshll.u32 %v509, 16
      %v558 = vrot.slane %v556, 7
      %v559 = vor.u32 %v555, %v558
      %v561 = vshrl.u32 %v510, 16
      %v563 = vrot.slane %v561, 6
      %v564 = vshll.u32 %v510, 16
      %v566 = vrot.slane %v564, 7
      %v567 = vor.u32 %v563, %v566
      %v569 = vshrl.u32 %v511, 16
      %v571 = vrot.slane %v569, 6
      %v572 = vshll.u32 %v511, 16
      %v574 = vrot.slane %v572, 7
      %v575 = vor.u32 %v571, %v574
      %vm584 = vcmask 1041408
      %vm585 = vsmask.f32 1280
      %vm586 = vmand %vm584, %vm585
      %v587 = vsel %vm586, 0, %v519
      %v588 = vsel %vm586, 0, %v527
      %v589 = vsel %vm586, 0, %v535
      %v590 = vsel %vm586, 0, %v543
      %v591 = vsel %vm586, 0, %v551
      %v592 = vsel %vm586, 0, %v559
      %v593 = vsel %vm586, 0, %v567
      %v594 = vsel %vm586, 0, %v575
      %vm595 = vcmask 1045504
      %vm596 = vsmask.f32 5376
      %vm597 = vmand %vm595, %vm596
      %v598 = vsel %vm597, %v587, 0
      %v599 = vsel %vm597, %v588, 0
      %v600 = vsel %vm597, %v589, 0
      %v601 = vsel %vm597, %v590, 0
      %v602 = vsel %vm597, %v591, 0
      %v603 = vsel %vm597, %v592, 0
      %v604 = vsel %vm597, %v593, 0
      %v605 = vsel %vm597, %v594, 0
      %v607 = vshrl.u32 0, 16
      %v609 = vshll.u32 0, 16
      %v611 = vrot.slane %v609, 1
      %v612 = vor.u32 %v607, %v611
      %v614 = vshrl.u32 %v598, 16
      %v616 = vshll.u32 %v598, 16
      %v618 = vrot.slane %v616, 1
      %v619 = vor.u32 %v614, %v618
      %v621 = vshrl.u32 %v599, 16
      %v623 = vshll.u32 %v599, 16
      %v625 = vrot.slane %v623, 1
      %v626 = vor.u32 %v621, %v625
      %v628 = vshrl.u32 %v600, 16
      %v630 = vshll.u32 %v600, 16
      %v632 = vrot.slane %v630, 1
      %v633 = vor.u32 %v628, %v632
      %v635 = vshrl.u32 %v601, 16
      %v637 = vshll.u32 %v601, 16
      %v639 = vrot.slane %v637, 1
      %v640 = vor.u32 %v635, %v639
      %v642 = vshrl.u32 %v602, 16
      %v644 = vshll.u32 %v602, 16
      %v646 = vrot.slane %v644, 1
      %v647 = vor.u32 %v642, %v646
      %v649 = vshrl.u32 %v603, 16
      %v651 = vshll.u32 %v603, 16
      %v653 = vrot.slane %v651, 1
      %v654 = vor.u32 %v649, %v653
      %v656 = vshrl.u32 %v604, 16
      %v658 = vshll.u32 %v604, 16
      %v660 = vrot.slane %v658, 1
      %v661 = vor.u32 %v656, %v660
      %v663 = vshrl.u32 %v605, 16
      %v665 = vshll.u32 %v605, 16
      %v667 = vrot.slane %v665, 1
      %v668 = vor.u32 %v663, %v667
      %669 = vrot.lane.b32.xlu0 %v612, 4
      %v670 = vpop.permute.xlu0 %669
      %671 = vrot.lane.b32.xlu0 %v619, 4
      %v672 = vpop.permute.xlu0 %671
      %673 = vrot.lane.b32.xlu0 %v626, 4
      %v674 = vpop.permute.xlu0 %673
      %675 = vrot.lane.b32.xlu0 %v633, 4
      %v676 = vpop.permute.xlu0 %675
      %677 = vrot.lane.b32.xlu0 %v640, 4
      %v678 = vpop.permute.xlu0 %677
      %679 = vrot.lane.b32.xlu0 %v647, 4
      %v680 = vpop.permute.xlu0 %679
      %681 = vrot.lane.b32.xlu0 %v654, 4
      %v682 = vpop.permute.xlu0 %681
      %683 = vrot.lane.b32.xlu0 %v661, 4
      %v684 = vpop.permute.xlu0 %683
      %685 = vrot.lane.b32.xlu0 %v668, 4
      %v686 = vpop.permute.xlu0 %685
      %v696 = vrot.slane 0, 1
      %v697 = vrot.slane %v598, 1
      %v698 = vrot.slane %v599, 1
      %v699 = vrot.slane %v600, 1
      %v700 = vrot.slane %v601, 1
      %v701 = vrot.slane %v602, 1
      %v702 = vrot.slane %v603, 1
      %v703 = vrot.slane %v604, 1
      %v704 = vrot.slane %v605, 1
      %705 = vrot.lane.b32.xlu0 %v696, 8
      %v706 = vpop.permute.xlu0 %705
      %707 = vrot.lane.b32.xlu0 %v697, 8
      %v708 = vpop.permute.xlu0 %707
      %709 = vrot.lane.b32.xlu0 %v698, 8
      %v710 = vpop.permute.xlu0 %709
      %711 = vrot.lane.b32.xlu0 %v699, 8
      %v712 = vpop.permute.xlu0 %711
      %713 = vrot.lane.b32.xlu0 %v700, 8
      %v714 = vpop.permute.xlu0 %713
      %715 = vrot.lane.b32.xlu0 %v701, 8
      %v716 = vpop.permute.xlu0 %715
      %717 = vrot.lane.b32.xlu0 %v702, 8
      %v718 = vpop.permute.xlu0 %717
      %719 = vrot.lane.b32.xlu0 %v703, 8
      %v720 = vpop.permute.xlu0 %719
      %721 = vrot.lane.b32.xlu0 %v704, 8
      %v722 = vpop.permute.xlu0 %721
      %v723 = vrot.slane %v607, 1
      %v724 = vrot.slane %v609, 2
      %v725 = vor.u32 %v723, %v724
      %v726 = vrot.slane %v614, 1
      %v727 = vrot.slane %v616, 2
      %v728 = vor.u32 %v726, %v727
      %v729 = vrot.slane %v621, 1
      %v730 = vrot.slane %v623, 2
      %v731 = vor.u32 %v729, %v730
      %v732 = vrot.slane %v628, 1
      %v733 = vrot.slane %v630, 2
      %v734 = vor.u32 %v732, %v733
      %v735 = vrot.slane %v635, 1
      %v736 = vrot.slane %v637, 2
      %v737 = vor.u32 %v735, %v736
      %v738 = vrot.slane %v642, 1
      %v739 = vrot.slane %v644, 2
      %v740 = vor.u32 %v738, %v739
      %v741 = vrot.slane %v649, 1
      %v742 = vrot.slane %v651, 2
      %v743 = vor.u32 %v741, %v742
      %v744 = vrot.slane %v656, 1
      %v745 = vrot.slane %v658, 2
      %v746 = vor.u32 %v744, %v745
      %v747 = vrot.slane %v663, 1
      %v748 = vrot.slane %v665, 2
      %v749 = vor.u32 %v747, %v748
      %750 = vrot.lane.b32.xlu0 %v725, 12
      %v751 = vpop.permute.xlu0 %750
      %752 = vrot.lane.b32.xlu0 %v728, 12
      %v753 = vpop.permute.xlu0 %752
      %754 = vrot.lane.b32.xlu0 %v731, 12
      %v755 = vpop.permute.xlu0 %754
      %756 = vrot.lane.b32.xlu0 %v734, 12
      %v757 = vpop.permute.xlu0 %756
      %758 = vrot.lane.b32.xlu0 %v737, 12
      %v759 = vpop.permute.xlu0 %758
      %760 = vrot.lane.b32.xlu0 %v740, 12
      %v761 = vpop.permute.xlu0 %760
      %762 = vrot.lane.b32.xlu0 %v743, 12
      %v763 = vpop.permute.xlu0 %762
      %764 = vrot.lane.b32.xlu0 %v746, 12
      %v765 = vpop.permute.xlu0 %764
      %766 = vrot.lane.b32.xlu0 %v749, 12
      %v767 = vpop.permute.xlu0 %766
      %v768 = vrot.slane 0, 2
      %v769 = vrot.slane %v598, 2
      %v770 = vrot.slane %v599, 2
      %v771 = vrot.slane %v600, 2
      %v772 = vrot.slane %v601, 2
      %v773 = vrot.slane %v602, 2
      %v774 = vrot.slane %v603, 2
      %v775 = vrot.slane %v604, 2
      %v776 = vrot.slane %v605, 2
      %777 = vrot.lane.b32.xlu0 %v768, 16
      %v778 = vpop.permute.xlu0 %777
      %779 = vrot.lane.b32.xlu0 %v769, 16
      %v780 = vpop.permute.xlu0 %779
      %781 = vrot.lane.b32.xlu0 %v770, 16
      %v782 = vpop.permute.xlu0 %781
      %783 = vrot.lane.b32.xlu0 %v771, 16
      %v784 = vpop.permute.xlu0 %783
      %785 = vrot.lane.b32.xlu0 %v772, 16
      %v786 = vpop.permute.xlu0 %785
      %787 = vrot.lane.b32.xlu0 %v773, 16
      %v788 = vpop.permute.xlu0 %787
      %789 = vrot.lane.b32.xlu0 %v774, 16
      %v790 = vpop.permute.xlu0 %789
      %791 = vrot.lane.b32.xlu0 %v775, 16
      %v792 = vpop.permute.xlu0 %791
      %793 = vrot.lane.b32.xlu0 %v776, 16
      %v794 = vpop.permute.xlu0 %793
      %v795 = vrot.slane %v607, 2
      %v796 = vrot.slane %v609, 3
      %v797 = vor.u32 %v795, %v796
      %v798 = vrot.slane %v614, 2
      %v799 = vrot.slane %v616, 3
      %v800 = vor.u32 %v798, %v799
      %v801 = vrot.slane %v621, 2
      %v802 = vrot.slane %v623, 3
      %v803 = vor.u32 %v801, %v802
      %v804 = vrot.slane %v628, 2
      %v805 = vrot.slane %v630, 3
      %v806 = vor.u32 %v804, %v805
      %v807 = vrot.slane %v635, 2
      %v808 = vrot.slane %v637, 3
      %v809 = vor.u32 %v807, %v808
      %v810 = vrot.slane %v642, 2
      %v811 = vrot.slane %v644, 3
      %v812 = vor.u32 %v810, %v811
      %v813 = vrot.slane %v649, 2
      %v814 = vrot.slane %v651, 3
      %v815 = vor.u32 %v813, %v814
      %v816 = vrot.slane %v656, 2
      %v817 = vrot.slane %v658, 3
      %v818 = vor.u32 %v816, %v817
      %v819 = vrot.slane %v663, 2
      %v820 = vrot.slane %v665, 3
      %v821 = vor.u32 %v819, %v820
      %822 = vrot.lane.b32.xlu0 %v797, 20
      %v823 = vpop.permute.xlu0 %822
      %824 = vrot.lane.b32.xlu0 %v800, 20
      %v825 = vpop.permute.xlu0 %824
      %826 = vrot.lane.b32.xlu0 %v803, 20
      %v827 = vpop.permute.xlu0 %826
      %828 = vrot.lane.b32.xlu0 %v806, 20
      %v829 = vpop.permute.xlu0 %828
      %830 = vrot.lane.b32.xlu0 %v809, 20
      %v831 = vpop.permute.xlu0 %830
      %832 = vrot.lane.b32.xlu0 %v812, 20
      %v833 = vpop.permute.xlu0 %832
      %834 = vrot.lane.b32.xlu0 %v815, 20
      %v835 = vpop.permute.xlu0 %834
      %836 = vrot.lane.b32.xlu0 %v818, 20
      %v837 = vpop.permute.xlu0 %836
      %838 = vrot.lane.b32.xlu0 %v821, 20
      %v839 = vpop.permute.xlu0 %838
      %v840 = vrot.slane 0, 3
      %v841 = vrot.slane %v598, 3
      %v842 = vrot.slane %v599, 3
      %v843 = vrot.slane %v600, 3
      %v844 = vrot.slane %v601, 3
      %v845 = vrot.slane %v602, 3
      %v846 = vrot.slane %v603, 3
      %v847 = vrot.slane %v604, 3
      %v848 = vrot.slane %v605, 3
      %849 = vrot.lane.b32.xlu0 %v840, 24
      %v850 = vpop.permute.xlu0 %849
      %851 = vrot.lane.b32.xlu0 %v841, 24
      %v852 = vpop.permute.xlu0 %851
      %853 = vrot.lane.b32.xlu0 %v842, 24
      %v854 = vpop.permute.xlu0 %853
      %855 = vrot.lane.b32.xlu0 %v843, 24
      %v856 = vpop.permute.xlu0 %855
      %857 = vrot.lane.b32.xlu0 %v844, 24
      %v858 = vpop.permute.xlu0 %857
      %859 = vrot.lane.b32.xlu0 %v845, 24
      %v860 = vpop.permute.xlu0 %859
      %861 = vrot.lane.b32.xlu0 %v846, 24
      %v862 = vpop.permute.xlu0 %861
      %863 = vrot.lane.b32.xlu0 %v847, 24
      %v864 = vpop.permute.xlu0 %863
      %865 = vrot.lane.b32.xlu0 %v848, 24
      %v866 = vpop.permute.xlu0 %865
      %vm867 = vcmask 31744
      %v869 = vsel %vm867, 0, %v670
      %v871 = vsel %vm867, %v598, %v672
      %v873 = vsel %vm867, %v599, %v674
      %v875 = vsel %vm867, %v600, %v676
      %v877 = vsel %vm867, %v601, %v678
      %v879 = vsel %vm867, %v602, %v680
      %v881 = vsel %vm867, %v603, %v682
      %v883 = vsel %vm867, %v604, %v684
      %v885 = vsel %vm867, %v605, %v686
      %vm886 = vcmask 64512
      %v888 = vsel %vm886, %v869, %v706
      %v890 = vsel %vm886, %v871, %v708
      %v892 = vsel %vm886, %v873, %v710
      %v894 = vsel %vm886, %v875, %v712
      %v896 = vsel %vm886, %v877, %v714
      %v898 = vsel %vm886, %v879, %v716
      %v900 = vsel %vm886, %v881, %v718
      %v902 = vsel %vm886, %v883, %v720
      %v904 = vsel %vm886, %v885, %v722
      %vm905 = vcmask 97280
      %v907 = vsel %vm905, %v888, %v751
      %v909 = vsel %vm905, %v890, %v753
      %v911 = vsel %vm905, %v892, %v755
      %v913 = vsel %vm905, %v894, %v757
      %v915 = vsel %vm905, %v896, %v759
      %v917 = vsel %vm905, %v898, %v761
      %v919 = vsel %vm905, %v900, %v763
      %v921 = vsel %vm905, %v902, %v765
      %v923 = vsel %vm905, %v904, %v767
      %vm924 = vcmask 130048
      %v926 = vsel %vm924, %v907, %v778
      %v928 = vsel %vm924, %v909, %v780
      %v930 = vsel %vm924, %v911, %v782
      %v932 = vsel %vm924, %v913, %v784
      %v934 = vsel %vm924, %v915, %v786
      %v936 = vsel %vm924, %v917, %v788
      %v938 = vsel %vm924, %v919, %v790
      %v940 = vsel %vm924, %v921, %v792
      %v942 = vsel %vm924, %v923, %v794
      %vm943 = vcmask 162816
      %v945 = vsel %vm943, %v926, %v823
      %v947 = vsel %vm943, %v928, %v825
      %v949 = vsel %vm943, %v930, %v827
      %v951 = vsel %vm943, %v932, %v829
      %v953 = vsel %vm943, %v934, %v831
      %v955 = vsel %vm943, %v936, %v833
      %v957 = vsel %vm943, %v938, %v835
      %v959 = vsel %vm943, %v940, %v837
      %v961 = vsel %vm943, %v942, %v839
      %vm962 = vcmask 195584
      %v964 = vsel %vm962, %v945, %v850
      %v966 = vsel %vm962, %v947, %v852
      %v968 = vsel %vm962, %v949, %v854
      %v970 = vsel %vm962, %v951, %v856
      %v972 = vsel %vm962, %v953, %v858
      %v974 = vsel %vm962, %v955, %v860
      %v976 = vsel %vm962, %v957, %v862
      %v978 = vsel %vm962, %v959, %v864
      %v980 = vsel %vm962, %v961, %v866
      %v981 = vld [vmem:[%s1] sm:$0xf]
      %v982 = vld [vmem:[%s1 + $0x4] sm:$0xf]
      %v983 = vld [vmem:[%s1 + $0x8] sm:$0xf]
      %v984 = vld [vmem:[%s1 + $0xc] sm:$0x3]
      %s985 = scalar_lea.vmem %s1, 16
      %v986 = vld [vmem:[%s985] sm:$0xf]
      %v987 = vld [vmem:[%s985 + $0x4] sm:$0xf]
      %v988 = vld [vmem:[%s985 + $0x8] sm:$0xf]
      %v989 = vld [vmem:[%s985 + $0xc] sm:$0x3]
      %v997 = vunpack.c.l.b16 %v964
      %v998 = vunpack.c.l.b16 %v966
      %v999 = vunpack.c.l.b16 %v968
      %v1000 = vunpack.c.l.b16 %v970
      %v1001 = vunpack.c.l.b16 %v972
      %v1002 = vunpack.c.l.b16 %v974
      %v1003 = vunpack.c.l.b16 %v976
      %v1004 = vpack.c.b16 %v997, %v997
      %v1005 = vpack.c.b16 %v999, %v998
      %v1006 = vpack.c.b16 %v1001, %v1000
      %v1007 = vpack.c.b16 %v1003, %v1002
      %v1012 = vunpack.c.l.b16 %v986
      %v1013 = vunpack.c.l.b16 %v987
      %v1014 = vunpack.c.l.b16 %v988
      %v1015 = vunpack.c.l.b16 %v989
      %v1016 = vpack.c.b16 %v1013, %v1012
      %v1017 = vpack.c.b16 %v1015, %v1014
      %vm1019 = vcmask 228352
      %v1021 = vsel %vm1019, %v1004, 0
      %v1024 = vsel %vm1019, %v1005, 0
      %v1027 = vsel %vm1019, %v1006, 0
      %v1030 = vsel %vm1019, %v1007, 0
      %vm1032 = vcmask 1045504
      %v1034 = vsel %vm1032, %v1017, 0
      %1036 = vmatprep.subr.bf16.mxu0 0
      %1037 = vmatpush1.bf16.msra.mxu0 0
      %1038 = vmatprep.subr.bf16.mxu0 0
      %1039 = vmatpush1.bf16.msra.mxu0 0
      %1040 = vmatprep.subr.bf16.mxu0 0
      %1041 = vmatpush1.bf16.msra.mxu0 0
      %1042 = vmatprep.subr.bf16.mxu0 0
      %1043 = vmatpush1.bf16.msra.mxu0 0
      %1044 = vmatprep.subr.bf16.mxu0 0
      %1045 = vmatpush1.bf16.msra.mxu0 0
      %1046 = vmatprep.subr.bf16.mxu0 0
      %1047 = vmatpush1.bf16.msra.mxu0 0
      %1048 = vmatprep.subr.bf16.mxu0 0
      %1049 = vmatpush1.bf16.msra.mxu0 %v1034
      %1050 = vmatprep.subr.bf16.mxu0 0
      %1051 = vmatpush1.bf16.msra.mxu0 %v1016
      %1052 = vmatprep.subr.bf16.mxu0 0
      %1053 = vmatpush2.bf16.msra.mxu0 0
      %1054 = vmatprep.subr.bf16.mxu0 0
      %1055 = vmatpush2.bf16.msra.mxu0 0
      %1056 = vmatprep.subr.bf16.mxu0 0
      %1057 = vmatpush2.bf16.msra.mxu0 0
      %1058 = vmatprep.subr.bf16.mxu0 0
      %1059 = vmatpush2.bf16.msra.mxu0 0
      %1060 = vmatprep.subr.bf16.mxu0 0
      %1061 = vmatpush2.bf16.msra.mxu0 0
      %1062 = vmatprep.subr.bf16.mxu0 0
      %1063 = vmatpush2.bf16.msra.mxu0 0
      %1064 = vmatprep.subr.bf16.mxu0 0
      %1065 = vmatpush2.bf16.msra.mxu0 0
      %1066 = vmatprep.subr.bf16.mxu0 0
      %1067 = vmatpush2.bf16.msra.mxu0 0
      %1068 = vmatprep.mubr.bf16.mxu0 0
      %1069 = vmatmul.mubr.bf16.gmra.mxu0 %v1021
      %v1070 = vpop.f32.mrf.mxu0
      %v1071 = vadd.f32 0.0, %v1070
      %v1072 = vpop.f32.mrf.mxu0
      %v1073 = vpop.f32.mrf.mxu0
      %v1074 = vadd.f32 0.0, %v1073
      %v1075 = vpop.f32.mrf.mxu0
      %1076 = vmatprep.mubr.bf16.mxu0 0
      %1077 = vmatmul.mubr.bf16.gmra.mxu0 %v1024
      %v1078 = vpop.f32.mrf.mxu0
      %v1079 = vadd.f32 0.0, %v1078
      %v1080 = vpop.f32.mrf.mxu0
      %v1081 = vpop.f32.mrf.mxu0
      %v1082 = vadd.f32 0.0, %v1081
      %v1083 = vpop.f32.mrf.mxu0
      %1084 = vmatprep.mubr.bf16.mxu0 0
      %1085 = vmatmul.mubr.bf16.gmra.mxu0 %v1027
      %v1086 = vpop.f32.mrf.mxu0
      %v1087 = vadd.f32 0.0, %v1086
      %v1088 = vpop.f32.mrf.mxu0
      %v1089 = vpop.f32.mrf.mxu0
      %v1090 = vadd.f32 0.0, %v1089
      %v1091 = vpop.f32.mrf.mxu0
      %1092 = vmatprep.mubr.bf16.mxu0 0
      %1093 = vmatmul.mubr.bf16.gmra.mxu0 %v1030
      %v1094 = vpop.f32.mrf.mxu0
      %v1095 = vadd.f32 0.0, %v1094
      %v1096 = vpop.f32.mrf.mxu0
      %v1097 = vpop.f32.mrf.mxu0
      %v1098 = vadd.f32 0.0, %v1097
      %v1099 = vpop.f32.mrf.mxu0
      %1100 = vdwg.mxu0
      %v1101 = vpack.c.b16 %v998, %v997
      %v1102 = vpack.c.b16 %v1000, %v999
      %v1103 = vpack.c.b16 %v1002, %v1001
      %v1108 = vunpack.c.l.b16 %v981
      %v1109 = vunpack.c.l.b16 %v982
      %v1110 = vunpack.c.l.b16 %v983
      %v1111 = vunpack.c.l.b16 %v984
      %v1112 = vpack.c.b16 %v1109, %v1108
      %v1113 = vpack.c.b16 %v1111, %v1110
      %v1116 = vsel %vm1019, %v1101, 0
      %v1119 = vsel %vm1019, %v1102, 0
      %v1122 = vsel %vm1019, %v1103, 0
      %v1125 = vsel %vm1032, %v1113, 0
      %1127 = vmatprep.subr.bf16.mxu0 0
      %1128 = vmatpush1.bf16.msra.mxu0 0
      %1129 = vmatprep.subr.bf16.mxu0 0
      %1130 = vmatpush1.bf16.msra.mxu0 0
      %1131 = vmatprep.subr.bf16.mxu0 0
      %1132 = vmatpush1.bf16.msra.mxu0 0
      %1133 = vmatprep.subr.bf16.mxu0 0
      %1134 = vmatpush1.bf16.msra.mxu0 0
      %1135 = vmatprep.subr.bf16.mxu0 0
      %1136 = vmatpush1.bf16.msra.mxu0 0
      %1137 = vmatprep.subr.bf16.mxu0 0
      %1138 = vmatpush1.bf16.msra.mxu0 0
      %1139 = vmatprep.subr.bf16.mxu0 0
      %1140 = vmatpush1.bf16.msra.mxu0 %v1125
      %1141 = vmatprep.subr.bf16.mxu0 0
      %1142 = vmatpush1.bf16.msra.mxu0 %v1112
      %1143 = vmatprep.subr.bf16.mxu0 0
      %1144 = vmatpush2.bf16.msra.mxu0 0
      %1145 = vmatprep.subr.bf16.mxu0 0
      %1146 = vmatpush2.bf16.msra.mxu0 0
      %1147 = vmatprep.subr.bf16.mxu0 0
      %1148 = vmatpush2.bf16.msra.mxu0 0
      %1149 = vmatprep.subr.bf16.mxu0 0
      %1150 = vmatpush2.bf16.msra.mxu0 0
      %1151 = vmatprep.subr.bf16.mxu0 0
      %1152 = vmatpush2.bf16.msra.mxu0 0
      %1153 = vmatprep.subr.bf16.mxu0 0
      %1154 = vmatpush2.bf16.msra.mxu0 0
      %1155 = vmatprep.subr.bf16.mxu0 0
      %1156 = vmatpush2.bf16.msra.mxu0 0
      %1157 = vmatprep.subr.bf16.mxu0 0
      %1158 = vmatpush2.bf16.msra.mxu0 0
      %1159 = vmatprep.mubr.bf16.mxu0 0
      %1160 = vmatmul.mubr.bf16.gmra.mxu0 %v1021
      %v1161 = vpop.f32.mrf.mxu0
      %v1162 = vadd.f32 %v1071, %v1161
      %v1163 = vpop.f32.mrf.mxu0
      %v1164 = vpop.f32.mrf.mxu0
      %v1165 = vadd.f32 %v1074, %v1164
      %v1166 = vpop.f32.mrf.mxu0
      %1167 = vmatprep.mubr.bf16.mxu0 0
      %1168 = vmatmul.mubr.bf16.gmra.mxu0 %v1116
      %v1169 = vpop.f32.mrf.mxu0
      %v1170 = vadd.f32 %v1079, %v1169
      %v1171 = vpop.f32.mrf.mxu0
      %v1172 = vpop.f32.mrf.mxu0
      %v1173 = vadd.f32 %v1082, %v1172
      %v1174 = vpop.f32.mrf.mxu0
      %1175 = vmatprep.mubr.bf16.mxu0 0
      %1176 = vmatmul.mubr.bf16.gmra.mxu0 %v1119
      %v1177 = vpop.f32.mrf.mxu0
      %v1178 = vadd.f32 %v1087, %v1177
      %v1179 = vpop.f32.mrf.mxu0
      %v1180 = vpop.f32.mrf.mxu0
      %v1181 = vadd.f32 %v1090, %v1180
      %v1182 = vpop.f32.mrf.mxu0
      %1183 = vmatprep.mubr.bf16.mxu0 0
      %1184 = vmatmul.mubr.bf16.gmra.mxu0 %v1122
      %v1185 = vpop.f32.mrf.mxu0
      %v1186 = vadd.f32 %v1095, %v1185
      %v1187 = vpop.f32.mrf.mxu0
      %v1188 = vpop.f32.mrf.mxu0
      %v1189 = vadd.f32 %v1098, %v1188
      %v1190 = vpop.f32.mrf.mxu0
      %1191 = vdwg.mxu0
      %s1192 = scalar_lea.vmem %s1, 32
      %v1193 = vld [vmem:[%s1192] sm:$0xf]
      %v1194 = vld [vmem:[%s1192 + $0x4] sm:$0xf]
      %v1195 = vld [vmem:[%s1192 + $0x8] sm:$0xf]
      %v1196 = vld [vmem:[%s1192 + $0xc] sm:$0x3]
      %v1198 = vunpack.c.l.b16 %v978
      %v1199 = vpack.c.b16 %v1198, %v1003
      %v1204 = vunpack.c.l.b16 %v1193
      %v1205 = vunpack.c.l.b16 %v1194
      %v1206 = vunpack.c.l.b16 %v1195
      %v1207 = vunpack.c.l.b16 %v1196
      %v1208 = vpack.c.b16 %v1205, %v1204
      %v1209 = vpack.c.b16 %v1207, %v1206
      %v1212 = vsel %vm1019, %v1199, 0
      %v1215 = vsel %vm1032, %v1209, 0
      %1217 = vmatprep.subr.bf16.mxu0 0
      %1218 = vmatpush1.bf16.msra.mxu0 0
      %1219 = vmatprep.subr.bf16.mxu0 0
      %1220 = vmatpush1.bf16.msra.mxu0 0
      %1221 = vmatprep.subr.bf16.mxu0 0
      %1222 = vmatpush1.bf16.msra.mxu0 0
      %1223 = vmatprep.subr.bf16.mxu0 0
      %1224 = vmatpush1.bf16.msra.mxu0 0
      %1225 = vmatprep.subr.bf16.mxu0 0
      %1226 = vmatpush1.bf16.msra.mxu0 0
      %1227 = vmatprep.subr.bf16.mxu0 0
      %1228 = vmatpush1.bf16.msra.mxu0 0
      %1229 = vmatprep.subr.bf16.mxu0 0
      %1230 = vmatpush1.bf16.msra.mxu0 %v1215
      %1231 = vmatprep.subr.bf16.mxu0 0
      %1232 = vmatpush1.bf16.msra.mxu0 %v1208
      %1233 = vmatprep.subr.bf16.mxu0 0
      %1234 = vmatpush2.bf16.msra.mxu0 0
      %1235 = vmatprep.subr.bf16.mxu0 0
      %1236 = vmatpush2.bf16.msra.mxu0 0
      %1237 = vmatprep.subr.bf16.mxu0 0
      %1238 = vmatpush2.bf16.msra.mxu0 0
      %1239 = vmatprep.subr.bf16.mxu0 0
      %1240 = vmatpush2.bf16.msra.mxu0 0
      %1241 = vmatprep.subr.bf16.mxu0 0
      %1242 = vmatpush2.bf16.msra.mxu0 0
      %1243 = vmatprep.subr.bf16.mxu0 0
      %1244 = vmatpush2.bf16.msra.mxu0 0
      %1245 = vmatprep.subr.bf16.mxu0 0
      %1246 = vmatpush2.bf16.msra.mxu0 0
      %1247 = vmatprep.subr.bf16.mxu0 0
      %1248 = vmatpush2.bf16.msra.mxu0 0
      %1249 = vmatprep.mubr.bf16.mxu0 0
      %1250 = vmatmul.mubr.bf16.gmra.mxu0 %v1116
      %v1251 = vpop.f32.mrf.mxu0
      %v1252 = vadd.f32 0.0, %v1251
      %v1253 = vpop.f32.mrf.mxu0
      %v1254 = vpop.f32.mrf.mxu0
      %v1255 = vadd.f32 0.0, %v1254
      %v1256 = vpop.f32.mrf.mxu0
      %1257 = vmatprep.mubr.bf16.mxu0 0
      %1258 = vmatmul.mubr.bf16.gmra.mxu0 %v1119
      %v1259 = vpop.f32.mrf.mxu0
      %v1260 = vadd.f32 0.0, %v1259
      %v1261 = vpop.f32.mrf.mxu0
      %v1262 = vpop.f32.mrf.mxu0
      %v1263 = vadd.f32 0.0, %v1262
      %v1264 = vpop.f32.mrf.mxu0
      %1265 = vmatprep.mubr.bf16.mxu0 0
      %1266 = vmatmul.mubr.bf16.gmra.mxu0 %v1122
      %v1267 = vpop.f32.mrf.mxu0
      %v1268 = vadd.f32 0.0, %v1267
      %v1269 = vpop.f32.mrf.mxu0
      %v1270 = vpop.f32.mrf.mxu0
      %v1271 = vadd.f32 0.0, %v1270
      %v1272 = vpop.f32.mrf.mxu0
      %1273 = vmatprep.mubr.bf16.mxu0 0
      %1274 = vmatmul.mubr.bf16.gmra.mxu0 %v1212
      %v1275 = vpop.f32.mrf.mxu0
      %v1276 = vadd.f32 0.0, %v1275
      %v1277 = vpop.f32.mrf.mxu0
      %v1278 = vpop.f32.mrf.mxu0
      %v1279 = vadd.f32 0.0, %v1278
      %v1280 = vpop.f32.mrf.mxu0
      %1281 = vdwg.mxu0
      %v1282 = vadd.f32 %v1162, %v1252
      %v1283 = vadd.f32 %v1165, %v1255
      %v1284 = vadd.f32 %v1170, %v1260
      %v1285 = vadd.f32 %v1173, %v1263
      %v1286 = vadd.f32 %v1178, %v1268
      %v1287 = vadd.f32 %v1181, %v1271
      %v1288 = vadd.f32 %v1186, %v1276
      %v1289 = vadd.f32 %v1189, %v1279
      %s1290 = scalar_lea.vmem %s1, 48
      %v1291 = vld [vmem:[%s1290] sm:$0xf]
      %v1292 = vld [vmem:[%s1290 + $0x4] sm:$0xf]
      %v1293 = vld [vmem:[%s1290 + $0x8] sm:$0xf]
      %v1294 = vld [vmem:[%s1290 + $0xc] sm:$0x3]
      %v1296 = vunpack.c.l.b16 %v980
      %v1297 = vpack.c.b16 %v1296, %v1198
      %v1302 = vunpack.c.l.b16 %v1291
      %v1303 = vunpack.c.l.b16 %v1292
      %v1304 = vunpack.c.l.b16 %v1293
      %v1305 = vunpack.c.l.b16 %v1294
      %v1306 = vpack.c.b16 %v1303, %v1302
      %v1307 = vpack.c.b16 %v1305, %v1304
      %v1310 = vsel %vm1019, %v1297, 0
      %v1313 = vsel %vm1032, %v1307, 0
      %1315 = vmatprep.subr.bf16.mxu0 0
      %1316 = vmatpush1.bf16.msra.mxu0 0
      %1317 = vmatprep.subr.bf16.mxu0 0
      %1318 = vmatpush1.bf16.msra.mxu0 0
      %1319 = vmatprep.subr.bf16.mxu0 0
      %1320 = vmatpush1.bf16.msra.mxu0 0
      %1321 = vmatprep.subr.bf16.mxu0 0
      %1322 = vmatpush1.bf16.msra.mxu0 0
      %1323 = vmatprep.subr.bf16.mxu0 0
      %1324 = vmatpush1.bf16.msra.mxu0 0
      %1325 = vmatprep.subr.bf16.mxu0 0
      %1326 = vmatpush1.bf16.msra.mxu0 0
      %1327 = vmatprep.subr.bf16.mxu0 0
      %1328 = vmatpush1.bf16.msra.mxu0 %v1313
      %1329 = vmatprep.subr.bf16.mxu0 0
      %1330 = vmatpush1.bf16.msra.mxu0 %v1306
      %1331 = vmatprep.subr.bf16.mxu0 0
      %1332 = vmatpush2.bf16.msra.mxu0 0
      %1333 = vmatprep.subr.bf16.mxu0 0
      %1334 = vmatpush2.bf16.msra.mxu0 0
      %1335 = vmatprep.subr.bf16.mxu0 0
      %1336 = vmatpush2.bf16.msra.mxu0 0
      %1337 = vmatprep.subr.bf16.mxu0 0
      %1338 = vmatpush2.bf16.msra.mxu0 0
      %1339 = vmatprep.subr.bf16.mxu0 0
      %1340 = vmatpush2.bf16.msra.mxu0 0
      %1341 = vmatprep.subr.bf16.mxu0 0
      %1342 = vmatpush2.bf16.msra.mxu0 0
      %1343 = vmatprep.subr.bf16.mxu0 0
      %1344 = vmatpush2.bf16.msra.mxu0 0
      %1345 = vmatprep.subr.bf16.mxu0 0
      %1346 = vmatpush2.bf16.msra.mxu0 0
      %1347 = vmatprep.mubr.bf16.mxu0 0
      %1348 = vmatmul.mubr.bf16.gmra.mxu0 %v1024
      %v1349 = vpop.f32.mrf.mxu0
      %v1350 = vadd.f32 0.0, %v1349
      %v1351 = vpop.f32.mrf.mxu0
      %v1352 = vpop.f32.mrf.mxu0
      %v1353 = vadd.f32 0.0, %v1352
      %v1354 = vpop.f32.mrf.mxu0
      %1355 = vmatprep.mubr.bf16.mxu0 0
      %1356 = vmatmul.mubr.bf16.gmra.mxu0 %v1027
      %v1357 = vpop.f32.mrf.mxu0
      %v1358 = vadd.f32 0.0, %v1357
      %v1359 = vpop.f32.mrf.mxu0
      %v1360 = vpop.f32.mrf.mxu0
      %v1361 = vadd.f32 0.0, %v1360
      %v1362 = vpop.f32.mrf.mxu0
      %1363 = vmatprep.mubr.bf16.mxu0 0
      %1364 = vmatmul.mubr.bf16.gmra.mxu0 %v1030
      %v1365 = vpop.f32.mrf.mxu0
      %v1366 = vadd.f32 0.0, %v1365
      %v1367 = vpop.f32.mrf.mxu0
      %v1368 = vpop.f32.mrf.mxu0
      %v1369 = vadd.f32 0.0, %v1368
      %v1370 = vpop.f32.mrf.mxu0
      %1371 = vmatprep.mubr.bf16.mxu0 0
      %1372 = vmatmul.mubr.bf16.gmra.mxu0 %v1310
      %v1373 = vpop.f32.mrf.mxu0
      %v1374 = vadd.f32 0.0, %v1373
      %v1375 = vpop.f32.mrf.mxu0
      %v1376 = vpop.f32.mrf.mxu0
      %v1377 = vadd.f32 0.0, %v1376
      %v1378 = vpop.f32.mrf.mxu0
      %1379 = vdwg.mxu0
      %v1380 = vadd.f32 %v1282, %v1350
      %v1381 = vadd.f32 %v1283, %v1353
      %v1382 = vadd.f32 %v1284, %v1358
      %v1383 = vadd.f32 %v1285, %v1361
      %v1384 = vadd.f32 %v1286, %v1366
      %v1385 = vadd.f32 %v1287, %v1369
      %v1386 = vadd.f32 %v1288, %v1374
      %v1387 = vadd.f32 %v1289, %v1377
      %s1388 = scalar_lea.vmem %s1, 64
      %v1389 = vld [vmem:[%s1388] sm:$0xf]
      %v1390 = vld [vmem:[%s1388 + $0x4] sm:$0xf]
      %v1391 = vld [vmem:[%s1388 + $0x8] sm:$0xf]
      %v1392 = vld [vmem:[%s1388 + $0xc] sm:$0x3]
      %v1393 = vpack.c.b16 %v997, %v1296
      %v1398 = vunpack.c.l.b16 %v1389
      %v1399 = vunpack.c.l.b16 %v1390
      %v1400 = vunpack.c.l.b16 %v1391
      %v1401 = vunpack.c.l.b16 %v1392
      %v1402 = vpack.c.b16 %v1399, %v1398
      %v1403 = vpack.c.b16 %v1401, %v1400
      %v1406 = vsel %vm1019, %v1393, 0
      %v1409 = vsel %vm1032, %v1403, 0
      %1411 = vmatprep.subr.bf16.mxu0 0
      %1412 = vmatpush1.bf16.msra.mxu0 0
      %1413 = vmatprep.subr.bf16.mxu0 0
      %1414 = vmatpush1.bf16.msra.mxu0 0
      %1415 = vmatprep.subr.bf16.mxu0 0
      %1416 = vmatpush1.bf16.msra.mxu0 0
      %1417 = vmatprep.subr.bf16.mxu0 0
      %1418 = vmatpush1.bf16.msra.mxu0 0
      %1419 = vmatprep.subr.bf16.mxu0 0
      %1420 = vmatpush1.bf16.msra.mxu0 0
      %1421 = vmatprep.subr.bf16.mxu0 0
      %1422 = vmatpush1.bf16.msra.mxu0 0
      %1423 = vmatprep.subr.bf16.mxu0 0
      %1424 = vmatpush1.bf16.msra.mxu0 %v1409
      %1425 = vmatprep.subr.bf16.mxu0 0
      %1426 = vmatpush1.bf16.msra.mxu0 %v1402
      %1427 = vmatprep.subr.bf16.mxu0 0
      %1428 = vmatpush2.bf16.msra.mxu0 0
      %1429 = vmatprep.subr.bf16.mxu0 0
      %1430 = vmatpush2.bf16.msra.mxu0 0
      %1431 = vmatprep.subr.bf16.mxu0 0
      %1432 = vmatpush2.bf16.msra.mxu0 0
      %1433 = vmatprep.subr.bf16.mxu0 0
      %1434 = vmatpush2.bf16.msra.mxu0 0
      %1435 = vmatprep.subr.bf16.mxu0 0
      %1436 = vmatpush2.bf16.msra.mxu0 0
      %1437 = vmatprep.subr.bf16.mxu0 0
      %1438 = vmatpush2.bf16.msra.mxu0 0
      %1439 = vmatprep.subr.bf16.mxu0 0
      %1440 = vmatpush2.bf16.msra.mxu0 0
      %1441 = vmatprep.subr.bf16.mxu0 0
      %1442 = vmatpush2.bf16.msra.mxu0 0
      %1443 = vmatprep.mubr.bf16.mxu0 0
      %1444 = vmatmul.mubr.bf16.gmra.mxu0 %v1119
      %v1445 = vpop.f32.mrf.mxu0
      %v1446 = vadd.f32 0.0, %v1445
      %v1447 = vpop.f32.mrf.mxu0
      %v1448 = vpop.f32.mrf.mxu0
      %v1449 = vadd.f32 0.0, %v1448
      %v1450 = vpop.f32.mrf.mxu0
      %1451 = vmatprep.mubr.bf16.mxu0 0
      %1452 = vmatmul.mubr.bf16.gmra.mxu0 %v1122
      %v1453 = vpop.f32.mrf.mxu0
      %v1454 = vadd.f32 0.0, %v1453
      %v1455 = vpop.f32.mrf.mxu0
      %v1456 = vpop.f32.mrf.mxu0
      %v1457 = vadd.f32 0.0, %v1456
      %v1458 = vpop.f32.mrf.mxu0
      %1459 = vmatprep.mubr.bf16.mxu0 0
      %1460 = vmatmul.mubr.bf16.gmra.mxu0 %v1212
      %v1461 = vpop.f32.mrf.mxu0
      %v1462 = vadd.f32 0.0, %v1461
      %v1463 = vpop.f32.mrf.mxu0
      %v1464 = vpop.f32.mrf.mxu0
      %v1465 = vadd.f32 0.0, %v1464
      %v1466 = vpop.f32.mrf.mxu0
      %1467 = vmatprep.mubr.bf16.mxu0 0
      %1468 = vmatmul.mubr.bf16.gmra.mxu0 %v1406
      %v1469 = vpop.f32.mrf.mxu0
      %v1470 = vadd.f32 0.0, %v1469
      %v1471 = vpop.f32.mrf.mxu0
      %v1472 = vpop.f32.mrf.mxu0
      %v1473 = vadd.f32 0.0, %v1472
      %v1474 = vpop.f32.mrf.mxu0
      %1475 = vdwg.mxu0
      %v1476 = vadd.f32 %v1380, %v1446
      %v1477 = vadd.f32 %v1381, %v1449
      %v1478 = vadd.f32 %v1382, %v1454
      %v1479 = vadd.f32 %v1383, %v1457
      %v1480 = vadd.f32 %v1384, %v1462
      %v1481 = vadd.f32 %v1385, %v1465
      %v1482 = vadd.f32 %v1386, %v1470
      %v1483 = vadd.f32 %v1387, %v1473
      %s1484 = scalar_lea.vmem %s1, 80
      %v1485 = vld [vmem:[%s1484] sm:$0xf]
      %v1486 = vld [vmem:[%s1484 + $0x4] sm:$0xf]
      %v1487 = vld [vmem:[%s1484 + $0x8] sm:$0xf]
      %v1488 = vld [vmem:[%s1484 + $0xc] sm:$0x3]
      %v1493 = vunpack.c.l.b16 %v1485
      %v1494 = vunpack.c.l.b16 %v1486
      %v1495 = vunpack.c.l.b16 %v1487
      %v1496 = vunpack.c.l.b16 %v1488
      %v1497 = vpack.c.b16 %v1494, %v1493
      %v1498 = vpack.c.b16 %v1496, %v1495
      %v1501 = vsel %vm1032, %v1498, 0
      %1503 = vmatprep.subr.bf16.mxu0 0
      %1504 = vmatpush1.bf16.msra.mxu0 0
      %1505 = vmatprep.subr.bf16.mxu0 0
      %1506 = vmatpush1.bf16.msra.mxu0 0
      %1507 = vmatprep.subr.bf16.mxu0 0
      %1508 = vmatpush1.bf16.msra.mxu0 0
      %1509 = vmatprep.subr.bf16.mxu0 0
      %1510 = vmatpush1.bf16.msra.mxu0 0
      %1511 = vmatprep.subr.bf16.mxu0 0
      %1512 = vmatpush1.bf16.msra.mxu0 0
      %1513 = vmatprep.subr.bf16.mxu0 0
      %1514 = vmatpush1.bf16.msra.mxu0 0
      %1515 = vmatprep.subr.bf16.mxu0 0
      %1516 = vmatpush1.bf16.msra.mxu0 %v1501
      %1517 = vmatprep.subr.bf16.mxu0 0
      %1518 = vmatpush1.bf16.msra.mxu0 %v1497
      %1519 = vmatprep.subr.bf16.mxu0 0
      %1520 = vmatpush2.bf16.msra.mxu0 0
      %1521 = vmatprep.subr.bf16.mxu0 0
      %1522 = vmatpush2.bf16.msra.mxu0 0
      %1523 = vmatprep.subr.bf16.mxu0 0
      %1524 = vmatpush2.bf16.msra.mxu0 0
      %1525 = vmatprep.subr.bf16.mxu0 0
      %1526 = vmatpush2.bf16.msra.mxu0 0
      %1527 = vmatprep.subr.bf16.mxu0 0
      %1528 = vmatpush2.bf16.msra.mxu0 0
      %1529 = vmatprep.subr.bf16.mxu0 0
      %1530 = vmatpush2.bf16.msra.mxu0 0
      %1531 = vmatprep.subr.bf16.mxu0 0
      %1532 = vmatpush2.bf16.msra.mxu0 0
      %1533 = vmatprep.subr.bf16.mxu0 0
      %1534 = vmatpush2.bf16.msra.mxu0 0
      %1535 = vmatprep.mubr.bf16.mxu0 0
      %1536 = vmatmul.mubr.bf16.gmra.mxu0 %v1027
      %v1537 = vpop.f32.mrf.mxu0
      %v1538 = vadd.f32 0.0, %v1537
      %v1539 = vpop.f32.mrf.mxu0
      %v1540 = vpop.f32.mrf.mxu0
      %v1541 = vadd.f32 0.0, %v1540
      %v1542 = vpop.f32.mrf.mxu0
      %1543 = vmatprep.mubr.bf16.mxu0 0
      %1544 = vmatmul.mubr.bf16.gmra.mxu0 %v1030
      %v1545 = vpop.f32.mrf.mxu0
      %v1546 = vadd.f32 0.0, %v1545
      %v1547 = vpop.f32.mrf.mxu0
      %v1548 = vpop.f32.mrf.mxu0
      %v1549 = vadd.f32 0.0, %v1548
      %v1550 = vpop.f32.mrf.mxu0
      %1551 = vmatprep.mubr.bf16.mxu0 0
      %1552 = vmatmul.mubr.bf16.gmra.mxu0 %v1310
      %v1553 = vpop.f32.mrf.mxu0
      %v1554 = vadd.f32 0.0, %v1553
      %v1555 = vpop.f32.mrf.mxu0
      %v1556 = vpop.f32.mrf.mxu0
      %v1557 = vadd.f32 0.0, %v1556
      %v1558 = vpop.f32.mrf.mxu0
      %1559 = vmatprep.mubr.bf16.mxu0 0
      %1560 = vmatmul.mubr.bf16.gmra.mxu0 %v1021
      %v1561 = vpop.f32.mrf.mxu0
      %v1562 = vadd.f32 0.0, %v1561
      %v1563 = vpop.f32.mrf.mxu0
      %v1564 = vpop.f32.mrf.mxu0
      %v1565 = vadd.f32 0.0, %v1564
      %v1566 = vpop.f32.mrf.mxu0
      %1567 = vdwg.mxu0
      %v1568 = vadd.f32 %v1476, %v1538
      %v1569 = vadd.f32 %v1477, %v1541
      %v1570 = vadd.f32 %v1478, %v1546
      %v1571 = vadd.f32 %v1479, %v1549
      %v1572 = vadd.f32 %v1480, %v1554
      %v1573 = vadd.f32 %v1481, %v1557
      %v1574 = vadd.f32 %v1482, %v1562
      %v1575 = vadd.f32 %v1483, %v1565
      %s1576 = scalar_lea.vmem %s1, 96
      %v1577 = vld [vmem:[%s1576] sm:$0xf]
      %v1578 = vld [vmem:[%s1576 + $0x4] sm:$0xf]
      %v1579 = vld [vmem:[%s1576 + $0x8] sm:$0xf]
      %v1580 = vld [vmem:[%s1576 + $0xc] sm:$0x3]
      %v1585 = vunpack.c.l.b16 %v1577
      %v1586 = vunpack.c.l.b16 %v1578
      %v1587 = vunpack.c.l.b16 %v1579
      %v1588 = vunpack.c.l.b16 %v1580
      %v1589 = vpack.c.b16 %v1586, %v1585
      %v1590 = vpack.c.b16 %v1588, %v1587
      %v1593 = vsel %vm1032, %v1590, 0
      %1595 = vmatprep.subr.bf16.mxu0 0
      %1596 = vmatpush1.bf16.msra.mxu0 0
      %1597 = vmatprep.subr.bf16.mxu0 0
      %1598 = vmatpush1.bf16.msra.mxu0 0
      %1599 = vmatprep.subr.bf16.mxu0 0
      %1600 = vmatpush1.bf16.msra.mxu0 0
      %1601 = vmatprep.subr.bf16.mxu0 0
      %1602 = vmatpush1.bf16.msra.mxu0 0
      %1603 = vmatprep.subr.bf16.mxu0 0
      %1604 = vmatpush1.bf16.msra.mxu0 0
      %1605 = vmatprep.subr.bf16.mxu0 0
      %1606 = vmatpush1.bf16.msra.mxu0 0
      %1607 = vmatprep.subr.bf16.mxu0 0
      %1608 = vmatpush1.bf16.msra.mxu0 %v1593
      %1609 = vmatprep.subr.bf16.mxu0 0
      %1610 = vmatpush1.bf16.msra.mxu0 %v1589
      %1611 = vmatprep.subr.bf16.mxu0 0
      %1612 = vmatpush2.bf16.msra.mxu0 0
      %1613 = vmatprep.subr.bf16.mxu0 0
      %1614 = vmatpush2.bf16.msra.mxu0 0
      %1615 = vmatprep.subr.bf16.mxu0 0
      %1616 = vmatpush2.bf16.msra.mxu0 0
      %1617 = vmatprep.subr.bf16.mxu0 0
      %1618 = vmatpush2.bf16.msra.mxu0 0
      %1619 = vmatprep.subr.bf16.mxu0 0
      %1620 = vmatpush2.bf16.msra.mxu0 0
      %1621 = vmatprep.subr.bf16.mxu0 0
      %1622 = vmatpush2.bf16.msra.mxu0 0
      %1623 = vmatprep.subr.bf16.mxu0 0
      %1624 = vmatpush2.bf16.msra.mxu0 0
      %1625 = vmatprep.subr.bf16.mxu0 0
      %1626 = vmatpush2.bf16.msra.mxu0 0
      %1627 = vmatprep.mubr.bf16.mxu0 0
      %1628 = vmatmul.mubr.bf16.gmra.mxu0 %v1122
      %v1629 = vpop.f32.mrf.mxu0
      %v1630 = vadd.f32 0.0, %v1629
      %v1631 = vpop.f32.mrf.mxu0
      %v1632 = vpop.f32.mrf.mxu0
      %v1633 = vadd.f32 0.0, %v1632
      %v1634 = vpop.f32.mrf.mxu0
      %1635 = vmatprep.mubr.bf16.mxu0 0
      %1636 = vmatmul.mubr.bf16.gmra.mxu0 %v1212
      %v1637 = vpop.f32.mrf.mxu0
      %v1638 = vadd.f32 0.0, %v1637
      %v1639 = vpop.f32.mrf.mxu0
      %v1640 = vpop.f32.mrf.mxu0
      %v1641 = vadd.f32 0.0, %v1640
      %v1642 = vpop.f32.mrf.mxu0
      %1643 = vmatprep.mubr.bf16.mxu0 0
      %1644 = vmatmul.mubr.bf16.gmra.mxu0 %v1406
      %v1645 = vpop.f32.mrf.mxu0
      %v1646 = vadd.f32 0.0, %v1645
      %v1647 = vpop.f32.mrf.mxu0
      %v1648 = vpop.f32.mrf.mxu0
      %v1649 = vadd.f32 0.0, %v1648
      %v1650 = vpop.f32.mrf.mxu0
      %1651 = vmatprep.mubr.bf16.mxu0 0
      %1652 = vmatmul.mubr.bf16.gmra.mxu0 %v1021
      %v1653 = vpop.f32.mrf.mxu0
      %v1654 = vadd.f32 0.0, %v1653
      %v1655 = vpop.f32.mrf.mxu0
      %v1656 = vpop.f32.mrf.mxu0
      %v1657 = vadd.f32 0.0, %v1656
      %v1658 = vpop.f32.mrf.mxu0
      %1659 = vdwg.mxu0
      %v1660 = vadd.f32 %v1568, %v1630
      %v1661 = vadd.f32 %v1569, %v1633
      %v1662 = vadd.f32 %v1570, %v1638
      %v1663 = vadd.f32 %v1571, %v1641
      %v1664 = vadd.f32 %v1572, %v1646
      %v1665 = vadd.f32 %v1573, %v1649
      %v1666 = vadd.f32 %v1574, %v1654
      %v1667 = vadd.f32 %v1575, %v1657
      %v1668 = vld [vmem:[%s2] sm:$0x1]
      %v1670 = vlaneseq
      %v1671 = vshrl.u32 %v1670, 7
      %v1672 = vsub.s32 0, %v1671
      %v1673 = vrot.slane %v1668, %v1672
      %v1675 = vadd.f32 %v1660, %v1673
      %v1676 = vadd.f32 %v1661, %v1673
      %v1677 = vadd.f32 %v1662, %v1673
      %v1678 = vadd.f32 %v1663, %v1673
      %v1679 = vadd.f32 %v1664, %v1673
      %v1680 = vadd.f32 %v1665, %v1673
      %v1681 = vadd.f32 %v1666, %v1673
      %v1682 = vadd.f32 %v1667, %v1673
      %v1683 = vmax.f32 %v1675, 0.0
      %v1684 = vmax.f32 %v1676, 0.0
      %v1685 = vmax.f32 %v1677, 0.0
      %v1686 = vmax.f32 %v1678, 0.0
      %v1687 = vmax.f32 %v1679, 0.0
      %v1688 = vmax.f32 %v1680, 0.0
      %v1689 = vmax.f32 %v1681, 0.0
      %v1690 = vmax.f32 %v1682, 0.0
      %vm1691 = vcmask 261120
      %v1692 = vsel %vm1691, %v1683, 0.0
      %v1693 = vsel %vm1691, %v1684, 0.0
      %v1694 = vadd.f32 %v1692, %v1693
      %v1695 = vsel %vm1691, %v1685, 0.0
      %v1696 = vadd.f32 %v1694, %v1695
      %v1697 = vsel %vm1691, %v1686, 0.0
      %v1698 = vadd.f32 %v1696, %v1697
      %v1699 = vsel %vm1691, %v1687, 0.0
      %v1700 = vadd.f32 %v1698, %v1699
      %v1701 = vsel %vm1691, %v1688, 0.0
      %v1702 = vadd.f32 %v1700, %v1701
      %v1703 = vsel %vm1691, %v1689, 0.0
      %v1704 = vadd.f32 %v1702, %v1703
      %v1705 = vsel %vm1691, %v1690, 0.0
      %v1706 = vadd.f32 %v1704, %v1705
      %v1707 = vrot.slane %v1706, 4
      %v1708 = vadd.f32 %v1706, %v1707
      %v1709 = vrot.slane %v1708, 2
      %v1710 = vadd.f32 %v1708, %v1709
      %v1711 = vrot.slane %v1710, 1
      %v1712 = vadd.f32 %v1710, %v1711
      %v1713 = vrcp.pop 64.0
      %v1714 = vmul.f32 %v1712, %v1713
      %1716 = vrot.lane.b32.xlu0 %v1714, 120
      %v1717 = vpop.permute.xlu0 %1716
      %1719 = vrot.lane.b32.xlu0 %v1714, 112
      %v1720 = vpop.permute.xlu0 %1719
      %1722 = vrot.lane.b32.xlu0 %v1714, 104
      %v1723 = vpop.permute.xlu0 %1722
      %v1725 = vcombine.low %v1714, %v1720
      %v1727 = vunpack.c.l.s4 1983009808
      %v1728 = vunpack.c.0.s8 %v1727
      %v1729 = vlaneseq
      %v1730 = vshrl.u32 %v1729, 7
      %v1731 = vsub.s32 %v1728, %v1730
      %v1732 = vrot.slane %v1725, %v1731
      %v1733 = vcombine.low %v1717, %v1723
      %v1735 = vunpack.c.l.s4 1983009808
      %v1736 = vunpack.c.0.s8 %v1735
      %v1737 = vlaneseq
      %v1738 = vshrl.u32 %v1737, 7
      %v1739 = vsub.s32 %v1736, %v1738
      %v1740 = vrot.slane %v1733, %v1739
      %v1741 = vcombine.low %v1732, %v1740
      %v1743 = vunpack.c.l.s4 1934713408
      %v1744 = vunpack.c.0.s8 %v1743
      %v1745 = vlaneseq
      %v1746 = vshrl.u32 %v1745, 7
      %v1747 = vsub.s32 %v1744, %v1746
      %v1748 = vrot.slane %v1741, %v1747
      %vm1749 = vcmask 60416
      %v1750 = vsel %vm1749, %v1748, 0.0
      %v1751 = vrot.slane %v1750, 4
      %v1752 = vadd.f32 %v1750, %v1751
      %v1753 = vrot.slane %v1752, 2
      %v1754 = vadd.f32 %v1752, %v1753
      %v1755 = vrot.slane %v1754, 1
      %v1756 = vadd.f32 %v1754, %v1755
      %v1757 = vpack.c.bf16 %v1756, %v1756
      %v1758 = vld [vmem:[%s3] sm:$0xf]
      %v1759 = vld [vmem:[%s4] sm:$0x1]
      %v1761 = vsel %vm886, %v1757, 0
      %vm1763 = vcmask 1043456
      %v1765 = vsel %vm1763, %v1758, 0
      %1767 = vmatprep.subr.bf16.mxu0 0
      %1768 = vmatpush1.bf16.msra.mxu0 0
      %1769 = vmatprep.subr.bf16.mxu0 0
      %1770 = vmatpush1.bf16.msra.mxu0 0
      %1771 = vmatprep.subr.bf16.mxu0 0
      %1772 = vmatpush1.bf16.msra.mxu0 0
      %1773 = vmatprep.subr.bf16.mxu0 0
      %1774 = vmatpush1.bf16.msra.mxu0 0
      %1775 = vmatprep.subr.bf16.mxu0 0
      %1776 = vmatpush1.bf16.msra.mxu0 0
      %1777 = vmatprep.subr.bf16.mxu0 0
      %1778 = vmatpush1.bf16.msra.mxu0 0
      %1779 = vmatprep.subr.bf16.mxu0 0
      %1780 = vmatpush1.bf16.msra.mxu0 0
      %1781 = vmatprep.subr.bf16.mxu0 0
      %1782 = vmatpush1.bf16.msra.mxu0 %v1765
      %1783 = vmatprep.subr.bf16.mxu0 0
      %1784 = vmatpush2.bf16.msra.mxu0 0
      %1785 = vmatprep.subr.bf16.mxu0 0
      %1786 = vmatpush2.bf16.msra.mxu0 0
      %1787 = vmatprep.subr.bf16.mxu0 0
      %1788 = vmatpush2.bf16.msra.mxu0 0
      %1789 = vmatprep.subr.bf16.mxu0 0
      %1790 = vmatpush2.bf16.msra.mxu0 0
      %1791 = vmatprep.subr.bf16.mxu0 0
      %1792 = vmatpush2.bf16.msra.mxu0 0
      %1793 = vmatprep.subr.bf16.mxu0 0
      %1794 = vmatpush2.bf16.msra.mxu0 0
      %1795 = vmatprep.subr.bf16.mxu0 0
      %1796 = vmatpush2.bf16.msra.mxu0 0
      %1797 = vmatprep.subr.bf16.mxu0 0
      %1798 = vmatpush2.bf16.msra.mxu0 0
      %1799 = vmatprep.mubr.bf16.mxu0 0
      %1800 = vmatmul.mubr.bf16.gmra.mxu0 %v1761
      %v1801 = vpop.f32.mrf.mxu0
      %v1802 = vadd.f32 %v1759, %v1801
      %v1803 = vpop.f32.mrf.mxu0
      %v1804 = vpop.f32.mrf.mxu0
      %v1805 = vpop.f32.mrf.mxu0
      %1806 = vdwg.mxu0
      %v1807 = vpack.c.bf16 %v1802, %v1802
      %v1808 = vld [vmem:[%s5] sm:$0xf]
      %v1809 = vld [vmem:[%s5 + $0x4] sm:$0xf]
      %v1810 = vld [vmem:[%s5 + $0x8] sm:$0xf]
      %v1811 = vld [vmem:[%s5 + $0xc] sm:$0xf]
      %v1812 = vld [vmem:[%s6] sm:$0x1]
      %v1817 = vunpack.c.l.b16 %v1808
      %v1818 = vunpack.c.l.b16 %v1809
      %v1819 = vunpack.c.l.b16 %v1810
      %v1820 = vunpack.c.l.b16 %v1811
      %v1821 = vpack.c.b16 %v1818, %v1817
      %v1822 = vpack.c.b16 %v1820, %v1819
      %v1826 = vsel %vm1691, %v1807, 0
      %1828 = vmatprep.subr.bf16.mxu0 0
      %1829 = vmatpush1.bf16.msra.mxu0 0
      %1830 = vmatprep.subr.bf16.mxu0 0
      %1831 = vmatpush1.bf16.msra.mxu0 0
      %1832 = vmatprep.subr.bf16.mxu0 0
      %1833 = vmatpush1.bf16.msra.mxu0 0
      %1834 = vmatprep.subr.bf16.mxu0 0
      %1835 = vmatpush1.bf16.msra.mxu0 0
      %1836 = vmatprep.subr.bf16.mxu0 0
      %1837 = vmatpush1.bf16.msra.mxu0 0
      %1838 = vmatprep.subr.bf16.mxu0 0
      %1839 = vmatpush1.bf16.msra.mxu0 0
      %1840 = vmatprep.subr.bf16.mxu0 0
      %1841 = vmatpush1.bf16.msra.mxu0 %v1822
      %1842 = vmatprep.subr.bf16.mxu0 0
      %1843 = vmatpush1.bf16.msra.mxu0 %v1821
      %1844 = vmatprep.subr.bf16.mxu0 0
      %1845 = vmatpush2.bf16.msra.mxu0 0
      %1846 = vmatprep.subr.bf16.mxu0 0
      %1847 = vmatpush2.bf16.msra.mxu0 0
      %1848 = vmatprep.subr.bf16.mxu0 0
      %1849 = vmatpush2.bf16.msra.mxu0 0
      %1850 = vmatprep.subr.bf16.mxu0 0
      %1851 = vmatpush2.bf16.msra.mxu0 0
      %1852 = vmatprep.subr.bf16.mxu0 0
      %1853 = vmatpush2.bf16.msra.mxu0 0
      %1854 = vmatprep.subr.bf16.mxu0 0
      %1855 = vmatpush2.bf16.msra.mxu0 0
      %1856 = vmatprep.subr.bf16.mxu0 0
      %1857 = vmatpush2.bf16.msra.mxu0 0
      %1858 = vmatprep.subr.bf16.mxu0 0
      %1859 = vmatpush2.bf16.msra.mxu0 0
      %1860 = vmatprep.mubr.bf16.mxu0 0
      %1861 = vmatmul.mubr.bf16.gmra.mxu0 %v1826
      %v1862 = vpop.f32.mrf.mxu0
      %v1863 = vadd.f32 %v1812, %v1862
      %v1864 = vpop.f32.mrf.mxu0
      %v1865 = vpop.f32.mrf.mxu0
      %v1866 = vpop.f32.mrf.mxu0
      %1867 = vdwg.mxu0
      %1869 = vrot.lane.b32.xlu0 %v1863, 120
      %v1870 = vpop.permute.xlu0 %1869
      %1872 = vrot.lane.b32.xlu0 %v1863, 112
      %v1873 = vpop.permute.xlu0 %1872
      %1875 = vrot.lane.b32.xlu0 %v1863, 104
      %v1876 = vpop.permute.xlu0 %1875
      %v1878 = vcombine.low %v1863, %v1873
      %v1880 = vunpack.c.l.s4 1983009808
      %v1881 = vunpack.c.0.s8 %v1880
      %v1882 = vlaneseq
      %v1883 = vshrl.u32 %v1882, 7
      %v1884 = vsub.s32 %v1881, %v1883
      %v1885 = vrot.slane %v1878, %v1884
      %v1886 = vcombine.low %v1870, %v1876
      %v1888 = vunpack.c.l.s4 1983009808
      %v1889 = vunpack.c.0.s8 %v1888
      %v1890 = vlaneseq
      %v1891 = vshrl.u32 %v1890, 7
      %v1892 = vsub.s32 %v1889, %v1891
      %v1893 = vrot.slane %v1886, %v1892
      %v1894 = vcombine.low %v1885, %v1893
      %v1896 = vunpack.c.l.s4 1934713408
      %v1897 = vunpack.c.0.s8 %v1896
      %v1898 = vlaneseq
      %v1899 = vshrl.u32 %v1898, 7
      %v1900 = vsub.s32 %v1897, %v1899
      %v1901 = vrot.slane %v1894, %v1900
      %v1902 = vsel %vm1749, %v1901, -inf
      %v1903 = vrot.slane %v1902, 4
      %v1904 = vmax.f32 %v1902, %v1903
      %v1905 = vrot.slane %v1904, 2
      %v1906 = vmax.f32 %v1904, %v1905
      %v1907 = vrot.slane %v1906, 1
      %v1908 = vmax.f32 %v1906, %v1907
      %v1909 = vsub.f32 %v1901, %v1908
      %v1910 = vmul.f32 %v1909, 1.442695
      %v1911 = vpow.pop %v1910
      %v1912 = vsel %vm1749, %v1911, 0.0
      %v1913 = vrot.slane %v1912, 4
      %v1914 = vadd.f32 %v1912, %v1913
      %v1915 = vrot.slane %v1914, 2
      %v1916 = vadd.f32 %v1914, %v1915
      %v1917 = vrot.slane %v1916, 1
      %v1918 = vadd.f32 %v1916, %v1917
      %v1919 = vrcp.pop %v1918
      %v1920 = vmul.f32 %v1911, %v1919
      %v1922 = vunpack.c.l.s4 1983009808
      %v1923 = vunpack.c.0.s8 %v1922
      %v1924 = vlaneseq
      %v1925 = vshrl.u32 %v1924, 7
      %v1926 = vsub.s32 %v1923, %v1925
      %v1927 = vrot.slane %v1920, %v1926
      %v1928 = vcombine.high %v1927, 0.0
      %v1930 = vunpack.c.l.s4 1934713408
      %v1931 = vunpack.c.0.s8 %v1930
      %v1932 = vlaneseq
      %v1933 = vshrl.u32 %v1932, 7
      %v1934 = vsub.s32 %v1931, %v1933
      %v1935 = vrot.slane %v1927, %v1934
      %v1937 = vunpack.c.l.s4 1934713408
      %v1938 = vunpack.c.0.s8 %v1937
      %v1939 = vlaneseq
      %v1940 = vshrl.u32 %v1939, 7
      %v1941 = vsub.s32 %v1938, %v1940
      %v1942 = vrot.slane %v1928, %v1941
      %v1943 = vcombine.high %v1935, 0.0
      %v1944 = vcombine.high %v1942, 0.0
      %1946 = vrot.lane.b32.xlu0 %v1943, 8
      %v1947 = vpop.permute.xlu0 %1946
      %1950 = vrot.lane.b32.xlu0 %v1942, 16
      %v1951 = vpop.permute.xlu0 %1950
      %1954 = vrot.lane.b32.xlu0 %v1944, 24
      %v1955 = vpop.permute.xlu0 %1954
      %v1957 = vsel %vm886, %v1935, %v1947
      %v1958 = vsel %vm924, %v1957, %v1951
      %v1959 = vsel %vm962, %v1958, %v1955
      %v1960 = vlaneseq
      %v1961 = vshrl.u32 %v1960, 7
      %v1962 = vsub.s32 0, %v1961
      %v1963 = vrot.slane %v1959, %v1962
      %v1964 = vmul.f32 %v1683, %v1963
      %v1965 = vmul.f32 %v1684, %v1963
      %v1966 = vmul.f32 %v1685, %v1963
      %v1967 = vmul.f32 %v1686, %v1963
      %v1968 = vmul.f32 %v1687, %v1963
      %v1969 = vmul.f32 %v1688, %v1963
      %v1970 = vmul.f32 %v1689, %v1963
      %v1971 = vmul.f32 %v1690, %v1963
      %1980 = vrot.lane.b32.xlu0 %v1964, 120
      %v1981 = vpop.permute.xlu0 %1980
      %1982 = vrot.lane.b32.xlu0 %v1965, 120
      %v1983 = vpop.permute.xlu0 %1982
      %1984 = vrot.lane.b32.xlu0 %v1966, 120
      %v1985 = vpop.permute.xlu0 %1984
      %1986 = vrot.lane.b32.xlu0 %v1967, 120
      %v1987 = vpop.permute.xlu0 %1986
      %1988 = vrot.lane.b32.xlu0 %v1968, 120
      %v1989 = vpop.permute.xlu0 %1988
      %1990 = vrot.lane.b32.xlu0 %v1969, 120
      %v1991 = vpop.permute.xlu0 %1990
      %1992 = vrot.lane.b32.xlu0 %v1970, 120
      %v1993 = vpop.permute.xlu0 %1992
      %1994 = vrot.lane.b32.xlu0 %v1971, 120
      %v1995 = vpop.permute.xlu0 %1994
      %2004 = vrot.lane.b32.xlu0 %v1964, 112
      %v2005 = vpop.permute.xlu0 %2004
      %2006 = vrot.lane.b32.xlu0 %v1965, 112
      %v2007 = vpop.permute.xlu0 %2006
      %2008 = vrot.lane.b32.xlu0 %v1966, 112
      %v2009 = vpop.permute.xlu0 %2008
      %2010 = vrot.lane.b32.xlu0 %v1967, 112
      %v2011 = vpop.permute.xlu0 %2010
      %2012 = vrot.lane.b32.xlu0 %v1968, 112
      %v2013 = vpop.permute.xlu0 %2012
      %2014 = vrot.lane.b32.xlu0 %v1969, 112
      %v2015 = vpop.permute.xlu0 %2014
      %2016 = vrot.lane.b32.xlu0 %v1970, 112
      %v2017 = vpop.permute.xlu0 %2016
      %2018 = vrot.lane.b32.xlu0 %v1971, 112
      %v2019 = vpop.permute.xlu0 %2018
      %2028 = vrot.lane.b32.xlu0 %v1964, 104
      %v2029 = vpop.permute.xlu0 %2028
      %2030 = vrot.lane.b32.xlu0 %v1965, 104
      %v2031 = vpop.permute.xlu0 %2030
      %2032 = vrot.lane.b32.xlu0 %v1966, 104
      %v2033 = vpop.permute.xlu0 %2032
      %2034 = vrot.lane.b32.xlu0 %v1967, 104
      %v2035 = vpop.permute.xlu0 %2034
      %2036 = vrot.lane.b32.xlu0 %v1968, 104
      %v2037 = vpop.permute.xlu0 %2036
      %2038 = vrot.lane.b32.xlu0 %v1969, 104
      %v2039 = vpop.permute.xlu0 %2038
      %2040 = vrot.lane.b32.xlu0 %v1970, 104
      %v2041 = vpop.permute.xlu0 %2040
      %2042 = vrot.lane.b32.xlu0 %v1971, 104
      %v2043 = vpop.permute.xlu0 %2042
      %v2052 = vcombine.low %v1964, %v2005
      %v2053 = vcombine.high %v1964, %v2005
      %v2055 = vunpack.c.l.s4 1983009808
      %v2056 = vunpack.c.0.s8 %v2055
      %v2057 = vlaneseq
      %v2058 = vshrl.u32 %v2057, 7
      %v2059 = vsub.s32 %v2056, %v2058
      %v2060 = vrot.slane %v2052, %v2059
      %v2062 = vunpack.c.l.s4 1983009808
      %v2063 = vunpack.c.0.s8 %v2062
      %v2064 = vlaneseq
      %v2065 = vshrl.u32 %v2064, 7
      %v2066 = vsub.s32 %v2063, %v2065
      %v2067 = vrot.slane %v2053, %v2066
      %v2068 = vcombine.low %v1981, %v2029
      %v2069 = vcombine.high %v1981, %v2029
      %v2071 = vunpack.c.l.s4 1983009808
      %v2072 = vunpack.c.0.s8 %v2071
      %v2073 = vlaneseq
      %v2074 = vshrl.u32 %v2073, 7
      %v2075 = vsub.s32 %v2072, %v2074
      %v2076 = vrot.slane %v2068, %v2075
      %v2078 = vunpack.c.l.s4 1983009808
      %v2079 = vunpack.c.0.s8 %v2078
      %v2080 = vlaneseq
      %v2081 = vshrl.u32 %v2080, 7
      %v2082 = vsub.s32 %v2079, %v2081
      %v2083 = vrot.slane %v2069, %v2082
      %v2084 = vcombine.low %v2060, %v2076
      %v2085 = vcombine.high %v2060, %v2076
      %v2087 = vunpack.c.l.s4 1934713408
      %v2088 = vunpack.c.0.s8 %v2087
      %v2089 = vlaneseq
      %v2090 = vshrl.u32 %v2089, 7
      %v2091 = vsub.s32 %v2088, %v2090
      %v2092 = vrot.slane %v2084, %v2091
      %v2094 = vunpack.c.l.s4 1934713408
      %v2095 = vunpack.c.0.s8 %v2094
      %v2096 = vlaneseq
      %v2097 = vshrl.u32 %v2096, 7
      %v2098 = vsub.s32 %v2095, %v2097
      %v2099 = vrot.slane %v2085, %v2098
      %v2100 = vcombine.low %v2067, %v2083
      %v2101 = vcombine.high %v2067, %v2083
      %v2103 = vunpack.c.l.s4 1934713408
      %v2104 = vunpack.c.0.s8 %v2103
      %v2105 = vlaneseq
      %v2106 = vshrl.u32 %v2105, 7
      %v2107 = vsub.s32 %v2104, %v2106
      %v2108 = vrot.slane %v2100, %v2107
      %v2110 = vunpack.c.l.s4 1934713408
      %v2111 = vunpack.c.0.s8 %v2110
      %v2112 = vlaneseq
      %v2113 = vshrl.u32 %v2112, 7
      %v2114 = vsub.s32 %v2111, %v2113
      %v2115 = vrot.slane %v2101, %v2114
      %v2116 = vcombine.high %v2092, 0.0
      %v2117 = vcombine.high %v2099, 0.0
      %v2118 = vcombine.high %v2108, 0.0
      %v2119 = vcombine.high %v2115, 0.0
      %v2120 = vcombine.low %v1965, %v2007
      %v2121 = vcombine.high %v1965, %v2007
      %v2123 = vunpack.c.l.s4 1983009808
      %v2124 = vunpack.c.0.s8 %v2123
      %v2125 = vlaneseq
      %v2126 = vshrl.u32 %v2125, 7
      %v2127 = vsub.s32 %v2124, %v2126
      %v2128 = vrot.slane %v2120, %v2127
      %v2130 = vunpack.c.l.s4 1983009808
      %v2131 = vunpack.c.0.s8 %v2130
      %v2132 = vlaneseq
      %v2133 = vshrl.u32 %v2132, 7
      %v2134 = vsub.s32 %v2131, %v2133
      %v2135 = vrot.slane %v2121, %v2134
      %v2136 = vcombine.low %v1983, %v2031
      %v2137 = vcombine.high %v1983, %v2031
      %v2139 = vunpack.c.l.s4 1983009808
      %v2140 = vunpack.c.0.s8 %v2139
      %v2141 = vlaneseq
      %v2142 = vshrl.u32 %v2141, 7
      %v2143 = vsub.s32 %v2140, %v2142
      %v2144 = vrot.slane %v2136, %v2143
      %v2146 = vunpack.c.l.s4 1983009808
      %v2147 = vunpack.c.0.s8 %v2146
      %v2148 = vlaneseq
      %v2149 = vshrl.u32 %v2148, 7
      %v2150 = vsub.s32 %v2147, %v2149
      %v2151 = vrot.slane %v2137, %v2150
      %v2152 = vcombine.low %v2128, %v2144
      %v2153 = vcombine.high %v2128, %v2144
      %v2155 = vunpack.c.l.s4 1934713408
      %v2156 = vunpack.c.0.s8 %v2155
      %v2157 = vlaneseq
      %v2158 = vshrl.u32 %v2157, 7
      %v2159 = vsub.s32 %v2156, %v2158
      %v2160 = vrot.slane %v2152, %v2159
      %v2162 = vunpack.c.l.s4 1934713408
      %v2163 = vunpack.c.0.s8 %v2162
      %v2164 = vlaneseq
      %v2165 = vshrl.u32 %v2164, 7
      %v2166 = vsub.s32 %v2163, %v2165
      %v2167 = vrot.slane %v2153, %v2166
      %v2168 = vcombine.low %v2135, %v2151
      %v2169 = vcombine.high %v2135, %v2151
      %v2171 = vunpack.c.l.s4 1934713408
      %v2172 = vunpack.c.0.s8 %v2171
      %v2173 = vlaneseq
      %v2174 = vshrl.u32 %v2173, 7
      %v2175 = vsub.s32 %v2172, %v2174
      %v2176 = vrot.slane %v2168, %v2175
      %v2178 = vunpack.c.l.s4 1934713408
      %v2179 = vunpack.c.0.s8 %v2178
      %v2180 = vlaneseq
      %v2181 = vshrl.u32 %v2180, 7
      %v2182 = vsub.s32 %v2179, %v2181
      %v2183 = vrot.slane %v2169, %v2182
      %v2184 = vcombine.high %v2160, 0.0
      %v2185 = vcombine.high %v2167, 0.0
      %v2186 = vcombine.high %v2176, 0.0
      %v2187 = vcombine.high %v2183, 0.0
      %v2188 = vcombine.low %v1966, %v2009
      %v2189 = vcombine.high %v1966, %v2009
      %v2191 = vunpack.c.l.s4 1983009808
      %v2192 = vunpack.c.0.s8 %v2191
      %v2193 = vlaneseq
      %v2194 = vshrl.u32 %v2193, 7
      %v2195 = vsub.s32 %v2192, %v2194
      %v2196 = vrot.slane %v2188, %v2195
      %v2198 = vunpack.c.l.s4 1983009808
      %v2199 = vunpack.c.0.s8 %v2198
      %v2200 = vlaneseq
      %v2201 = vshrl.u32 %v2200, 7
      %v2202 = vsub.s32 %v2199, %v2201
      %v2203 = vrot.slane %v2189, %v2202
      %v2204 = vcombine.low %v1985, %v2033
      %v2205 = vcombine.high %v1985, %v2033
      %v2207 = vunpack.c.l.s4 1983009808
      %v2208 = vunpack.c.0.s8 %v2207
      %v2209 = vlaneseq
      %v2210 = vshrl.u32 %v2209, 7
      %v2211 = vsub.s32 %v2208, %v2210
      %v2212 = vrot.slane %v2204, %v2211
      %v2214 = vunpack.c.l.s4 1983009808
      %v2215 = vunpack.c.0.s8 %v2214
      %v2216 = vlaneseq
      %v2217 = vshrl.u32 %v2216, 7
      %v2218 = vsub.s32 %v2215, %v2217
      %v2219 = vrot.slane %v2205, %v2218
      %v2220 = vcombine.low %v2196, %v2212
      %v2221 = vcombine.high %v2196, %v2212
      %v2223 = vunpack.c.l.s4 1934713408
      %v2224 = vunpack.c.0.s8 %v2223
      %v2225 = vlaneseq
      %v2226 = vshrl.u32 %v2225, 7
      %v2227 = vsub.s32 %v2224, %v2226
      %v2228 = vrot.slane %v2220, %v2227
      %v2230 = vunpack.c.l.s4 1934713408
      %v2231 = vunpack.c.0.s8 %v2230
      %v2232 = vlaneseq
      %v2233 = vshrl.u32 %v2232, 7
      %v2234 = vsub.s32 %v2231, %v2233
      %v2235 = vrot.slane %v2221, %v2234
      %v2236 = vcombine.low %v2203, %v2219
      %v2237 = vcombine.high %v2203, %v2219
      %v2239 = vunpack.c.l.s4 1934713408
      %v2240 = vunpack.c.0.s8 %v2239
      %v2241 = vlaneseq
      %v2242 = vshrl.u32 %v2241, 7
      %v2243 = vsub.s32 %v2240, %v2242
      %v2244 = vrot.slane %v2236, %v2243
      %v2246 = vunpack.c.l.s4 1934713408
      %v2247 = vunpack.c.0.s8 %v2246
      %v2248 = vlaneseq
      %v2249 = vshrl.u32 %v2248, 7
      %v2250 = vsub.s32 %v2247, %v2249
      %v2251 = vrot.slane %v2237, %v2250
      %v2252 = vcombine.high %v2228, 0.0
      %v2253 = vcombine.high %v2235, 0.0
      %v2254 = vcombine.high %v2244, 0.0
      %v2255 = vcombine.high %v2251, 0.0
      %v2256 = vcombine.low %v1967, %v2011
      %v2257 = vcombine.high %v1967, %v2011
      %v2259 = vunpack.c.l.s4 1983009808
      %v2260 = vunpack.c.0.s8 %v2259
      %v2261 = vlaneseq
      %v2262 = vshrl.u32 %v2261, 7
      %v2263 = vsub.s32 %v2260, %v2262
      %v2264 = vrot.slane %v2256, %v2263
      %v2266 = vunpack.c.l.s4 1983009808
      %v2267 = vunpack.c.0.s8 %v2266
      %v2268 = vlaneseq
      %v2269 = vshrl.u32 %v2268, 7
      %v2270 = vsub.s32 %v2267, %v2269
      %v2271 = vrot.slane %v2257, %v2270
      %v2272 = vcombine.low %v1987, %v2035
      %v2273 = vcombine.high %v1987, %v2035
      %v2275 = vunpack.c.l.s4 1983009808
      %v2276 = vunpack.c.0.s8 %v2275
      %v2277 = vlaneseq
      %v2278 = vshrl.u32 %v2277, 7
      %v2279 = vsub.s32 %v2276, %v2278
      %v2280 = vrot.slane %v2272, %v2279
      %v2282 = vunpack.c.l.s4 1983009808
      %v2283 = vunpack.c.0.s8 %v2282
      %v2284 = vlaneseq
      %v2285 = vshrl.u32 %v2284, 7
      %v2286 = vsub.s32 %v2283, %v2285
      %v2287 = vrot.slane %v2273, %v2286
      %v2288 = vcombine.low %v2264, %v2280
      %v2289 = vcombine.high %v2264, %v2280
      %v2291 = vunpack.c.l.s4 1934713408
      %v2292 = vunpack.c.0.s8 %v2291
      %v2293 = vlaneseq
      %v2294 = vshrl.u32 %v2293, 7
      %v2295 = vsub.s32 %v2292, %v2294
      %v2296 = vrot.slane %v2288, %v2295
      %v2298 = vunpack.c.l.s4 1934713408
      %v2299 = vunpack.c.0.s8 %v2298
      %v2300 = vlaneseq
      %v2301 = vshrl.u32 %v2300, 7
      %v2302 = vsub.s32 %v2299, %v2301
      %v2303 = vrot.slane %v2289, %v2302
      %v2304 = vcombine.low %v2271, %v2287
      %v2305 = vcombine.high %v2271, %v2287
      %v2307 = vunpack.c.l.s4 1934713408
      %v2308 = vunpack.c.0.s8 %v2307
      %v2309 = vlaneseq
      %v2310 = vshrl.u32 %v2309, 7
      %v2311 = vsub.s32 %v2308, %v2310
      %v2312 = vrot.slane %v2304, %v2311
      %v2314 = vunpack.c.l.s4 1934713408
      %v2315 = vunpack.c.0.s8 %v2314
      %v2316 = vlaneseq
      %v2317 = vshrl.u32 %v2316, 7
      %v2318 = vsub.s32 %v2315, %v2317
      %v2319 = vrot.slane %v2305, %v2318
      %v2320 = vcombine.high %v2296, 0.0
      %v2321 = vcombine.high %v2303, 0.0
      %v2322 = vcombine.high %v2312, 0.0
      %v2323 = vcombine.high %v2319, 0.0
      %v2324 = vcombine.low %v1968, %v2013
      %v2325 = vcombine.high %v1968, %v2013
      %v2327 = vunpack.c.l.s4 1983009808
      %v2328 = vunpack.c.0.s8 %v2327
      %v2329 = vlaneseq
      %v2330 = vshrl.u32 %v2329, 7
      %v2331 = vsub.s32 %v2328, %v2330
      %v2332 = vrot.slane %v2324, %v2331
      %v2334 = vunpack.c.l.s4 1983009808
      %v2335 = vunpack.c.0.s8 %v2334
      %v2336 = vlaneseq
      %v2337 = vshrl.u32 %v2336, 7
      %v2338 = vsub.s32 %v2335, %v2337
      %v2339 = vrot.slane %v2325, %v2338
      %v2340 = vcombine.low %v1989, %v2037
      %v2341 = vcombine.high %v1989, %v2037
      %v2343 = vunpack.c.l.s4 1983009808
      %v2344 = vunpack.c.0.s8 %v2343
      %v2345 = vlaneseq
      %v2346 = vshrl.u32 %v2345, 7
      %v2347 = vsub.s32 %v2344, %v2346
      %v2348 = vrot.slane %v2340, %v2347
      %v2350 = vunpack.c.l.s4 1983009808
      %v2351 = vunpack.c.0.s8 %v2350
      %v2352 = vlaneseq
      %v2353 = vshrl.u32 %v2352, 7
      %v2354 = vsub.s32 %v2351, %v2353
      %v2355 = vrot.slane %v2341, %v2354
      %v2356 = vcombine.low %v2332, %v2348
      %v2357 = vcombine.high %v2332, %v2348
      %v2359 = vunpack.c.l.s4 1934713408
      %v2360 = vunpack.c.0.s8 %v2359
      %v2361 = vlaneseq
      %v2362 = vshrl.u32 %v2361, 7
      %v2363 = vsub.s32 %v2360, %v2362
      %v2364 = vrot.slane %v2356, %v2363
      %v2366 = vunpack.c.l.s4 1934713408
      %v2367 = vunpack.c.0.s8 %v2366
      %v2368 = vlaneseq
      %v2369 = vshrl.u32 %v2368, 7
      %v2370 = vsub.s32 %v2367, %v2369
      %v2371 = vrot.slane %v2357, %v2370
      %v2372 = vcombine.low %v2339, %v2355
      %v2373 = vcombine.high %v2339, %v2355
      %v2375 = vunpack.c.l.s4 1934713408
      %v2376 = vunpack.c.0.s8 %v2375
      %v2377 = vlaneseq
      %v2378 = vshrl.u32 %v2377, 7
      %v2379 = vsub.s32 %v2376, %v2378
      %v2380 = vrot.slane %v2372, %v2379
      %v2382 = vunpack.c.l.s4 1934713408
      %v2383 = vunpack.c.0.s8 %v2382
      %v2384 = vlaneseq
      %v2385 = vshrl.u32 %v2384, 7
      %v2386 = vsub.s32 %v2383, %v2385
      %v2387 = vrot.slane %v2373, %v2386
      %v2388 = vcombine.high %v2364, 0.0
      %v2389 = vcombine.high %v2371, 0.0
      %v2390 = vcombine.high %v2380, 0.0
      %v2391 = vcombine.high %v2387, 0.0
      %v2392 = vcombine.low %v1969, %v2015
      %v2393 = vcombine.high %v1969, %v2015
      %v2395 = vunpack.c.l.s4 1983009808
      %v2396 = vunpack.c.0.s8 %v2395
      %v2397 = vlaneseq
      %v2398 = vshrl.u32 %v2397, 7
      %v2399 = vsub.s32 %v2396, %v2398
      %v2400 = vrot.slane %v2392, %v2399
      %v2402 = vunpack.c.l.s4 1983009808
      %v2403 = vunpack.c.0.s8 %v2402
      %v2404 = vlaneseq
      %v2405 = vshrl.u32 %v2404, 7
      %v2406 = vsub.s32 %v2403, %v2405
      %v2407 = vrot.slane %v2393, %v2406
      %v2408 = vcombine.low %v1991, %v2039
      %v2409 = vcombine.high %v1991, %v2039
      %v2411 = vunpack.c.l.s4 1983009808
      %v2412 = vunpack.c.0.s8 %v2411
      %v2413 = vlaneseq
      %v2414 = vshrl.u32 %v2413, 7
      %v2415 = vsub.s32 %v2412, %v2414
      %v2416 = vrot.slane %v2408, %v2415
      %v2418 = vunpack.c.l.s4 1983009808
      %v2419 = vunpack.c.0.s8 %v2418
      %v2420 = vlaneseq
      %v2421 = vshrl.u32 %v2420, 7
      %v2422 = vsub.s32 %v2419, %v2421
      %v2423 = vrot.slane %v2409, %v2422
      %v2424 = vcombine.low %v2400, %v2416
      %v2425 = vcombine.high %v2400, %v2416
      %v2427 = vunpack.c.l.s4 1934713408
      %v2428 = vunpack.c.0.s8 %v2427
      %v2429 = vlaneseq
      %v2430 = vshrl.u32 %v2429, 7
      %v2431 = vsub.s32 %v2428, %v2430
      %v2432 = vrot.slane %v2424, %v2431
      %v2434 = vunpack.c.l.s4 1934713408
      %v2435 = vunpack.c.0.s8 %v2434
      %v2436 = vlaneseq
      %v2437 = vshrl.u32 %v2436, 7
      %v2438 = vsub.s32 %v2435, %v2437
      %v2439 = vrot.slane %v2425, %v2438
      %v2440 = vcombine.low %v2407, %v2423
      %v2441 = vcombine.high %v2407, %v2423
      %v2443 = vunpack.c.l.s4 1934713408
      %v2444 = vunpack.c.0.s8 %v2443
      %v2445 = vlaneseq
      %v2446 = vshrl.u32 %v2445, 7
      %v2447 = vsub.s32 %v2444, %v2446
      %v2448 = vrot.slane %v2440, %v2447
      %v2450 = vunpack.c.l.s4 1934713408
      %v2451 = vunpack.c.0.s8 %v2450
      %v2452 = vlaneseq
      %v2453 = vshrl.u32 %v2452, 7
      %v2454 = vsub.s32 %v2451, %v2453
      %v2455 = vrot.slane %v2441, %v2454
      %v2456 = vcombine.high %v2432, 0.0
      %v2457 = vcombine.high %v2439, 0.0
      %v2458 = vcombine.high %v2448, 0.0
      %v2459 = vcombine.high %v2455, 0.0
      %v2460 = vcombine.low %v1970, %v2017
      %v2461 = vcombine.high %v1970, %v2017
      %v2463 = vunpack.c.l.s4 1983009808
      %v2464 = vunpack.c.0.s8 %v2463
      %v2465 = vlaneseq
      %v2466 = vshrl.u32 %v2465, 7
      %v2467 = vsub.s32 %v2464, %v2466
      %v2468 = vrot.slane %v2460, %v2467
      %v2470 = vunpack.c.l.s4 1983009808
      %v2471 = vunpack.c.0.s8 %v2470
      %v2472 = vlaneseq
      %v2473 = vshrl.u32 %v2472, 7
      %v2474 = vsub.s32 %v2471, %v2473
      %v2475 = vrot.slane %v2461, %v2474
      %v2476 = vcombine.low %v1993, %v2041
      %v2477 = vcombine.high %v1993, %v2041
      %v2479 = vunpack.c.l.s4 1983009808
      %v2480 = vunpack.c.0.s8 %v2479
      %v2481 = vlaneseq
      %v2482 = vshrl.u32 %v2481, 7
      %v2483 = vsub.s32 %v2480, %v2482
      %v2484 = vrot.slane %v2476, %v2483
      %v2486 = vunpack.c.l.s4 1983009808
      %v2487 = vunpack.c.0.s8 %v2486
      %v2488 = vlaneseq
      %v2489 = vshrl.u32 %v2488, 7
      %v2490 = vsub.s32 %v2487, %v2489
      %v2491 = vrot.slane %v2477, %v2490
      %v2492 = vcombine.low %v2468, %v2484
      %v2493 = vcombine.high %v2468, %v2484
      %v2495 = vunpack.c.l.s4 1934713408
      %v2496 = vunpack.c.0.s8 %v2495
      %v2497 = vlaneseq
      %v2498 = vshrl.u32 %v2497, 7
      %v2499 = vsub.s32 %v2496, %v2498
      %v2500 = vrot.slane %v2492, %v2499
      %v2502 = vunpack.c.l.s4 1934713408
      %v2503 = vunpack.c.0.s8 %v2502
      %v2504 = vlaneseq
      %v2505 = vshrl.u32 %v2504, 7
      %v2506 = vsub.s32 %v2503, %v2505
      %v2507 = vrot.slane %v2493, %v2506
      %v2508 = vcombine.low %v2475, %v2491
      %v2509 = vcombine.high %v2475, %v2491
      %v2511 = vunpack.c.l.s4 1934713408
      %v2512 = vunpack.c.0.s8 %v2511
      %v2513 = vlaneseq
      %v2514 = vshrl.u32 %v2513, 7
      %v2515 = vsub.s32 %v2512, %v2514
      %v2516 = vrot.slane %v2508, %v2515
      %v2518 = vunpack.c.l.s4 1934713408
      %v2519 = vunpack.c.0.s8 %v2518
      %v2520 = vlaneseq
      %v2521 = vshrl.u32 %v2520, 7
      %v2522 = vsub.s32 %v2519, %v2521
      %v2523 = vrot.slane %v2509, %v2522
      %v2524 = vcombine.high %v2500, 0.0
      %v2525 = vcombine.high %v2507, 0.0
      %v2526 = vcombine.high %v2516, 0.0
      %v2527 = vcombine.high %v2523, 0.0
      %v2528 = vcombine.low %v1971, %v2019
      %v2529 = vcombine.high %v1971, %v2019
      %v2531 = vunpack.c.l.s4 1983009808
      %v2532 = vunpack.c.0.s8 %v2531
      %v2533 = vlaneseq
      %v2534 = vshrl.u32 %v2533, 7
      %v2535 = vsub.s32 %v2532, %v2534
      %v2536 = vrot.slane %v2528, %v2535
      %v2538 = vunpack.c.l.s4 1983009808
      %v2539 = vunpack.c.0.s8 %v2538
      %v2540 = vlaneseq
      %v2541 = vshrl.u32 %v2540, 7
      %v2542 = vsub.s32 %v2539, %v2541
      %v2543 = vrot.slane %v2529, %v2542
      %v2544 = vcombine.low %v1995, %v2043
      %v2545 = vcombine.high %v1995, %v2043
      %v2547 = vunpack.c.l.s4 1983009808
      %v2548 = vunpack.c.0.s8 %v2547
      %v2549 = vlaneseq
      %v2550 = vshrl.u32 %v2549, 7
      %v2551 = vsub.s32 %v2548, %v2550
      %v2552 = vrot.slane %v2544, %v2551
      %v2554 = vunpack.c.l.s4 1983009808
      %v2555 = vunpack.c.0.s8 %v2554
      %v2556 = vlaneseq
      %v2557 = vshrl.u32 %v2556, 7
      %v2558 = vsub.s32 %v2555, %v2557
      %v2559 = vrot.slane %v2545, %v2558
      %v2560 = vcombine.low %v2536, %v2552
      %v2561 = vcombine.high %v2536, %v2552
      %v2563 = vunpack.c.l.s4 1934713408
      %v2564 = vunpack.c.0.s8 %v2563
      %v2565 = vlaneseq
      %v2566 = vshrl.u32 %v2565, 7
      %v2567 = vsub.s32 %v2564, %v2566
      %v2568 = vrot.slane %v2560, %v2567
      %v2570 = vunpack.c.l.s4 1934713408
      %v2571 = vunpack.c.0.s8 %v2570
      %v2572 = vlaneseq
      %v2573 = vshrl.u32 %v2572, 7
      %v2574 = vsub.s32 %v2571, %v2573
      %v2575 = vrot.slane %v2561, %v2574
      %v2576 = vcombine.low %v2543, %v2559
      %v2577 = vcombine.high %v2543, %v2559
      %v2579 = vunpack.c.l.s4 1934713408
      %v2580 = vunpack.c.0.s8 %v2579
      %v2581 = vlaneseq
      %v2582 = vshrl.u32 %v2581, 7
      %v2583 = vsub.s32 %v2580, %v2582
      %v2584 = vrot.slane %v2576, %v2583
      %v2586 = vunpack.c.l.s4 1934713408
      %v2587 = vunpack.c.0.s8 %v2586
      %v2588 = vlaneseq
      %v2589 = vshrl.u32 %v2588, 7
      %v2590 = vsub.s32 %v2587, %v2589
      %v2591 = vrot.slane %v2577, %v2590
      %v2592 = vcombine.high %v2568, 0.0
      %v2593 = vcombine.high %v2575, 0.0
      %v2594 = vcombine.high %v2584, 0.0
      %v2595 = vcombine.high %v2591, 0.0
      %v2596 = vsel %vm1749, %v2092, 0.0
      %v2597 = vrot.slane %v2596, 4
      %v2598 = vadd.f32 %v2596, %v2597
      %v2599 = vrot.slane %v2598, 2
      %v2600 = vadd.f32 %v2598, %v2599
      %v2601 = vrot.slane %v2600, 1
      %v2602 = vadd.f32 %v2600, %v2601
      %v2603 = vsel %vm1749, %v2116, 0.0
      %v2604 = vrot.slane %v2603, 4
      %v2605 = vadd.f32 %v2603, %v2604
      %v2606 = vrot.slane %v2605, 2
      %v2607 = vadd.f32 %v2605, %v2606
      %v2608 = vrot.slane %v2607, 1
      %v2609 = vadd.f32 %v2607, %v2608
      %v2610 = vsel %vm1749, %v2099, 0.0
      %v2611 = vrot.slane %v2610, 4
      %v2612 = vadd.f32 %v2610, %v2611
      %v2613 = vrot.slane %v2612, 2
      %v2614 = vadd.f32 %v2612, %v2613
      %v2615 = vrot.slane %v2614, 1
      %v2616 = vadd.f32 %v2614, %v2615
      %v2617 = vsel %vm1749, %v2117, 0.0
      %v2618 = vrot.slane %v2617, 4
      %v2619 = vadd.f32 %v2617, %v2618
      %v2620 = vrot.slane %v2619, 2
      %v2621 = vadd.f32 %v2619, %v2620
      %v2622 = vrot.slane %v2621, 1
      %v2623 = vadd.f32 %v2621, %v2622
      %v2624 = vsel %vm1749, %v2108, 0.0
      %v2625 = vrot.slane %v2624, 4
      %v2626 = vadd.f32 %v2624, %v2625
      %v2627 = vrot.slane %v2626, 2
      %v2628 = vadd.f32 %v2626, %v2627
      %v2629 = vrot.slane %v2628, 1
      %v2630 = vadd.f32 %v2628, %v2629
      %v2631 = vsel %vm1749, %v2118, 0.0
      %v2632 = vrot.slane %v2631, 4
      %v2633 = vadd.f32 %v2631, %v2632
      %v2634 = vrot.slane %v2633, 2
      %v2635 = vadd.f32 %v2633, %v2634
      %v2636 = vrot.slane %v2635, 1
      %v2637 = vadd.f32 %v2635, %v2636
      %v2638 = vsel %vm1749, %v2115, 0.0
      %v2639 = vrot.slane %v2638, 4
      %v2640 = vadd.f32 %v2638, %v2639
      %v2641 = vrot.slane %v2640, 2
      %v2642 = vadd.f32 %v2640, %v2641
      %v2643 = vrot.slane %v2642, 1
      %v2644 = vadd.f32 %v2642, %v2643
      %v2645 = vsel %vm1749, %v2119, 0.0
      %v2646 = vrot.slane %v2645, 4
      %v2647 = vadd.f32 %v2645, %v2646
      %v2648 = vrot.slane %v2647, 2
      %v2649 = vadd.f32 %v2647, %v2648
      %v2650 = vrot.slane %v2649, 1
      %v2651 = vadd.f32 %v2649, %v2650
      %v2652 = vsel %vm1749, %v2160, 0.0
      %v2653 = vrot.slane %v2652, 4
      %v2654 = vadd.f32 %v2652, %v2653
      %v2655 = vrot.slane %v2654, 2
      %v2656 = vadd.f32 %v2654, %v2655
      %v2657 = vrot.slane %v2656, 1
      %v2658 = vadd.f32 %v2656, %v2657
      %v2659 = vsel %vm1749, %v2184, 0.0
      %v2660 = vrot.slane %v2659, 4
      %v2661 = vadd.f32 %v2659, %v2660
      %v2662 = vrot.slane %v2661, 2
      %v2663 = vadd.f32 %v2661, %v2662
      %v2664 = vrot.slane %v2663, 1
      %v2665 = vadd.f32 %v2663, %v2664
      %v2666 = vsel %vm1749, %v2167, 0.0
      %v2667 = vrot.slane %v2666, 4
      %v2668 = vadd.f32 %v2666, %v2667
      %v2669 = vrot.slane %v2668, 2
      %v2670 = vadd.f32 %v2668, %v2669
      %v2671 = vrot.slane %v2670, 1
      %v2672 = vadd.f32 %v2670, %v2671
      %v2673 = vsel %vm1749, %v2185, 0.0
      %v2674 = vrot.slane %v2673, 4
      %v2675 = vadd.f32 %v2673, %v2674
      %v2676 = vrot.slane %v2675, 2
      %v2677 = vadd.f32 %v2675, %v2676
      %v2678 = vrot.slane %v2677, 1
      %v2679 = vadd.f32 %v2677, %v2678
      %v2680 = vsel %vm1749, %v2176, 0.0
      %v2681 = vrot.slane %v2680, 4
      %v2682 = vadd.f32 %v2680, %v2681
      %v2683 = vrot.slane %v2682, 2
      %v2684 = vadd.f32 %v2682, %v2683
      %v2685 = vrot.slane %v2684, 1
      %v2686 = vadd.f32 %v2684, %v2685
      %v2687 = vsel %vm1749, %v2186, 0.0
      %v2688 = vrot.slane %v2687, 4
      %v2689 = vadd.f32 %v2687, %v2688
      %v2690 = vrot.slane %v2689, 2
      %v2691 = vadd.f32 %v2689, %v2690
      %v2692 = vrot.slane %v2691, 1
      %v2693 = vadd.f32 %v2691, %v2692
      %v2694 = vsel %vm1749, %v2183, 0.0
      %v2695 = vrot.slane %v2694, 4
      %v2696 = vadd.f32 %v2694, %v2695
      %v2697 = vrot.slane %v2696, 2
      %v2698 = vadd.f32 %v2696, %v2697
      %v2699 = vrot.slane %v2698, 1
      %v2700 = vadd.f32 %v2698, %v2699
      %v2701 = vsel %vm1749, %v2187, 0.0
      %v2702 = vrot.slane %v2701, 4
      %v2703 = vadd.f32 %v2701, %v2702
      %v2704 = vrot.slane %v2703, 2
      %v2705 = vadd.f32 %v2703, %v2704
      %v2706 = vrot.slane %v2705, 1
      %v2707 = vadd.f32 %v2705, %v2706
      %v2708 = vsel %vm1749, %v2228, 0.0
      %v2709 = vrot.slane %v2708, 4
      %v2710 = vadd.f32 %v2708, %v2709
      %v2711 = vrot.slane %v2710, 2
      %v2712 = vadd.f32 %v2710, %v2711
      %v2713 = vrot.slane %v2712, 1
      %v2714 = vadd.f32 %v2712, %v2713
      %v2715 = vsel %vm1749, %v2252, 0.0
      %v2716 = vrot.slane %v2715, 4
      %v2717 = vadd.f32 %v2715, %v2716
      %v2718 = vrot.slane %v2717, 2
      %v2719 = vadd.f32 %v2717, %v2718
      %v2720 = vrot.slane %v2719, 1
      %v2721 = vadd.f32 %v2719, %v2720
      %v2722 = vsel %vm1749, %v2235, 0.0
      %v2723 = vrot.slane %v2722, 4
      %v2724 = vadd.f32 %v2722, %v2723
      %v2725 = vrot.slane %v2724, 2
      %v2726 = vadd.f32 %v2724, %v2725
      %v2727 = vrot.slane %v2726, 1
      %v2728 = vadd.f32 %v2726, %v2727
      %v2729 = vsel %vm1749, %v2253, 0.0
      %v2730 = vrot.slane %v2729, 4
      %v2731 = vadd.f32 %v2729, %v2730
      %v2732 = vrot.slane %v2731, 2
      %v2733 = vadd.f32 %v2731, %v2732
      %v2734 = vrot.slane %v2733, 1
      %v2735 = vadd.f32 %v2733, %v2734
      %v2736 = vsel %vm1749, %v2244, 0.0
      %v2737 = vrot.slane %v2736, 4
      %v2738 = vadd.f32 %v2736, %v2737
      %v2739 = vrot.slane %v2738, 2
      %v2740 = vadd.f32 %v2738, %v2739
      %v2741 = vrot.slane %v2740, 1
      %v2742 = vadd.f32 %v2740, %v2741
      %v2743 = vsel %vm1749, %v2254, 0.0
      %v2744 = vrot.slane %v2743, 4
      %v2745 = vadd.f32 %v2743, %v2744
      %v2746 = vrot.slane %v2745, 2
      %v2747 = vadd.f32 %v2745, %v2746
      %v2748 = vrot.slane %v2747, 1
      %v2749 = vadd.f32 %v2747, %v2748
      %v2750 = vsel %vm1749, %v2251, 0.0
      %v2751 = vrot.slane %v2750, 4
      %v2752 = vadd.f32 %v2750, %v2751
      %v2753 = vrot.slane %v2752, 2
      %v2754 = vadd.f32 %v2752, %v2753
      %v2755 = vrot.slane %v2754, 1
      %v2756 = vadd.f32 %v2754, %v2755
      %v2757 = vsel %vm1749, %v2255, 0.0
      %v2758 = vrot.slane %v2757, 4
      %v2759 = vadd.f32 %v2757, %v2758
      %v2760 = vrot.slane %v2759, 2
      %v2761 = vadd.f32 %v2759, %v2760
      %v2762 = vrot.slane %v2761, 1
      %v2763 = vadd.f32 %v2761, %v2762
      %v2764 = vsel %vm1749, %v2296, 0.0
      %v2765 = vrot.slane %v2764, 4
      %v2766 = vadd.f32 %v2764, %v2765
      %v2767 = vrot.slane %v2766, 2
      %v2768 = vadd.f32 %v2766, %v2767
      %v2769 = vrot.slane %v2768, 1
      %v2770 = vadd.f32 %v2768, %v2769
      %v2771 = vsel %vm1749, %v2320, 0.0
      %v2772 = vrot.slane %v2771, 4
      %v2773 = vadd.f32 %v2771, %v2772
      %v2774 = vrot.slane %v2773, 2
      %v2775 = vadd.f32 %v2773, %v2774
      %v2776 = vrot.slane %v2775, 1
      %v2777 = vadd.f32 %v2775, %v2776
      %v2778 = vsel %vm1749, %v2303, 0.0
      %v2779 = vrot.slane %v2778, 4
      %v2780 = vadd.f32 %v2778, %v2779
      %v2781 = vrot.slane %v2780, 2
      %v2782 = vadd.f32 %v2780, %v2781
      %v2783 = vrot.slane %v2782, 1
      %v2784 = vadd.f32 %v2782, %v2783
      %v2785 = vsel %vm1749, %v2321, 0.0
      %v2786 = vrot.slane %v2785, 4
      %v2787 = vadd.f32 %v2785, %v2786
      %v2788 = vrot.slane %v2787, 2
      %v2789 = vadd.f32 %v2787, %v2788
      %v2790 = vrot.slane %v2789, 1
      %v2791 = vadd.f32 %v2789, %v2790
      %v2792 = vsel %vm1749, %v2312, 0.0
      %v2793 = vrot.slane %v2792, 4
      %v2794 = vadd.f32 %v2792, %v2793
      %v2795 = vrot.slane %v2794, 2
      %v2796 = vadd.f32 %v2794, %v2795
      %v2797 = vrot.slane %v2796, 1
      %v2798 = vadd.f32 %v2796, %v2797
      %v2799 = vsel %vm1749, %v2322, 0.0
      %v2800 = vrot.slane %v2799, 4
      %v2801 = vadd.f32 %v2799, %v2800
      %v2802 = vrot.slane %v2801, 2
      %v2803 = vadd.f32 %v2801, %v2802
      %v2804 = vrot.slane %v2803, 1
      %v2805 = vadd.f32 %v2803, %v2804
      %v2806 = vsel %vm1749, %v2319, 0.0
      %v2807 = vrot.slane %v2806, 4
      %v2808 = vadd.f32 %v2806, %v2807
      %v2809 = vrot.slane %v2808, 2
      %v2810 = vadd.f32 %v2808, %v2809
      %v2811 = vrot.slane %v2810, 1
      %v2812 = vadd.f32 %v2810, %v2811
      %v2813 = vsel %vm1749, %v2323, 0.0
      %v2814 = vrot.slane %v2813, 4
      %v2815 = vadd.f32 %v2813, %v2814
      %v2816 = vrot.slane %v2815, 2
      %v2817 = vadd.f32 %v2815, %v2816
      %v2818 = vrot.slane %v2817, 1
      %v2819 = vadd.f32 %v2817, %v2818
      %v2820 = vsel %vm1749, %v2364, 0.0
      %v2821 = vrot.slane %v2820, 4
      %v2822 = vadd.f32 %v2820, %v2821
      %v2823 = vrot.slane %v2822, 2
      %v2824 = vadd.f32 %v2822, %v2823
      %v2825 = vrot.slane %v2824, 1
      %v2826 = vadd.f32 %v2824, %v2825
      %v2827 = vsel %vm1749, %v2388, 0.0
      %v2828 = vrot.slane %v2827, 4
      %v2829 = vadd.f32 %v2827, %v2828
      %v2830 = vrot.slane %v2829, 2
      %v2831 = vadd.f32 %v2829, %v2830
      %v2832 = vrot.slane %v2831, 1
      %v2833 = vadd.f32 %v2831, %v2832
      %v2834 = vsel %vm1749, %v2371, 0.0
      %v2835 = vrot.slane %v2834, 4
      %v2836 = vadd.f32 %v2834, %v2835
      %v2837 = vrot.slane %v2836, 2
      %v2838 = vadd.f32 %v2836, %v2837
      %v2839 = vrot.slane %v2838, 1
      %v2840 = vadd.f32 %v2838, %v2839
      %v2841 = vsel %vm1749, %v2389, 0.0
      %v2842 = vrot.slane %v2841, 4
      %v2843 = vadd.f32 %v2841, %v2842
      %v2844 = vrot.slane %v2843, 2
      %v2845 = vadd.f32 %v2843, %v2844
      %v2846 = vrot.slane %v2845, 1
      %v2847 = vadd.f32 %v2845, %v2846
      %v2848 = vsel %vm1749, %v2380, 0.0
      %v2849 = vrot.slane %v2848, 4
      %v2850 = vadd.f32 %v2848, %v2849
      %v2851 = vrot.slane %v2850, 2
      %v2852 = vadd.f32 %v2850, %v2851
      %v2853 = vrot.slane %v2852, 1
      %v2854 = vadd.f32 %v2852, %v2853
      %v2855 = vsel %vm1749, %v2390, 0.0
      %v2856 = vrot.slane %v2855, 4
      %v2857 = vadd.f32 %v2855, %v2856
      %v2858 = vrot.slane %v2857, 2
      %v2859 = vadd.f32 %v2857, %v2858
      %v2860 = vrot.slane %v2859, 1
      %v2861 = vadd.f32 %v2859, %v2860
      %v2862 = vsel %vm1749, %v2387, 0.0
      %v2863 = vrot.slane %v2862, 4
      %v2864 = vadd.f32 %v2862, %v2863
      %v2865 = vrot.slane %v2864, 2
      %v2866 = vadd.f32 %v2864, %v2865
      %v2867 = vrot.slane %v2866, 1
      %v2868 = vadd.f32 %v2866, %v2867
      %v2869 = vsel %vm1749, %v2391, 0.0
      %v2870 = vrot.slane %v2869, 4
      %v2871 = vadd.f32 %v2869, %v2870
      %v2872 = vrot.slane %v2871, 2
      %v2873 = vadd.f32 %v2871, %v2872
      %v2874 = vrot.slane %v2873, 1
      %v2875 = vadd.f32 %v2873, %v2874
      %v2876 = vsel %vm1749, %v2432, 0.0
      %v2877 = vrot.slane %v2876, 4
      %v2878 = vadd.f32 %v2876, %v2877
      %v2879 = vrot.slane %v2878, 2
      %v2880 = vadd.f32 %v2878, %v2879
      %v2881 = vrot.slane %v2880, 1
      %v2882 = vadd.f32 %v2880, %v2881
      %v2883 = vsel %vm1749, %v2456, 0.0
      %v2884 = vrot.slane %v2883, 4
      %v2885 = vadd.f32 %v2883, %v2884
      %v2886 = vrot.slane %v2885, 2
      %v2887 = vadd.f32 %v2885, %v2886
      %v2888 = vrot.slane %v2887, 1
      %v2889 = vadd.f32 %v2887, %v2888
      %v2890 = vsel %vm1749, %v2439, 0.0
      %v2891 = vrot.slane %v2890, 4
      %v2892 = vadd.f32 %v2890, %v2891
      %v2893 = vrot.slane %v2892, 2
      %v2894 = vadd.f32 %v2892, %v2893
      %v2895 = vrot.slane %v2894, 1
      %v2896 = vadd.f32 %v2894, %v2895
      %v2897 = vsel %vm1749, %v2457, 0.0
      %v2898 = vrot.slane %v2897, 4
      %v2899 = vadd.f32 %v2897, %v2898
      %v2900 = vrot.slane %v2899, 2
      %v2901 = vadd.f32 %v2899, %v2900
      %v2902 = vrot.slane %v2901, 1
      %v2903 = vadd.f32 %v2901, %v2902
      %v2904 = vsel %vm1749, %v2448, 0.0
      %v2905 = vrot.slane %v2904, 4
      %v2906 = vadd.f32 %v2904, %v2905
      %v2907 = vrot.slane %v2906, 2
      %v2908 = vadd.f32 %v2906, %v2907
      %v2909 = vrot.slane %v2908, 1
      %v2910 = vadd.f32 %v2908, %v2909
      %v2911 = vsel %vm1749, %v2458, 0.0
      %v2912 = vrot.slane %v2911, 4
      %v2913 = vadd.f32 %v2911, %v2912
      %v2914 = vrot.slane %v2913, 2
      %v2915 = vadd.f32 %v2913, %v2914
      %v2916 = vrot.slane %v2915, 1
      %v2917 = vadd.f32 %v2915, %v2916
      %v2918 = vsel %vm1749, %v2455, 0.0
      %v2919 = vrot.slane %v2918, 4
      %v2920 = vadd.f32 %v2918, %v2919
      %v2921 = vrot.slane %v2920, 2
      %v2922 = vadd.f32 %v2920, %v2921
      %v2923 = vrot.slane %v2922, 1
      %v2924 = vadd.f32 %v2922, %v2923
      %v2925 = vsel %vm1749, %v2459, 0.0
      %v2926 = vrot.slane %v2925, 4
      %v2927 = vadd.f32 %v2925, %v2926
      %v2928 = vrot.slane %v2927, 2
      %v2929 = vadd.f32 %v2927, %v2928
      %v2930 = vrot.slane %v2929, 1
      %v2931 = vadd.f32 %v2929, %v2930
      %v2932 = vsel %vm1749, %v2500, 0.0
      %v2933 = vrot.slane %v2932, 4
      %v2934 = vadd.f32 %v2932, %v2933
      %v2935 = vrot.slane %v2934, 2
      %v2936 = vadd.f32 %v2934, %v2935
      %v2937 = vrot.slane %v2936, 1
      %v2938 = vadd.f32 %v2936, %v2937
      %v2939 = vsel %vm1749, %v2524, 0.0
      %v2940 = vrot.slane %v2939, 4
      %v2941 = vadd.f32 %v2939, %v2940
      %v2942 = vrot.slane %v2941, 2
      %v2943 = vadd.f32 %v2941, %v2942
      %v2944 = vrot.slane %v2943, 1
      %v2945 = vadd.f32 %v2943, %v2944
      %v2946 = vsel %vm1749, %v2507, 0.0
      %v2947 = vrot.slane %v2946, 4
      %v2948 = vadd.f32 %v2946, %v2947
      %v2949 = vrot.slane %v2948, 2
      %v2950 = vadd.f32 %v2948, %v2949
      %v2951 = vrot.slane %v2950, 1
      %v2952 = vadd.f32 %v2950, %v2951
      %v2953 = vsel %vm1749, %v2525, 0.0
      %v2954 = vrot.slane %v2953, 4
      %v2955 = vadd.f32 %v2953, %v2954
      %v2956 = vrot.slane %v2955, 2
      %v2957 = vadd.f32 %v2955, %v2956
      %v2958 = vrot.slane %v2957, 1
      %v2959 = vadd.f32 %v2957, %v2958
      %v2960 = vsel %vm1749, %v2516, 0.0
      %v2961 = vrot.slane %v2960, 4
      %v2962 = vadd.f32 %v2960, %v2961
      %v2963 = vrot.slane %v2962, 2
      %v2964 = vadd.f32 %v2962, %v2963
      %v2965 = vrot.slane %v2964, 1
      %v2966 = vadd.f32 %v2964, %v2965
      %v2967 = vsel %vm1749, %v2526, 0.0
      %v2968 = vrot.slane %v2967, 4
      %v2969 = vadd.f32 %v2967, %v2968
      %v2970 = vrot.slane %v2969, 2
      %v2971 = vadd.f32 %v2969, %v2970
      %v2972 = vrot.slane %v2971, 1
      %v2973 = vadd.f32 %v2971, %v2972
      %v2974 = vsel %vm1749, %v2523, 0.0
      %v2975 = vrot.slane %v2974, 4
      %v2976 = vadd.f32 %v2974, %v2975
      %v2977 = vrot.slane %v2976, 2
      %v2978 = vadd.f32 %v2976, %v2977
      %v2979 = vrot.slane %v2978, 1
      %v2980 = vadd.f32 %v2978, %v2979
      %v2981 = vsel %vm1749, %v2527, 0.0
      %v2982 = vrot.slane %v2981, 4
      %v2983 = vadd.f32 %v2981, %v2982
      %v2984 = vrot.slane %v2983, 2
      %v2985 = vadd.f32 %v2983, %v2984
      %v2986 = vrot.slane %v2985, 1
      %v2987 = vadd.f32 %v2985, %v2986
      %v2988 = vsel %vm1749, %v2568, 0.0
      %v2989 = vrot.slane %v2988, 4
      %v2990 = vadd.f32 %v2988, %v2989
      %v2991 = vrot.slane %v2990, 2
      %v2992 = vadd.f32 %v2990, %v2991
      %v2993 = vrot.slane %v2992, 1
      %v2994 = vadd.f32 %v2992, %v2993
      %v2995 = vsel %vm1749, %v2592, 0.0
      %v2996 = vrot.slane %v2995, 4
      %v2997 = vadd.f32 %v2995, %v2996
      %v2998 = vrot.slane %v2997, 2
      %v2999 = vadd.f32 %v2997, %v2998
      %v3000 = vrot.slane %v2999, 1
      %v3001 = vadd.f32 %v2999, %v3000
      %v3002 = vsel %vm1749, %v2575, 0.0
      %v3003 = vrot.slane %v3002, 4
      %v3004 = vadd.f32 %v3002, %v3003
      %v3005 = vrot.slane %v3004, 2
      %v3006 = vadd.f32 %v3004, %v3005
      %v3007 = vrot.slane %v3006, 1
      %v3008 = vadd.f32 %v3006, %v3007
      %v3009 = vsel %vm1749, %v2593, 0.0
      %v3010 = vrot.slane %v3009, 4
      %v3011 = vadd.f32 %v3009, %v3010
      %v3012 = vrot.slane %v3011, 2
      %v3013 = vadd.f32 %v3011, %v3012
      %v3014 = vrot.slane %v3013, 1
      %v3015 = vadd.f32 %v3013, %v3014
      %v3016 = vsel %vm1749, %v2584, 0.0
      %v3017 = vrot.slane %v3016, 4
      %v3018 = vadd.f32 %v3016, %v3017
      %v3019 = vrot.slane %v3018, 2
      %v3020 = vadd.f32 %v3018, %v3019
      %v3021 = vrot.slane %v3020, 1
      %v3022 = vadd.f32 %v3020, %v3021
      %v3023 = vsel %vm1749, %v2594, 0.0
      %v3024 = vrot.slane %v3023, 4
      %v3025 = vadd.f32 %v3023, %v3024
      %v3026 = vrot.slane %v3025, 2
      %v3027 = vadd.f32 %v3025, %v3026
      %v3028 = vrot.slane %v3027, 1
      %v3029 = vadd.f32 %v3027, %v3028
      %v3030 = vsel %vm1749, %v2591, 0.0
      %v3031 = vrot.slane %v3030, 4
      %v3032 = vadd.f32 %v3030, %v3031
      %v3033 = vrot.slane %v3032, 2
      %v3034 = vadd.f32 %v3032, %v3033
      %v3035 = vrot.slane %v3034, 1
      %v3036 = vadd.f32 %v3034, %v3035
      %v3037 = vsel %vm1749, %v2595, 0.0
      %v3038 = vrot.slane %v3037, 4
      %v3039 = vadd.f32 %v3037, %v3038
      %v3040 = vrot.slane %v3039, 2
      %v3041 = vadd.f32 %v3039, %v3040
      %v3042 = vrot.slane %v3041, 1
      %v3043 = vadd.f32 %v3041, %v3042
      %v3044 = vpack.c.bf16 %v2602, %v2602
      %v3045 = vpack.c.bf16 %v2609, %v2609
      %v3046 = vpack.c.bf16 %v2616, %v2616
      %v3047 = vpack.c.bf16 %v2623, %v2623
      %v3048 = vpack.c.bf16 %v2630, %v2630
      %v3049 = vpack.c.bf16 %v2637, %v2637
      %v3050 = vpack.c.bf16 %v2644, %v2644
      %v3051 = vpack.c.bf16 %v2651, %v2651
      %v3052 = vpack.c.bf16 %v2658, %v2658
      %v3053 = vpack.c.bf16 %v2665, %v2665
      %v3054 = vpack.c.bf16 %v2672, %v2672
      %v3055 = vpack.c.bf16 %v2679, %v2679
      %v3056 = vpack.c.bf16 %v2686, %v2686
      %v3057 = vpack.c.bf16 %v2693, %v2693
      %v3058 = vpack.c.bf16 %v2700, %v2700
      %v3059 = vpack.c.bf16 %v2707, %v2707
      %v3060 = vpack.c.bf16 %v2714, %v2714
      %v3061 = vpack.c.bf16 %v2721, %v2721
      %v3062 = vpack.c.bf16 %v2728, %v2728
      %v3063 = vpack.c.bf16 %v2735, %v2735
      %v3064 = vpack.c.bf16 %v2742, %v2742
      %v3065 = vpack.c.bf16 %v2749, %v2749
      %v3066 = vpack.c.bf16 %v2756, %v2756
      %v3067 = vpack.c.bf16 %v2763, %v2763
      %v3068 = vpack.c.bf16 %v2770, %v2770
      %v3069 = vpack.c.bf16 %v2777, %v2777
      %v3070 = vpack.c.bf16 %v2784, %v2784
      %v3071 = vpack.c.bf16 %v2791, %v2791
      %v3072 = vpack.c.bf16 %v2798, %v2798
      %v3073 = vpack.c.bf16 %v2805, %v2805
      %v3074 = vpack.c.bf16 %v2812, %v2812
      %v3075 = vpack.c.bf16 %v2819, %v2819
      %v3076 = vpack.c.bf16 %v2826, %v2826
      %v3077 = vpack.c.bf16 %v2833, %v2833
      %v3078 = vpack.c.bf16 %v2840, %v2840
      %v3079 = vpack.c.bf16 %v2847, %v2847
      %v3080 = vpack.c.bf16 %v2854, %v2854
      %v3081 = vpack.c.bf16 %v2861, %v2861
      %v3082 = vpack.c.bf16 %v2868, %v2868
      %v3083 = vpack.c.bf16 %v2875, %v2875
      %v3084 = vpack.c.bf16 %v2882, %v2882
      %v3085 = vpack.c.bf16 %v2889, %v2889
      %v3086 = vpack.c.bf16 %v2896, %v2896
      %v3087 = vpack.c.bf16 %v2903, %v2903
      %v3088 = vpack.c.bf16 %v2910, %v2910
      %v3089 = vpack.c.bf16 %v2917, %v2917
      %v3090 = vpack.c.bf16 %v2924, %v2924
      %v3091 = vpack.c.bf16 %v2931, %v2931
      %v3092 = vpack.c.bf16 %v2938, %v2938
      %v3093 = vpack.c.bf16 %v2945, %v2945
      %v3094 = vpack.c.bf16 %v2952, %v2952
      %v3095 = vpack.c.bf16 %v2959, %v2959
      %v3096 = vpack.c.bf16 %v2966, %v2966
      %v3097 = vpack.c.bf16 %v2973, %v2973
      %v3098 = vpack.c.bf16 %v2980, %v2980
      %v3099 = vpack.c.bf16 %v2987, %v2987
      %v3100 = vpack.c.bf16 %v2994, %v2994
      %v3101 = vpack.c.bf16 %v3001, %v3001
      %v3102 = vpack.c.bf16 %v3008, %v3008
      %v3103 = vpack.c.bf16 %v3015, %v3015
      %v3104 = vpack.c.bf16 %v3022, %v3022
      %v3105 = vpack.c.bf16 %v3029, %v3029
      %v3106 = vpack.c.bf16 %v3036, %v3036
      %v3107 = vpack.c.bf16 %v3043, %v3043
      %v3172 = vunpack.c.l.b16 %v3044
      %v3173 = vunpack.c.l.b16 %v3045
      %v3174 = vunpack.c.l.b16 %v3046
      %v3175 = vunpack.c.l.b16 %v3047
      %v3176 = vunpack.c.l.b16 %v3048
      %v3177 = vunpack.c.l.b16 %v3049
      %v3178 = vunpack.c.l.b16 %v3050
      %v3179 = vunpack.c.l.b16 %v3051
      %v3180 = vunpack.c.l.b16 %v3052
      %v3181 = vunpack.c.l.b16 %v3053
      %v3182 = vunpack.c.l.b16 %v3054
      %v3183 = vunpack.c.l.b16 %v3055
      %v3184 = vunpack.c.l.b16 %v3056
      %v3185 = vunpack.c.l.b16 %v3057
      %v3186 = vunpack.c.l.b16 %v3058
      %v3187 = vunpack.c.l.b16 %v3059
      %v3188 = vunpack.c.l.b16 %v3060
      %v3189 = vunpack.c.l.b16 %v3061
      %v3190 = vunpack.c.l.b16 %v3062
      %v3191 = vunpack.c.l.b16 %v3063
      %v3192 = vunpack.c.l.b16 %v3064
      %v3193 = vunpack.c.l.b16 %v3065
      %v3194 = vunpack.c.l.b16 %v3066
      %v3195 = vunpack.c.l.b16 %v3067
      %v3196 = vunpack.c.l.b16 %v3068
      %v3197 = vunpack.c.l.b16 %v3069
      %v3198 = vunpack.c.l.b16 %v3070
      %v3199 = vunpack.c.l.b16 %v3071
      %v3200 = vunpack.c.l.b16 %v3072
      %v3201 = vunpack.c.l.b16 %v3073
      %v3202 = vunpack.c.l.b16 %v3074
      %v3203 = vunpack.c.l.b16 %v3075
      %v3204 = vunpack.c.l.b16 %v3076
      %v3205 = vunpack.c.l.b16 %v3077
      %v3206 = vunpack.c.l.b16 %v3078
      %v3207 = vunpack.c.l.b16 %v3079
      %v3208 = vunpack.c.l.b16 %v3080
      %v3209 = vunpack.c.l.b16 %v3081
      %v3210 = vunpack.c.l.b16 %v3082
      %v3211 = vunpack.c.l.b16 %v3083
      %v3212 = vunpack.c.l.b16 %v3084
      %v3213 = vunpack.c.l.b16 %v3085
      %v3214 = vunpack.c.l.b16 %v3086
      %v3215 = vunpack.c.l.b16 %v3087
      %v3216 = vunpack.c.l.b16 %v3088
      %v3217 = vunpack.c.l.b16 %v3089
      %v3218 = vunpack.c.l.b16 %v3090
      %v3219 = vunpack.c.l.b16 %v3091
      %v3220 = vunpack.c.l.b16 %v3092
      %v3221 = vunpack.c.l.b16 %v3093
      %v3222 = vunpack.c.l.b16 %v3094
      %v3223 = vunpack.c.l.b16 %v3095
      %v3224 = vunpack.c.l.b16 %v3096
      %v3225 = vunpack.c.l.b16 %v3097
      %v3226 = vunpack.c.l.b16 %v3098
      %v3227 = vunpack.c.l.b16 %v3099
      %v3228 = vunpack.c.l.b16 %v3100
      %v3229 = vunpack.c.l.b16 %v3101
      %v3230 = vunpack.c.l.b16 %v3102
      %v3231 = vunpack.c.l.b16 %v3103
      %v3232 = vunpack.c.l.b16 %v3104
      %v3233 = vunpack.c.l.b16 %v3105
      %v3234 = vunpack.c.l.b16 %v3106
      %v3235 = vunpack.c.l.b16 %v3107
      %vm3236 = vcmask 1044484
      %v3237 = vsel %vm3236, %v3173, %v3172
      %vm3238 = vcmask 1045509
      %v3239 = vsel %vm3238, %v3174, %v3237
      %vm3240 = vcmask 1046534
      %v3241 = vsel %vm3240, %v3175, %v3239
      %vm3242 = vcmask 1047559
      %v3243 = vsel %vm3242, %v3176, %v3241
      %vm3244 = vcmask 1041409
      %v3245 = vsel %vm3244, %v3178, %v3177
      %vm3246 = vcmask 1042434
      %v3247 = vsel %vm3246, %v3179, %v3245
      %v3248 = vsel %vm3236, %v3181, %v3180
      %v3249 = vsel %vm3238, %v3182, %v3248
      %v3250 = vsel %vm3240, %v3183, %v3249
      %v3251 = vsel %vm3242, %v3184, %v3250
      %v3252 = vsel %vm3244, %v3186, %v3185
      %v3253 = vsel %vm3246, %v3187, %v3252
      %v3254 = vsel %vm3236, %v3189, %v3188
      %v3255 = vsel %vm3238, %v3190, %v3254
      %v3256 = vsel %vm3240, %v3191, %v3255
      %v3257 = vsel %vm3242, %v3192, %v3256
      %v3258 = vsel %vm3244, %v3194, %v3193
      %v3259 = vsel %vm3246, %v3195, %v3258
      %v3260 = vsel %vm3236, %v3197, %v3196
      %v3261 = vsel %vm3238, %v3198, %v3260
      %v3262 = vsel %vm3240, %v3199, %v3261
      %v3263 = vsel %vm3242, %v3200, %v3262
      %v3264 = vsel %vm3244, %v3202, %v3201
      %v3265 = vsel %vm3246, %v3203, %v3264
      %v3266 = vsel %vm3236, %v3205, %v3204
      %v3267 = vsel %vm3238, %v3206, %v3266
      %v3268 = vsel %vm3240, %v3207, %v3267
      %v3269 = vsel %vm3242, %v3208, %v3268
      %v3270 = vsel %vm3244, %v3210, %v3209
      %v3271 = vsel %vm3246, %v3211, %v3270
      %v3272 = vsel %vm3236, %v3213, %v3212
      %v3273 = vsel %vm3238, %v3214, %v3272
      %v3274 = vsel %vm3240, %v3215, %v3273
      %v3275 = vsel %vm3242, %v3216, %v3274
      %v3276 = vsel %vm3244, %v3218, %v3217
      %v3277 = vsel %vm3246, %v3219, %v3276
      %v3278 = vsel %vm3236, %v3221, %v3220
      %v3279 = vsel %vm3238, %v3222, %v3278
      %v3280 = vsel %vm3240, %v3223, %v3279
      %v3281 = vsel %vm3242, %v3224, %v3280
      %v3282 = vsel %vm3244, %v3226, %v3225
      %v3283 = vsel %vm3246, %v3227, %v3282
      %v3284 = vsel %vm3236, %v3229, %v3228
      %v3285 = vsel %vm3238, %v3230, %v3284
      %v3286 = vsel %vm3240, %v3231, %v3285
      %v3287 = vsel %vm3242, %v3232, %v3286
      %v3288 = vsel %vm3244, %v3234, %v3233
      %v3289 = vsel %vm3246, %v3235, %v3288
      %v3290 = vpack.c.b16 %v3247, %v3243
      %v3291 = vpack.c.b16 %v3253, %v3251
      %v3292 = vpack.c.b16 %v3259, %v3257
      %v3293 = vpack.c.b16 %v3265, %v3263
      %v3294 = vpack.c.b16 %v3271, %v3269
      %v3295 = vpack.c.b16 %v3277, %v3275
      %v3296 = vpack.c.b16 %v3283, %v3281
      %v3297 = vpack.c.b16 %v3289, %v3287
      %v3306 = vsel %vm586, 0, %v3290
      %v3307 = vsel %vm586, 0, %v3291
      %v3308 = vsel %vm586, 0, %v3292
      %v3309 = vsel %vm586, 0, %v3293
      %v3310 = vsel %vm586, 0, %v3294
      %v3311 = vsel %vm586, 0, %v3295
      %v3312 = vsel %vm586, 0, %v3296
      %v3313 = vsel %vm586, 0, %v3297
      %v3314 = vsel %vm597, %v3306, 0
      %v3315 = vsel %vm597, %v3307, 0
      %v3316 = vsel %vm597, %v3308, 0
      %v3317 = vsel %vm597, %v3309, 0
      %v3318 = vsel %vm597, %v3310, 0
      %v3319 = vsel %vm597, %v3311, 0
      %v3320 = vsel %vm597, %v3312, 0
      %v3321 = vsel %vm597, %v3313, 0
      %v3323 = vshrl.u32 %v3314, 16
      %v3325 = vshll.u32 %v3314, 16
      %v3327 = vrot.slane %v3325, 1
      %v3328 = vor.u32 %v3323, %v3327
      %v3330 = vshrl.u32 %v3315, 16
      %v3332 = vshll.u32 %v3315, 16
      %v3334 = vrot.slane %v3332, 1
      %v3335 = vor.u32 %v3330, %v3334
      %v3337 = vshrl.u32 %v3316, 16
      %v3339 = vshll.u32 %v3316, 16
      %v3341 = vrot.slane %v3339, 1
      %v3342 = vor.u32 %v3337, %v3341
      %v3344 = vshrl.u32 %v3317, 16
      %v3346 = vshll.u32 %v3317, 16
      %v3348 = vrot.slane %v3346, 1
      %v3349 = vor.u32 %v3344, %v3348
      %v3351 = vshrl.u32 %v3318, 16
      %v3353 = vshll.u32 %v3318, 16
      %v3355 = vrot.slane %v3353, 1
      %v3356 = vor.u32 %v3351, %v3355
      %v3358 = vshrl.u32 %v3319, 16
      %v3360 = vshll.u32 %v3319, 16
      %v3362 = vrot.slane %v3360, 1
      %v3363 = vor.u32 %v3358, %v3362
      %v3365 = vshrl.u32 %v3320, 16
      %v3367 = vshll.u32 %v3320, 16
      %v3369 = vrot.slane %v3367, 1
      %v3370 = vor.u32 %v3365, %v3369
      %v3372 = vshrl.u32 %v3321, 16
      %v3374 = vshll.u32 %v3321, 16
      %v3376 = vrot.slane %v3374, 1
      %v3377 = vor.u32 %v3372, %v3376
      %3378 = vrot.lane.b32.xlu0 %v612, 8
      %v3379 = vpop.permute.xlu0 %3378
      %3380 = vrot.lane.b32.xlu0 %v3328, 8
      %v3381 = vpop.permute.xlu0 %3380
      %3382 = vrot.lane.b32.xlu0 %v3335, 8
      %v3383 = vpop.permute.xlu0 %3382
      %3384 = vrot.lane.b32.xlu0 %v3342, 8
      %v3385 = vpop.permute.xlu0 %3384
      %3386 = vrot.lane.b32.xlu0 %v3349, 8
      %v3387 = vpop.permute.xlu0 %3386
      %3388 = vrot.lane.b32.xlu0 %v3356, 8
      %v3389 = vpop.permute.xlu0 %3388
      %3390 = vrot.lane.b32.xlu0 %v3363, 8
      %v3391 = vpop.permute.xlu0 %3390
      %3392 = vrot.lane.b32.xlu0 %v3370, 8
      %v3393 = vpop.permute.xlu0 %3392
      %3394 = vrot.lane.b32.xlu0 %v3377, 8
      %v3395 = vpop.permute.xlu0 %3394
      %v3404 = vrot.slane %v3314, 1
      %v3405 = vrot.slane %v3315, 1
      %v3406 = vrot.slane %v3316, 1
      %v3407 = vrot.slane %v3317, 1
      %v3408 = vrot.slane %v3318, 1
      %v3409 = vrot.slane %v3319, 1
      %v3410 = vrot.slane %v3320, 1
      %v3411 = vrot.slane %v3321, 1
      %3412 = vrot.lane.b32.xlu0 %v696, 16
      %v3413 = vpop.permute.xlu0 %3412
      %3414 = vrot.lane.b32.xlu0 %v3404, 16
      %v3415 = vpop.permute.xlu0 %3414
      %3416 = vrot.lane.b32.xlu0 %v3405, 16
      %v3417 = vpop.permute.xlu0 %3416
      %3418 = vrot.lane.b32.xlu0 %v3406, 16
      %v3419 = vpop.permute.xlu0 %3418
      %3420 = vrot.lane.b32.xlu0 %v3407, 16
      %v3421 = vpop.permute.xlu0 %3420
      %3422 = vrot.lane.b32.xlu0 %v3408, 16
      %v3423 = vpop.permute.xlu0 %3422
      %3424 = vrot.lane.b32.xlu0 %v3409, 16
      %v3425 = vpop.permute.xlu0 %3424
      %3426 = vrot.lane.b32.xlu0 %v3410, 16
      %v3427 = vpop.permute.xlu0 %3426
      %3428 = vrot.lane.b32.xlu0 %v3411, 16
      %v3429 = vpop.permute.xlu0 %3428
      %v3430 = vrot.slane %v3323, 1
      %v3431 = vrot.slane %v3325, 2
      %v3432 = vor.u32 %v3430, %v3431
      %v3433 = vrot.slane %v3330, 1
      %v3434 = vrot.slane %v3332, 2
      %v3435 = vor.u32 %v3433, %v3434
      %v3436 = vrot.slane %v3337, 1
      %v3437 = vrot.slane %v3339, 2
      %v3438 = vor.u32 %v3436, %v3437
      %v3439 = vrot.slane %v3344, 1
      %v3440 = vrot.slane %v3346, 2
      %v3441 = vor.u32 %v3439, %v3440
      %v3442 = vrot.slane %v3351, 1
      %v3443 = vrot.slane %v3353, 2
      %v3444 = vor.u32 %v3442, %v3443
      %v3445 = vrot.slane %v3358, 1
      %v3446 = vrot.slane %v3360, 2
      %v3447 = vor.u32 %v3445, %v3446
      %v3448 = vrot.slane %v3365, 1
      %v3449 = vrot.slane %v3367, 2
      %v3450 = vor.u32 %v3448, %v3449
      %v3451 = vrot.slane %v3372, 1
      %v3452 = vrot.slane %v3374, 2
      %v3453 = vor.u32 %v3451, %v3452
      %3454 = vrot.lane.b32.xlu0 %v725, 24
      %v3455 = vpop.permute.xlu0 %3454
      %3456 = vrot.lane.b32.xlu0 %v3432, 24
      %v3457 = vpop.permute.xlu0 %3456
      %3458 = vrot.lane.b32.xlu0 %v3435, 24
      %v3459 = vpop.permute.xlu0 %3458
      %3460 = vrot.lane.b32.xlu0 %v3438, 24
      %v3461 = vpop.permute.xlu0 %3460
      %3462 = vrot.lane.b32.xlu0 %v3441, 24
      %v3463 = vpop.permute.xlu0 %3462
      %3464 = vrot.lane.b32.xlu0 %v3444, 24
      %v3465 = vpop.permute.xlu0 %3464
      %3466 = vrot.lane.b32.xlu0 %v3447, 24
      %v3467 = vpop.permute.xlu0 %3466
      %3468 = vrot.lane.b32.xlu0 %v3450, 24
      %v3469 = vpop.permute.xlu0 %3468
      %3470 = vrot.lane.b32.xlu0 %v3453, 24
      %v3471 = vpop.permute.xlu0 %3470
      %v3472 = vrot.slane %v3314, 2
      %v3473 = vrot.slane %v3315, 2
      %v3474 = vrot.slane %v3316, 2
      %v3475 = vrot.slane %v3317, 2
      %v3476 = vrot.slane %v3318, 2
      %v3477 = vrot.slane %v3319, 2
      %v3478 = vrot.slane %v3320, 2
      %v3479 = vrot.slane %v3321, 2
      %3480 = vrot.lane.b32.xlu0 %v768, 32
      %v3481 = vpop.permute.xlu0 %3480
      %3482 = vrot.lane.b32.xlu0 %v3472, 32
      %v3483 = vpop.permute.xlu0 %3482
      %3484 = vrot.lane.b32.xlu0 %v3473, 32
      %v3485 = vpop.permute.xlu0 %3484
      %3486 = vrot.lane.b32.xlu0 %v3474, 32
      %v3487 = vpop.permute.xlu0 %3486
      %3488 = vrot.lane.b32.xlu0 %v3475, 32
      %v3489 = vpop.permute.xlu0 %3488
      %3490 = vrot.lane.b32.xlu0 %v3476, 32
      %v3491 = vpop.permute.xlu0 %3490
      %3492 = vrot.lane.b32.xlu0 %v3477, 32
      %v3493 = vpop.permute.xlu0 %3492
      %3494 = vrot.lane.b32.xlu0 %v3478, 32
      %v3495 = vpop.permute.xlu0 %3494
      %3496 = vrot.lane.b32.xlu0 %v3479, 32
      %v3497 = vpop.permute.xlu0 %3496
      %v3498 = vrot.slane %v3323, 2
      %v3499 = vrot.slane %v3325, 3
      %v3500 = vor.u32 %v3498, %v3499
      %v3501 = vrot.slane %v3330, 2
      %v3502 = vrot.slane %v3332, 3
      %v3503 = vor.u32 %v3501, %v3502
      %v3504 = vrot.slane %v3337, 2
      %v3505 = vrot.slane %v3339, 3
      %v3506 = vor.u32 %v3504, %v3505
      %v3507 = vrot.slane %v3344, 2
      %v3508 = vrot.slane %v3346, 3
      %v3509 = vor.u32 %v3507, %v3508
      %v3510 = vrot.slane %v3351, 2
      %v3511 = vrot.slane %v3353, 3
      %v3512 = vor.u32 %v3510, %v3511
      %v3513 = vrot.slane %v3358, 2
      %v3514 = vrot.slane %v3360, 3
      %v3515 = vor.u32 %v3513, %v3514
      %v3516 = vrot.slane %v3365, 2
      %v3517 = vrot.slane %v3367, 3
      %v3518 = vor.u32 %v3516, %v3517
      %v3519 = vrot.slane %v3372, 2
      %v3520 = vrot.slane %v3374, 3
      %v3521 = vor.u32 %v3519, %v3520
      %3522 = vrot.lane.b32.xlu0 %v797, 40
      %v3523 = vpop.permute.xlu0 %3522
      %3524 = vrot.lane.b32.xlu0 %v3500, 40
      %v3525 = vpop.permute.xlu0 %3524
      %3526 = vrot.lane.b32.xlu0 %v3503, 40
      %v3527 = vpop.permute.xlu0 %3526
      %3528 = vrot.lane.b32.xlu0 %v3506, 40
      %v3529 = vpop.permute.xlu0 %3528
      %3530 = vrot.lane.b32.xlu0 %v3509, 40
      %v3531 = vpop.permute.xlu0 %3530
      %3532 = vrot.lane.b32.xlu0 %v3512, 40
      %v3533 = vpop.permute.xlu0 %3532
      %3534 = vrot.lane.b32.xlu0 %v3515, 40
      %v3535 = vpop.permute.xlu0 %3534
      %3536 = vrot.lane.b32.xlu0 %v3518, 40
      %v3537 = vpop.permute.xlu0 %3536
      %3538 = vrot.lane.b32.xlu0 %v3521, 40
      %v3539 = vpop.permute.xlu0 %3538
      %v3540 = vrot.slane %v3314, 3
      %v3541 = vrot.slane %v3315, 3
      %v3542 = vrot.slane %v3316, 3
      %v3543 = vrot.slane %v3317, 3
      %v3544 = vrot.slane %v3318, 3
      %v3545 = vrot.slane %v3319, 3
      %v3546 = vrot.slane %v3320, 3
      %v3547 = vrot.slane %v3321, 3
      %3548 = vrot.lane.b32.xlu0 %v840, 48
      %v3549 = vpop.permute.xlu0 %3548
      %3550 = vrot.lane.b32.xlu0 %v3540, 48
      %v3551 = vpop.permute.xlu0 %3550
      %3552 = vrot.lane.b32.xlu0 %v3541, 48
      %v3553 = vpop.permute.xlu0 %3552
      %3554 = vrot.lane.b32.xlu0 %v3542, 48
      %v3555 = vpop.permute.xlu0 %3554
      %3556 = vrot.lane.b32.xlu0 %v3543, 48
      %v3557 = vpop.permute.xlu0 %3556
      %3558 = vrot.lane.b32.xlu0 %v3544, 48
      %v3559 = vpop.permute.xlu0 %3558
      %3560 = vrot.lane.b32.xlu0 %v3545, 48
      %v3561 = vpop.permute.xlu0 %3560
      %3562 = vrot.lane.b32.xlu0 %v3546, 48
      %v3563 = vpop.permute.xlu0 %3562
      %3564 = vrot.lane.b32.xlu0 %v3547, 48
      %v3565 = vpop.permute.xlu0 %3564
      %v3567 = vsel %vm886, 0, %v3379
      %v3569 = vsel %vm886, %v3314, %v3381
      %v3571 = vsel %vm886, %v3315, %v3383
      %v3573 = vsel %vm886, %v3316, %v3385
      %v3575 = vsel %vm886, %v3317, %v3387
      %v3577 = vsel %vm886, %v3318, %v3389
      %v3579 = vsel %vm886, %v3319, %v3391
      %v3581 = vsel %vm886, %v3320, %v3393
      %v3583 = vsel %vm886, %v3321, %v3395
      %v3585 = vsel %vm924, %v3567, %v3413
      %v3587 = vsel %vm924, %v3569, %v3415
      %v3589 = vsel %vm924, %v3571, %v3417
      %v3591 = vsel %vm924, %v3573, %v3419
      %v3593 = vsel %vm924, %v3575, %v3421
      %v3595 = vsel %vm924, %v3577, %v3423
      %v3597 = vsel %vm924, %v3579, %v3425
      %v3599 = vsel %vm924, %v3581, %v3427
      %v3601 = vsel %vm924, %v3583, %v3429
      %v3603 = vsel %vm962, %v3585, %v3455
      %v3605 = vsel %vm962, %v3587, %v3457
      %v3607 = vsel %vm962, %v3589, %v3459
      %v3609 = vsel %vm962, %v3591, %v3461
      %v3611 = vsel %vm962, %v3593, %v3463
      %v3613 = vsel %vm962, %v3595, %v3465
      %v3615 = vsel %vm962, %v3597, %v3467
      %v3617 = vsel %vm962, %v3599, %v3469
      %v3619 = vsel %vm962, %v3601, %v3471
      %v3621 = vsel %vm1691, %v3603, %v3481
      %v3623 = vsel %vm1691, %v3605, %v3483
      %v3625 = vsel %vm1691, %v3607, %v3485
      %v3627 = vsel %vm1691, %v3609, %v3487
      %v3629 = vsel %vm1691, %v3611, %v3489
      %v3631 = vsel %vm1691, %v3613, %v3491
      %v3633 = vsel %vm1691, %v3615, %v3493
      %v3635 = vsel %vm1691, %v3617, %v3495
      %v3637 = vsel %vm1691, %v3619, %v3497
      %vm3638 = vcmask 326656
      %v3640 = vsel %vm3638, %v3621, %v3523
      %v3642 = vsel %vm3638, %v3623, %v3525
      %v3644 = vsel %vm3638, %v3625, %v3527
      %v3646 = vsel %vm3638, %v3627, %v3529
      %v3648 = vsel %vm3638, %v3629, %v3531
      %v3650 = vsel %vm3638, %v3631, %v3533
      %v3652 = vsel %vm3638, %v3633, %v3535
      %v3654 = vsel %vm3638, %v3635, %v3537
      %v3656 = vsel %vm3638, %v3637, %v3539
      %vm3657 = vcmask 392192
      %v3659 = vsel %vm3657, %v3640, %v3549
      %v3661 = vsel %vm3657, %v3642, %v3551
      %v3663 = vsel %vm3657, %v3644, %v3553
      %v3665 = vsel %vm3657, %v3646, %v3555
      %v3667 = vsel %vm3657, %v3648, %v3557
      %v3669 = vsel %vm3657, %v3650, %v3559
      %v3671 = vsel %vm3657, %v3652, %v3561
      %v3673 = vsel %vm3657, %v3654, %v3563
      %v3675 = vsel %vm3657, %v3656, %v3565
      %v3676 = vld [vmem:[%s7] sm:$0xf]
      %v3677 = vld [vmem:[%s7 + $0x4] sm:$0xf]
      %v3678 = vld [vmem:[%s7 + $0x8] sm:$0xf]
      %v3679 = vld [vmem:[%s7 + $0xc] sm:$0xf]
      %v3680 = vld [vmem:[%s7 + $0x10] sm:$0xf]
      %v3681 = vld [vmem:[%s7 + $0x14] sm:$0xf]
      %v3682 = vld [vmem:[%s7 + $0x18] sm:$0xf]
      %s3683 = scalar_lea.vmem %s7, 28
      %v3684 = vld [vmem:[%s3683] sm:$0xf]
      %v3685 = vld [vmem:[%s3683 + $0x4] sm:$0xf]
      %v3686 = vld [vmem:[%s3683 + $0x8] sm:$0xf]
      %v3687 = vld [vmem:[%s3683 + $0xc] sm:$0xf]
      %v3688 = vld [vmem:[%s3683 + $0x10] sm:$0xf]
      %v3689 = vld [vmem:[%s3683 + $0x14] sm:$0xf]
      %v3690 = vld [vmem:[%s3683 + $0x18] sm:$0xf]
      %v3698 = vunpack.c.l.b16 %v3659
      %v3699 = vunpack.c.l.b16 %v3661
      %v3700 = vunpack.c.l.b16 %v3663
      %v3701 = vunpack.c.l.b16 %v3665
      %v3702 = vunpack.c.l.b16 %v3667
      %v3703 = vunpack.c.l.b16 %v3669
      %v3704 = vunpack.c.l.b16 %v3671
      %v3705 = vpack.c.b16 %v3698, %v3698
      %v3706 = vpack.c.b16 %v3700, %v3699
      %v3707 = vpack.c.b16 %v3702, %v3701
      %v3708 = vpack.c.b16 %v3704, %v3703
      %v3716 = vunpack.c.l.b16 %v3684
      %v3717 = vunpack.c.l.b16 %v3685
      %v3718 = vunpack.c.l.b16 %v3686
      %v3719 = vunpack.c.l.b16 %v3687
      %v3720 = vunpack.c.l.b16 %v3688
      %v3721 = vunpack.c.l.b16 %v3689
      %v3722 = vunpack.c.l.b16 %v3690
      %v3723 = vpack.c.b16 %v3717, %v3716
      %v3724 = vpack.c.b16 %v3719, %v3718
      %v3725 = vpack.c.b16 %v3721, %v3720
      %v3726 = vpack.c.b16 %v3722, %v3722
      %vm3730 = vcmask 457728
      %v3732 = vsel %vm3730, %v3705, 0
      %v3735 = vsel %vm3730, %v3706, 0
      %v3738 = vsel %vm3730, %v3707, 0
      %v3741 = vsel %vm3730, %v3708, 0
      %v3744 = vsel %vm1763, %v3726, 0
      %3746 = vmatprep.subr.bf16.mxu0 0
      %3747 = vmatpush1.bf16.msra.mxu0 0
      %3748 = vmatprep.subr.bf16.mxu0 0
      %3749 = vmatpush1.bf16.msra.mxu0 0
      %3750 = vmatprep.subr.bf16.mxu0 0
      %3751 = vmatpush1.bf16.msra.mxu0 0
      %3752 = vmatprep.subr.bf16.mxu0 0
      %3753 = vmatpush1.bf16.msra.mxu0 0
      %3754 = vmatprep.subr.bf16.mxu0 0
      %3755 = vmatpush1.bf16.msra.mxu0 %v3744
      %3756 = vmatprep.subr.bf16.mxu0 0
      %3757 = vmatpush1.bf16.msra.mxu0 %v3725
      %3758 = vmatprep.subr.bf16.mxu0 0
      %3759 = vmatpush1.bf16.msra.mxu0 %v3724
      %3760 = vmatprep.subr.bf16.mxu0 0
      %3761 = vmatpush1.bf16.msra.mxu0 %v3723
      %3762 = vmatprep.subr.bf16.mxu0 0
      %3763 = vmatpush2.bf16.msra.mxu0 0
      %3764 = vmatprep.subr.bf16.mxu0 0
      %3765 = vmatpush2.bf16.msra.mxu0 0
      %3766 = vmatprep.subr.bf16.mxu0 0
      %3767 = vmatpush2.bf16.msra.mxu0 0
      %3768 = vmatprep.subr.bf16.mxu0 0
      %3769 = vmatpush2.bf16.msra.mxu0 0
      %3770 = vmatprep.subr.bf16.mxu0 0
      %3771 = vmatpush2.bf16.msra.mxu0 0
      %3772 = vmatprep.subr.bf16.mxu0 0
      %3773 = vmatpush2.bf16.msra.mxu0 0
      %3774 = vmatprep.subr.bf16.mxu0 0
      %3775 = vmatpush2.bf16.msra.mxu0 0
      %3776 = vmatprep.subr.bf16.mxu0 0
      %3777 = vmatpush2.bf16.msra.mxu0 0
      %3778 = vmatprep.mubr.bf16.mxu0 0
      %3779 = vmatmul.mubr.bf16.gmra.mxu0 %v3732
      %v3780 = vpop.f32.mrf.mxu0
      %v3781 = vadd.f32 0.0, %v3780
      %v3782 = vpop.f32.mrf.mxu0
      %v3783 = vpop.f32.mrf.mxu0
      %v3784 = vadd.f32 0.0, %v3783
      %v3785 = vpop.f32.mrf.mxu0
      %3786 = vmatprep.mubr.bf16.mxu0 0
      %3787 = vmatmul.mubr.bf16.gmra.mxu0 %v3735
      %v3788 = vpop.f32.mrf.mxu0
      %v3789 = vadd.f32 0.0, %v3788
      %v3790 = vpop.f32.mrf.mxu0
      %v3791 = vpop.f32.mrf.mxu0
      %v3792 = vadd.f32 0.0, %v3791
      %v3793 = vpop.f32.mrf.mxu0
      %3794 = vmatprep.mubr.bf16.mxu0 0
      %3795 = vmatmul.mubr.bf16.gmra.mxu0 %v3738
      %v3796 = vpop.f32.mrf.mxu0
      %v3797 = vadd.f32 0.0, %v3796
      %v3798 = vpop.f32.mrf.mxu0
      %v3799 = vpop.f32.mrf.mxu0
      %v3800 = vadd.f32 0.0, %v3799
      %v3801 = vpop.f32.mrf.mxu0
      %3802 = vmatprep.mubr.bf16.mxu0 0
      %3803 = vmatmul.mubr.bf16.gmra.mxu0 %v3741
      %v3804 = vpop.f32.mrf.mxu0
      %v3805 = vadd.f32 0.0, %v3804
      %v3806 = vpop.f32.mrf.mxu0
      %v3807 = vpop.f32.mrf.mxu0
      %v3808 = vadd.f32 0.0, %v3807
      %v3809 = vpop.f32.mrf.mxu0
      %3810 = vdwg.mxu0
      %v3811 = vpack.c.b16 %v3699, %v3698
      %v3812 = vpack.c.b16 %v3701, %v3700
      %v3813 = vpack.c.b16 %v3703, %v3702
      %v3821 = vunpack.c.l.b16 %v3676
      %v3822 = vunpack.c.l.b16 %v3677
      %v3823 = vunpack.c.l.b16 %v3678
      %v3824 = vunpack.c.l.b16 %v3679
      %v3825 = vunpack.c.l.b16 %v3680
      %v3826 = vunpack.c.l.b16 %v3681
      %v3827 = vunpack.c.l.b16 %v3682
      %v3828 = vpack.c.b16 %v3822, %v3821
      %v3829 = vpack.c.b16 %v3824, %v3823
      %v3830 = vpack.c.b16 %v3826, %v3825
      %v3831 = vpack.c.b16 %v3827, %v3827
      %v3836 = vsel %vm3730, %v3811, 0
      %v3839 = vsel %vm3730, %v3812, 0
      %v3842 = vsel %vm3730, %v3813, 0
      %v3845 = vsel %vm1763, %v3831, 0
      %3847 = vmatprep.subr.bf16.mxu0 0
      %3848 = vmatpush1.bf16.msra.mxu0 0
      %3849 = vmatprep.subr.bf16.mxu0 0
      %3850 = vmatpush1.bf16.msra.mxu0 0
      %3851 = vmatprep.subr.bf16.mxu0 0
      %3852 = vmatpush1.bf16.msra.mxu0 0
      %3853 = vmatprep.subr.bf16.mxu0 0
      %3854 = vmatpush1.bf16.msra.mxu0 0
      %3855 = vmatprep.subr.bf16.mxu0 0
      %3856 = vmatpush1.bf16.msra.mxu0 %v3845
      %3857 = vmatprep.subr.bf16.mxu0 0
      %3858 = vmatpush1.bf16.msra.mxu0 %v3830
      %3859 = vmatprep.subr.bf16.mxu0 0
      %3860 = vmatpush1.bf16.msra.mxu0 %v3829
      %3861 = vmatprep.subr.bf16.mxu0 0
      %3862 = vmatpush1.bf16.msra.mxu0 %v3828
      %3863 = vmatprep.subr.bf16.mxu0 0
      %3864 = vmatpush2.bf16.msra.mxu0 0
      %3865 = vmatprep.subr.bf16.mxu0 0
      %3866 = vmatpush2.bf16.msra.mxu0 0
      %3867 = vmatprep.subr.bf16.mxu0 0
      %3868 = vmatpush2.bf16.msra.mxu0 0
      %3869 = vmatprep.subr.bf16.mxu0 0
      %3870 = vmatpush2.bf16.msra.mxu0 0
      %3871 = vmatprep.subr.bf16.mxu0 0
      %3872 = vmatpush2.bf16.msra.mxu0 0
      %3873 = vmatprep.subr.bf16.mxu0 0
      %3874 = vmatpush2.bf16.msra.mxu0 0
      %3875 = vmatprep.subr.bf16.mxu0 0
      %3876 = vmatpush2.bf16.msra.mxu0 0
      %3877 = vmatprep.subr.bf16.mxu0 0
      %3878 = vmatpush2.bf16.msra.mxu0 0
      %3879 = vmatprep.mubr.bf16.mxu0 0
      %3880 = vmatmul.mubr.bf16.gmra.mxu0 %v3732
      %v3881 = vpop.f32.mrf.mxu0
      %v3882 = vadd.f32 %v3781, %v3881
      %v3883 = vpop.f32.mrf.mxu0
      %v3884 = vpop.f32.mrf.mxu0
      %v3885 = vadd.f32 %v3784, %v3884
      %v3886 = vpop.f32.mrf.mxu0
      %3887 = vmatprep.mubr.bf16.mxu0 0
      %3888 = vmatmul.mubr.bf16.gmra.mxu0 %v3836
      %v3889 = vpop.f32.mrf.mxu0
      %v3890 = vadd.f32 %v3789, %v3889
      %v3891 = vpop.f32.mrf.mxu0
      %v3892 = vpop.f32.mrf.mxu0
      %v3893 = vadd.f32 %v3792, %v3892
      %v3894 = vpop.f32.mrf.mxu0
      %3895 = vmatprep.mubr.bf16.mxu0 0
      %3896 = vmatmul.mubr.bf16.gmra.mxu0 %v3839
      %v3897 = vpop.f32.mrf.mxu0
      %v3898 = vadd.f32 %v3797, %v3897
      %v3899 = vpop.f32.mrf.mxu0
      %v3900 = vpop.f32.mrf.mxu0
      %v3901 = vadd.f32 %v3800, %v3900
      %v3902 = vpop.f32.mrf.mxu0
      %3903 = vmatprep.mubr.bf16.mxu0 0
      %3904 = vmatmul.mubr.bf16.gmra.mxu0 %v3842
      %v3905 = vpop.f32.mrf.mxu0
      %v3906 = vadd.f32 %v3805, %v3905
      %v3907 = vpop.f32.mrf.mxu0
      %v3908 = vpop.f32.mrf.mxu0
      %v3909 = vadd.f32 %v3808, %v3908
      %v3910 = vpop.f32.mrf.mxu0
      %3911 = vdwg.mxu0
      %s3912 = scalar_lea.vmem %s7, 56
      %v3913 = vld [vmem:[%s3912] sm:$0xf]
      %v3914 = vld [vmem:[%s3912 + $0x4] sm:$0xf]
      %v3915 = vld [vmem:[%s3912 + $0x8] sm:$0xf]
      %v3916 = vld [vmem:[%s3912 + $0xc] sm:$0xf]
      %v3917 = vld [vmem:[%s3912 + $0x10] sm:$0xf]
      %v3918 = vld [vmem:[%s3912 + $0x14] sm:$0xf]
      %v3919 = vld [vmem:[%s3912 + $0x18] sm:$0xf]
      %v3921 = vunpack.c.l.b16 %v3673
      %v3922 = vpack.c.b16 %v3921, %v3704
      %v3930 = vunpack.c.l.b16 %v3913
      %v3931 = vunpack.c.l.b16 %v3914
      %v3932 = vunpack.c.l.b16 %v3915
      %v3933 = vunpack.c.l.b16 %v3916
      %v3934 = vunpack.c.l.b16 %v3917
      %v3935 = vunpack.c.l.b16 %v3918
      %v3936 = vunpack.c.l.b16 %v3919
      %v3937 = vpack.c.b16 %v3931, %v3930
      %v3938 = vpack.c.b16 %v3933, %v3932
      %v3939 = vpack.c.b16 %v3935, %v3934
      %v3940 = vpack.c.b16 %v3936, %v3936
      %v3945 = vsel %vm3730, %v3922, 0
      %v3948 = vsel %vm1763, %v3940, 0
      %3950 = vmatprep.subr.bf16.mxu0 0
      %3951 = vmatpush1.bf16.msra.mxu0 0
      %3952 = vmatprep.subr.bf16.mxu0 0
      %3953 = vmatpush1.bf16.msra.mxu0 0
      %3954 = vmatprep.subr.bf16.mxu0 0
      %3955 = vmatpush1.bf16.msra.mxu0 0
      %3956 = vmatprep.subr.bf16.mxu0 0
      %3957 = vmatpush1.bf16.msra.mxu0 0
      %3958 = vmatprep.subr.bf16.mxu0 0
      %3959 = vmatpush1.bf16.msra.mxu0 %v3948
      %3960 = vmatprep.subr.bf16.mxu0 0
      %3961 = vmatpush1.bf16.msra.mxu0 %v3939
      %3962 = vmatprep.subr.bf16.mxu0 0
      %3963 = vmatpush1.bf16.msra.mxu0 %v3938
      %3964 = vmatprep.subr.bf16.mxu0 0
      %3965 = vmatpush1.bf16.msra.mxu0 %v3937
      %3966 = vmatprep.subr.bf16.mxu0 0
      %3967 = vmatpush2.bf16.msra.mxu0 0
      %3968 = vmatprep.subr.bf16.mxu0 0
      %3969 = vmatpush2.bf16.msra.mxu0 0
      %3970 = vmatprep.subr.bf16.mxu0 0
      %3971 = vmatpush2.bf16.msra.mxu0 0
      %3972 = vmatprep.subr.bf16.mxu0 0
      %3973 = vmatpush2.bf16.msra.mxu0 0
      %3974 = vmatprep.subr.bf16.mxu0 0
      %3975 = vmatpush2.bf16.msra.mxu0 0
      %3976 = vmatprep.subr.bf16.mxu0 0
      %3977 = vmatpush2.bf16.msra.mxu0 0
      %3978 = vmatprep.subr.bf16.mxu0 0
      %3979 = vmatpush2.bf16.msra.mxu0 0
      %3980 = vmatprep.subr.bf16.mxu0 0
      %3981 = vmatpush2.bf16.msra.mxu0 0
      %3982 = vmatprep.mubr.bf16.mxu0 0
      %3983 = vmatmul.mubr.bf16.gmra.mxu0 %v3836
      %v3984 = vpop.f32.mrf.mxu0
      %v3985 = vadd.f32 0.0, %v3984
      %v3986 = vpop.f32.mrf.mxu0
      %v3987 = vpop.f32.mrf.mxu0
      %v3988 = vadd.f32 0.0, %v3987
      %v3989 = vpop.f32.mrf.mxu0
      %3990 = vmatprep.mubr.bf16.mxu0 0
      %3991 = vmatmul.mubr.bf16.gmra.mxu0 %v3839
      %v3992 = vpop.f32.mrf.mxu0
      %v3993 = vadd.f32 0.0, %v3992
      %v3994 = vpop.f32.mrf.mxu0
      %v3995 = vpop.f32.mrf.mxu0
      %v3996 = vadd.f32 0.0, %v3995
      %v3997 = vpop.f32.mrf.mxu0
      %3998 = vmatprep.mubr.bf16.mxu0 0
      %3999 = vmatmul.mubr.bf16.gmra.mxu0 %v3842
      %v4000 = vpop.f32.mrf.mxu0
      %v4001 = vadd.f32 0.0, %v4000
      %v4002 = vpop.f32.mrf.mxu0
      %v4003 = vpop.f32.mrf.mxu0
      %v4004 = vadd.f32 0.0, %v4003
      %v4005 = vpop.f32.mrf.mxu0
      %4006 = vmatprep.mubr.bf16.mxu0 0
      %4007 = vmatmul.mubr.bf16.gmra.mxu0 %v3945
      %v4008 = vpop.f32.mrf.mxu0
      %v4009 = vadd.f32 0.0, %v4008
      %v4010 = vpop.f32.mrf.mxu0
      %v4011 = vpop.f32.mrf.mxu0
      %v4012 = vadd.f32 0.0, %v4011
      %v4013 = vpop.f32.mrf.mxu0
      %4014 = vdwg.mxu0
      %v4015 = vadd.f32 %v3882, %v3985
      %v4016 = vadd.f32 %v3885, %v3988
      %v4017 = vadd.f32 %v3890, %v3993
      %v4018 = vadd.f32 %v3893, %v3996
      %v4019 = vadd.f32 %v3898, %v4001
      %v4020 = vadd.f32 %v3901, %v4004
      %v4021 = vadd.f32 %v3906, %v4009
      %v4022 = vadd.f32 %v3909, %v4012
      %s4023 = scalar_lea.vmem %s7, 84
      %v4024 = vld [vmem:[%s4023] sm:$0xf]
      %v4025 = vld [vmem:[%s4023 + $0x4] sm:$0xf]
      %v4026 = vld [vmem:[%s4023 + $0x8] sm:$0xf]
      %v4027 = vld [vmem:[%s4023 + $0xc] sm:$0xf]
      %v4028 = vld [vmem:[%s4023 + $0x10] sm:$0xf]
      %v4029 = vld [vmem:[%s4023 + $0x14] sm:$0xf]
      %v4030 = vld [vmem:[%s4023 + $0x18] sm:$0xf]
      %v4032 = vunpack.c.l.b16 %v3675
      %v4033 = vpack.c.b16 %v4032, %v3921
      %v4041 = vunpack.c.l.b16 %v4024
      %v4042 = vunpack.c.l.b16 %v4025
      %v4043 = vunpack.c.l.b16 %v4026
      %v4044 = vunpack.c.l.b16 %v4027
      %v4045 = vunpack.c.l.b16 %v4028
      %v4046 = vunpack.c.l.b16 %v4029
      %v4047 = vunpack.c.l.b16 %v4030
      %v4048 = vpack.c.b16 %v4042, %v4041
      %v4049 = vpack.c.b16 %v4044, %v4043
      %v4050 = vpack.c.b16 %v4046, %v4045
      %v4051 = vpack.c.b16 %v4047, %v4047
      %v4056 = vsel %vm3730, %v4033, 0
      %v4059 = vsel %vm1763, %v4051, 0
      %4061 = vmatprep.subr.bf16.mxu0 0
      %4062 = vmatpush1.bf16.msra.mxu0 0
      %4063 = vmatprep.subr.bf16.mxu0 0
      %4064 = vmatpush1.bf16.msra.mxu0 0
      %4065 = vmatprep.subr.bf16.mxu0 0
      %4066 = vmatpush1.bf16.msra.mxu0 0
      %4067 = vmatprep.subr.bf16.mxu0 0
      %4068 = vmatpush1.bf16.msra.mxu0 0
      %4069 = vmatprep.subr.bf16.mxu0 0
      %4070 = vmatpush1.bf16.msra.mxu0 %v4059
      %4071 = vmatprep.subr.bf16.mxu0 0
      %4072 = vmatpush1.bf16.msra.mxu0 %v4050
      %4073 = vmatprep.subr.bf16.mxu0 0
      %4074 = vmatpush1.bf16.msra.mxu0 %v4049
      %4075 = vmatprep.subr.bf16.mxu0 0
      %4076 = vmatpush1.bf16.msra.mxu0 %v4048
      %4077 = vmatprep.subr.bf16.mxu0 0
      %4078 = vmatpush2.bf16.msra.mxu0 0
      %4079 = vmatprep.subr.bf16.mxu0 0
      %4080 = vmatpush2.bf16.msra.mxu0 0
      %4081 = vmatprep.subr.bf16.mxu0 0
      %4082 = vmatpush2.bf16.msra.mxu0 0
      %4083 = vmatprep.subr.bf16.mxu0 0
      %4084 = vmatpush2.bf16.msra.mxu0 0
      %4085 = vmatprep.subr.bf16.mxu0 0
      %4086 = vmatpush2.bf16.msra.mxu0 0
      %4087 = vmatprep.subr.bf16.mxu0 0
      %4088 = vmatpush2.bf16.msra.mxu0 0
      %4089 = vmatprep.subr.bf16.mxu0 0
      %4090 = vmatpush2.bf16.msra.mxu0 0
      %4091 = vmatprep.subr.bf16.mxu0 0
      %4092 = vmatpush2.bf16.msra.mxu0 0
      %4093 = vmatprep.mubr.bf16.mxu0 0
      %4094 = vmatmul.mubr.bf16.gmra.mxu0 %v3735
      %v4095 = vpop.f32.mrf.mxu0
      %v4096 = vadd.f32 0.0, %v4095
      %v4097 = vpop.f32.mrf.mxu0
      %v4098 = vpop.f32.mrf.mxu0
      %v4099 = vadd.f32 0.0, %v4098
      %v4100 = vpop.f32.mrf.mxu0
      %4101 = vmatprep.mubr.bf16.mxu0 0
      %4102 = vmatmul.mubr.bf16.gmra.mxu0 %v3738
      %v4103 = vpop.f32.mrf.mxu0
      %v4104 = vadd.f32 0.0, %v4103
      %v4105 = vpop.f32.mrf.mxu0
      %v4106 = vpop.f32.mrf.mxu0
      %v4107 = vadd.f32 0.0, %v4106
      %v4108 = vpop.f32.mrf.mxu0
      %4109 = vmatprep.mubr.bf16.mxu0 0
      %4110 = vmatmul.mubr.bf16.gmra.mxu0 %v3741
      %v4111 = vpop.f32.mrf.mxu0
      %v4112 = vadd.f32 0.0, %v4111
      %v4113 = vpop.f32.mrf.mxu0
      %v4114 = vpop.f32.mrf.mxu0
      %v4115 = vadd.f32 0.0, %v4114
      %v4116 = vpop.f32.mrf.mxu0
      %4117 = vmatprep.mubr.bf16.mxu0 0
      %4118 = vmatmul.mubr.bf16.gmra.mxu0 %v4056
      %v4119 = vpop.f32.mrf.mxu0
      %v4120 = vadd.f32 0.0, %v4119
      %v4121 = vpop.f32.mrf.mxu0
      %v4122 = vpop.f32.mrf.mxu0
      %v4123 = vadd.f32 0.0, %v4122
      %v4124 = vpop.f32.mrf.mxu0
      %4125 = vdwg.mxu0
      %v4126 = vadd.f32 %v4015, %v4096
      %v4127 = vadd.f32 %v4016, %v4099
      %v4128 = vadd.f32 %v4017, %v4104
      %v4129 = vadd.f32 %v4018, %v4107
      %v4130 = vadd.f32 %v4019, %v4112
      %v4131 = vadd.f32 %v4020, %v4115
      %v4132 = vadd.f32 %v4021, %v4120
      %v4133 = vadd.f32 %v4022, %v4123
      %s4134 = scalar_lea.vmem %s7, 112
      %v4135 = vld [vmem:[%s4134] sm:$0xf]
      %v4136 = vld [vmem:[%s4134 + $0x4] sm:$0xf]
      %v4137 = vld [vmem:[%s4134 + $0x8] sm:$0xf]
      %v4138 = vld [vmem:[%s4134 + $0xc] sm:$0xf]
      %v4139 = vld [vmem:[%s4134 + $0x10] sm:$0xf]
      %v4140 = vld [vmem:[%s4134 + $0x14] sm:$0xf]
      %v4141 = vld [vmem:[%s4134 + $0x18] sm:$0xf]
      %v4142 = vpack.c.b16 %v3698, %v4032
      %v4150 = vunpack.c.l.b16 %v4135
      %v4151 = vunpack.c.l.b16 %v4136
      %v4152 = vunpack.c.l.b16 %v4137
      %v4153 = vunpack.c.l.b16 %v4138
      %v4154 = vunpack.c.l.b16 %v4139
      %v4155 = vunpack.c.l.b16 %v4140
      %v4156 = vunpack.c.l.b16 %v4141
      %v4157 = vpack.c.b16 %v4151, %v4150
      %v4158 = vpack.c.b16 %v4153, %v4152
      %v4159 = vpack.c.b16 %v4155, %v4154
      %v4160 = vpack.c.b16 %v4156, %v4156
      %v4165 = vsel %vm3730, %v4142, 0
      %v4168 = vsel %vm1763, %v4160, 0
      %4170 = vmatprep.subr.bf16.mxu0 0
      %4171 = vmatpush1.bf16.msra.mxu0 0
      %4172 = vmatprep.subr.bf16.mxu0 0
      %4173 = vmatpush1.bf16.msra.mxu0 0
      %4174 = vmatprep.subr.bf16.mxu0 0
      %4175 = vmatpush1.bf16.msra.mxu0 0
      %4176 = vmatprep.subr.bf16.mxu0 0
      %4177 = vmatpush1.bf16.msra.mxu0 0
      %4178 = vmatprep.subr.bf16.mxu0 0
      %4179 = vmatpush1.bf16.msra.mxu0 %v4168
      %4180 = vmatprep.subr.bf16.mxu0 0
      %4181 = vmatpush1.bf16.msra.mxu0 %v4159
      %4182 = vmatprep.subr.bf16.mxu0 0
      %4183 = vmatpush1.bf16.msra.mxu0 %v4158
      %4184 = vmatprep.subr.bf16.mxu0 0
      %4185 = vmatpush1.bf16.msra.mxu0 %v4157
      %4186 = vmatprep.subr.bf16.mxu0 0
      %4187 = vmatpush2.bf16.msra.mxu0 0
      %4188 = vmatprep.subr.bf16.mxu0 0
      %4189 = vmatpush2.bf16.msra.mxu0 0
      %4190 = vmatprep.subr.bf16.mxu0 0
      %4191 = vmatpush2.bf16.msra.mxu0 0
      %4192 = vmatprep.subr.bf16.mxu0 0
      %4193 = vmatpush2.bf16.msra.mxu0 0
      %4194 = vmatprep.subr.bf16.mxu0 0
      %4195 = vmatpush2.bf16.msra.mxu0 0
      %4196 = vmatprep.subr.bf16.mxu0 0
      %4197 = vmatpush2.bf16.msra.mxu0 0
      %4198 = vmatprep.subr.bf16.mxu0 0
      %4199 = vmatpush2.bf16.msra.mxu0 0
      %4200 = vmatprep.subr.bf16.mxu0 0
      %4201 = vmatpush2.bf16.msra.mxu0 0
      %4202 = vmatprep.mubr.bf16.mxu0 0
      %4203 = vmatmul.mubr.bf16.gmra.mxu0 %v3839
      %v4204 = vpop.f32.mrf.mxu0
      %v4205 = vadd.f32 0.0, %v4204
      %v4206 = vpop.f32.mrf.mxu0
      %v4207 = vpop.f32.mrf.mxu0
      %v4208 = vadd.f32 0.0, %v4207
      %v4209 = vpop.f32.mrf.mxu0
      %4210 = vmatprep.mubr.bf16.mxu0 0
      %4211 = vmatmul.mubr.bf16.gmra.mxu0 %v3842
      %v4212 = vpop.f32.mrf.mxu0
      %v4213 = vadd.f32 0.0, %v4212
      %v4214 = vpop.f32.mrf.mxu0
      %v4215 = vpop.f32.mrf.mxu0
      %v4216 = vadd.f32 0.0, %v4215
      %v4217 = vpop.f32.mrf.mxu0
      %4218 = vmatprep.mubr.bf16.mxu0 0
      %4219 = vmatmul.mubr.bf16.gmra.mxu0 %v3945
      %v4220 = vpop.f32.mrf.mxu0
      %v4221 = vadd.f32 0.0, %v4220
      %v4222 = vpop.f32.mrf.mxu0
      %v4223 = vpop.f32.mrf.mxu0
      %v4224 = vadd.f32 0.0, %v4223
      %v4225 = vpop.f32.mrf.mxu0
      %4226 = vmatprep.mubr.bf16.mxu0 0
      %4227 = vmatmul.mubr.bf16.gmra.mxu0 %v4165
      %v4228 = vpop.f32.mrf.mxu0
      %v4229 = vadd.f32 0.0, %v4228
      %v4230 = vpop.f32.mrf.mxu0
      %v4231 = vpop.f32.mrf.mxu0
      %v4232 = vadd.f32 0.0, %v4231
      %v4233 = vpop.f32.mrf.mxu0
      %4234 = vdwg.mxu0
      %v4235 = vadd.f32 %v4126, %v4205
      %v4236 = vadd.f32 %v4127, %v4208
      %v4237 = vadd.f32 %v4128, %v4213
      %v4238 = vadd.f32 %v4129, %v4216
      %v4239 = vadd.f32 %v4130, %v4221
      %v4240 = vadd.f32 %v4131, %v4224
      %v4241 = vadd.f32 %v4132, %v4229
      %v4242 = vadd.f32 %v4133, %v4232
      %s4243 = scalar_lea.vmem %s7, 140
      %v4244 = vld [vmem:[%s4243] sm:$0xf]
      %v4245 = vld [vmem:[%s4243 + $0x4] sm:$0xf]
      %v4246 = vld [vmem:[%s4243 + $0x8] sm:$0xf]
      %v4247 = vld [vmem:[%s4243 + $0xc] sm:$0xf]
      %v4248 = vld [vmem:[%s4243 + $0x10] sm:$0xf]
      %v4249 = vld [vmem:[%s4243 + $0x14] sm:$0xf]
      %v4250 = vld [vmem:[%s4243 + $0x18] sm:$0xf]
      %v4258 = vunpack.c.l.b16 %v4244
      %v4259 = vunpack.c.l.b16 %v4245
      %v4260 = vunpack.c.l.b16 %v4246
      %v4261 = vunpack.c.l.b16 %v4247
      %v4262 = vunpack.c.l.b16 %v4248
      %v4263 = vunpack.c.l.b16 %v4249
      %v4264 = vunpack.c.l.b16 %v4250
      %v4265 = vpack.c.b16 %v4259, %v4258
      %v4266 = vpack.c.b16 %v4261, %v4260
      %v4267 = vpack.c.b16 %v4263, %v4262
      %v4268 = vpack.c.b16 %v4264, %v4264
      %v4273 = vsel %vm1763, %v4268, 0
      %4275 = vmatprep.subr.bf16.mxu0 0
      %4276 = vmatpush1.bf16.msra.mxu0 0
      %4277 = vmatprep.subr.bf16.mxu0 0
      %4278 = vmatpush1.bf16.msra.mxu0 0
      %4279 = vmatprep.subr.bf16.mxu0 0
      %4280 = vmatpush1.bf16.msra.mxu0 0
      %4281 = vmatprep.subr.bf16.mxu0 0
      %4282 = vmatpush1.bf16.msra.mxu0 0
      %4283 = vmatprep.subr.bf16.mxu0 0
      %4284 = vmatpush1.bf16.msra.mxu0 %v4273
      %4285 = vmatprep.subr.bf16.mxu0 0
      %4286 = vmatpush1.bf16.msra.mxu0 %v4267
      %4287 = vmatprep.subr.bf16.mxu0 0
      %4288 = vmatpush1.bf16.msra.mxu0 %v4266
      %4289 = vmatprep.subr.bf16.mxu0 0
      %4290 = vmatpush1.bf16.msra.mxu0 %v4265
      %4291 = vmatprep.subr.bf16.mxu0 0
      %4292 = vmatpush2.bf16.msra.mxu0 0
      %4293 = vmatprep.subr.bf16.mxu0 0
      %4294 = vmatpush2.bf16.msra.mxu0 0
      %4295 = vmatprep.subr.bf16.mxu0 0
      %4296 = vmatpush2.bf16.msra.mxu0 0
      %4297 = vmatprep.subr.bf16.mxu0 0
      %4298 = vmatpush2.bf16.msra.mxu0 0
      %4299 = vmatprep.subr.bf16.mxu0 0
      %4300 = vmatpush2.bf16.msra.mxu0 0
      %4301 = vmatprep.subr.bf16.mxu0 0
      %4302 = vmatpush2.bf16.msra.mxu0 0
      %4303 = vmatprep.subr.bf16.mxu0 0
      %4304 = vmatpush2.bf16.msra.mxu0 0
      %4305 = vmatprep.subr.bf16.mxu0 0
      %4306 = vmatpush2.bf16.msra.mxu0 0
      %4307 = vmatprep.mubr.bf16.mxu0 0
      %4308 = vmatmul.mubr.bf16.gmra.mxu0 %v3738
      %v4309 = vpop.f32.mrf.mxu0
      %v4310 = vadd.f32 0.0, %v4309
      %v4311 = vpop.f32.mrf.mxu0
      %v4312 = vpop.f32.mrf.mxu0
      %v4313 = vadd.f32 0.0, %v4312
      %v4314 = vpop.f32.mrf.mxu0
      %4315 = vmatprep.mubr.bf16.mxu0 0
      %4316 = vmatmul.mubr.bf16.gmra.mxu0 %v3741
      %v4317 = vpop.f32.mrf.mxu0
      %v4318 = vadd.f32 0.0, %v4317
      %v4319 = vpop.f32.mrf.mxu0
      %v4320 = vpop.f32.mrf.mxu0
      %v4321 = vadd.f32 0.0, %v4320
      %v4322 = vpop.f32.mrf.mxu0
      %4323 = vmatprep.mubr.bf16.mxu0 0
      %4324 = vmatmul.mubr.bf16.gmra.mxu0 %v4056
      %v4325 = vpop.f32.mrf.mxu0
      %v4326 = vadd.f32 0.0, %v4325
      %v4327 = vpop.f32.mrf.mxu0
      %v4328 = vpop.f32.mrf.mxu0
      %v4329 = vadd.f32 0.0, %v4328
      %v4330 = vpop.f32.mrf.mxu0
      %4331 = vmatprep.mubr.bf16.mxu0 0
      %4332 = vmatmul.mubr.bf16.gmra.mxu0 %v3732
      %v4333 = vpop.f32.mrf.mxu0
      %v4334 = vadd.f32 0.0, %v4333
      %v4335 = vpop.f32.mrf.mxu0
      %v4336 = vpop.f32.mrf.mxu0
      %v4337 = vadd.f32 0.0, %v4336
      %v4338 = vpop.f32.mrf.mxu0
      %4339 = vdwg.mxu0
      %v4340 = vadd.f32 %v4235, %v4310
      %v4341 = vadd.f32 %v4236, %v4313
      %v4342 = vadd.f32 %v4237, %v4318
      %v4343 = vadd.f32 %v4238, %v4321
      %v4344 = vadd.f32 %v4239, %v4326
      %v4345 = vadd.f32 %v4240, %v4329
      %v4346 = vadd.f32 %v4241, %v4334
      %v4347 = vadd.f32 %v4242, %v4337
      %s4348 = scalar_lea.vmem %s7, 168
      %v4349 = vld [vmem:[%s4348] sm:$0xf]
      %v4350 = vld [vmem:[%s4348 + $0x4] sm:$0xf]
      %v4351 = vld [vmem:[%s4348 + $0x8] sm:$0xf]
      %v4352 = vld [vmem:[%s4348 + $0xc] sm:$0xf]
      %v4353 = vld [vmem:[%s4348 + $0x10] sm:$0xf]
      %v4354 = vld [vmem:[%s4348 + $0x14] sm:$0xf]
      %v4355 = vld [vmem:[%s4348 + $0x18] sm:$0xf]
      %v4363 = vunpack.c.l.b16 %v4349
      %v4364 = vunpack.c.l.b16 %v4350
      %v4365 = vunpack.c.l.b16 %v4351
      %v4366 = vunpack.c.l.b16 %v4352
      %v4367 = vunpack.c.l.b16 %v4353
      %v4368 = vunpack.c.l.b16 %v4354
      %v4369 = vunpack.c.l.b16 %v4355
      %v4370 = vpack.c.b16 %v4364, %v4363
      %v4371 = vpack.c.b16 %v4366, %v4365
      %v4372 = vpack.c.b16 %v4368, %v4367
      %v4373 = vpack.c.b16 %v4369, %v4369
      %v4378 = vsel %vm1763, %v4373, 0
      %4380 = vmatprep.subr.bf16.mxu0 0
      %4381 = vmatpush1.bf16.msra.mxu0 0
      %4382 = vmatprep.subr.bf16.mxu0 0
      %4383 = vmatpush1.bf16.msra.mxu0 0
      %4384 = vmatprep.subr.bf16.mxu0 0
      %4385 = vmatpush1.bf16.msra.mxu0 0
      %4386 = vmatprep.subr.bf16.mxu0 0
      %4387 = vmatpush1.bf16.msra.mxu0 0
      %4388 = vmatprep.subr.bf16.mxu0 0
      %4389 = vmatpush1.bf16.msra.mxu0 %v4378
      %4390 = vmatprep.subr.bf16.mxu0 0
      %4391 = vmatpush1.bf16.msra.mxu0 %v4372
      %4392 = vmatprep.subr.bf16.mxu0 0
      %4393 = vmatpush1.bf16.msra.mxu0 %v4371
      %4394 = vmatprep.subr.bf16.mxu0 0
      %4395 = vmatpush1.bf16.msra.mxu0 %v4370
      %4396 = vmatprep.subr.bf16.mxu0 0
      %4397 = vmatpush2.bf16.msra.mxu0 0
      %4398 = vmatprep.subr.bf16.mxu0 0
      %4399 = vmatpush2.bf16.msra.mxu0 0
      %4400 = vmatprep.subr.bf16.mxu0 0
      %4401 = vmatpush2.bf16.msra.mxu0 0
      %4402 = vmatprep.subr.bf16.mxu0 0
      %4403 = vmatpush2.bf16.msra.mxu0 0
      %4404 = vmatprep.subr.bf16.mxu0 0
      %4405 = vmatpush2.bf16.msra.mxu0 0
      %4406 = vmatprep.subr.bf16.mxu0 0
      %4407 = vmatpush2.bf16.msra.mxu0 0
      %4408 = vmatprep.subr.bf16.mxu0 0
      %4409 = vmatpush2.bf16.msra.mxu0 0
      %4410 = vmatprep.subr.bf16.mxu0 0
      %4411 = vmatpush2.bf16.msra.mxu0 0
      %4412 = vmatprep.mubr.bf16.mxu0 0
      %4413 = vmatmul.mubr.bf16.gmra.mxu0 %v3842
      %v4414 = vpop.f32.mrf.mxu0
      %v4415 = vadd.f32 0.0, %v4414
      %v4416 = vpop.f32.mrf.mxu0
      %v4417 = vpop.f32.mrf.mxu0
      %v4418 = vadd.f32 0.0, %v4417
      %v4419 = vpop.f32.mrf.mxu0
      %4420 = vmatprep.mubr.bf16.mxu0 0
      %4421 = vmatmul.mubr.bf16.gmra.mxu0 %v3945
      %v4422 = vpop.f32.mrf.mxu0
      %v4423 = vadd.f32 0.0, %v4422
      %v4424 = vpop.f32.mrf.mxu0
      %v4425 = vpop.f32.mrf.mxu0
      %v4426 = vadd.f32 0.0, %v4425
      %v4427 = vpop.f32.mrf.mxu0
      %4428 = vmatprep.mubr.bf16.mxu0 0
      %4429 = vmatmul.mubr.bf16.gmra.mxu0 %v4165
      %v4430 = vpop.f32.mrf.mxu0
      %v4431 = vadd.f32 0.0, %v4430
      %v4432 = vpop.f32.mrf.mxu0
      %v4433 = vpop.f32.mrf.mxu0
      %v4434 = vadd.f32 0.0, %v4433
      %v4435 = vpop.f32.mrf.mxu0
      %4436 = vmatprep.mubr.bf16.mxu0 0
      %4437 = vmatmul.mubr.bf16.gmra.mxu0 %v3732
      %v4438 = vpop.f32.mrf.mxu0
      %v4439 = vadd.f32 0.0, %v4438
      %v4440 = vpop.f32.mrf.mxu0
      %v4441 = vpop.f32.mrf.mxu0
      %v4442 = vadd.f32 0.0, %v4441
      %v4443 = vpop.f32.mrf.mxu0
      %4444 = vdwg.mxu0
      %v4445 = vadd.f32 %v4340, %v4415
      %v4446 = vadd.f32 %v4341, %v4418
      %v4447 = vadd.f32 %v4342, %v4423
      %v4448 = vadd.f32 %v4343, %v4426
      %v4449 = vadd.f32 %v4344, %v4431
      %v4450 = vadd.f32 %v4345, %v4434
      %v4451 = vadd.f32 %v4346, %v4439
      %v4452 = vadd.f32 %v4347, %v4442
      %v4453 = vld [vmem:[%s8] sm:$0x1]
      %v4455 = vlaneseq
      %v4456 = vshrl.u32 %v4455, 7
      %v4457 = vsub.s32 0, %v4456
      %v4458 = vrot.slane %v4453, %v4457
      %v4460 = vadd.f32 %v4445, %v4458
      %v4461 = vadd.f32 %v4446, %v4458
      %v4462 = vadd.f32 %v4447, %v4458
      %v4463 = vadd.f32 %v4448, %v4458
      %v4464 = vadd.f32 %v4449, %v4458
      %v4465 = vadd.f32 %v4450, %v4458
      %v4466 = vadd.f32 %v4451, %v4458
      %v4467 = vadd.f32 %v4452, %v4458
      %v4468 = vmax.f32 %v4460, 0.0
      %v4469 = vmax.f32 %v4461, 0.0
      %v4470 = vmax.f32 %v4462, 0.0
      %v4471 = vmax.f32 %v4463, 0.0
      %v4472 = vmax.f32 %v4464, 0.0
      %v4473 = vmax.f32 %v4465, 0.0
      %v4474 = vmax.f32 %v4466, 0.0
      %v4475 = vmax.f32 %v4467, 0.0
      %v4476 = vsel %vm1691, %v4468, 0.0
      %v4477 = vsel %vm1691, %v4469, 0.0
      %v4478 = vadd.f32 %v4476, %v4477
      %v4479 = vsel %vm1691, %v4470, 0.0
      %v4480 = vadd.f32 %v4478, %v4479
      %v4481 = vsel %vm1691, %v4471, 0.0
      %v4482 = vadd.f32 %v4480, %v4481
      %v4483 = vsel %vm1691, %v4472, 0.0
      %v4484 = vadd.f32 %v4482, %v4483
      %v4485 = vsel %vm1691, %v4473, 0.0
      %v4486 = vadd.f32 %v4484, %v4485
      %v4487 = vsel %vm1691, %v4474, 0.0
      %v4488 = vadd.f32 %v4486, %v4487
      %v4489 = vsel %vm1691, %v4475, 0.0
      %v4490 = vadd.f32 %v4488, %v4489
      %v4491 = vrot.slane %v4490, 4
      %v4492 = vadd.f32 %v4490, %v4491
      %v4493 = vrot.slane %v4492, 2
      %v4494 = vadd.f32 %v4492, %v4493
      %v4495 = vrot.slane %v4494, 1
      %v4496 = vadd.f32 %v4494, %v4495
      %v4497 = vmul.f32 %v4496, %v1713
      %4499 = vrot.lane.b32.xlu0 %v4497, 120
      %v4500 = vpop.permute.xlu0 %4499
      %4502 = vrot.lane.b32.xlu0 %v4497, 112
      %v4503 = vpop.permute.xlu0 %4502
      %4505 = vrot.lane.b32.xlu0 %v4497, 104
      %v4506 = vpop.permute.xlu0 %4505
      %v4508 = vcombine.low %v4497, %v4503
      %v4510 = vunpack.c.l.s4 1983009808
      %v4511 = vunpack.c.0.s8 %v4510
      %v4512 = vlaneseq
      %v4513 = vshrl.u32 %v4512, 7
      %v4514 = vsub.s32 %v4511, %v4513
      %v4515 = vrot.slane %v4508, %v4514
      %v4516 = vcombine.low %v4500, %v4506
      %v4518 = vunpack.c.l.s4 1983009808
      %v4519 = vunpack.c.0.s8 %v4518
      %v4520 = vlaneseq
      %v4521 = vshrl.u32 %v4520, 7
      %v4522 = vsub.s32 %v4519, %v4521
      %v4523 = vrot.slane %v4516, %v4522
      %v4524 = vcombine.low %v4515, %v4523
      %v4526 = vunpack.c.l.s4 1934713408
      %v4527 = vunpack.c.0.s8 %v4526
      %v4528 = vlaneseq
      %v4529 = vshrl.u32 %v4528, 7
      %v4530 = vsub.s32 %v4527, %v4529
      %v4531 = vrot.slane %v4524, %v4530
      %v4532 = vsel %vm1749, %v4531, 0.0
      %v4533 = vrot.slane %v4532, 4
      %v4534 = vadd.f32 %v4532, %v4533
      %v4535 = vrot.slane %v4534, 2
      %v4536 = vadd.f32 %v4534, %v4535
      %v4537 = vrot.slane %v4536, 1
      %v4538 = vadd.f32 %v4536, %v4537
      %v4539 = vpack.c.bf16 %v4538, %v4538
      %v4540 = vld [vmem:[%s9] sm:$0xf]
      %v4541 = vld [vmem:[%s10] sm:$0x1]
      %v4543 = vsel %vm886, %v4539, 0
      %v4546 = vsel %vm1763, %v4540, 0
      %4548 = vmatprep.subr.bf16.mxu0 0
      %4549 = vmatpush1.bf16.msra.mxu0 0
      %4550 = vmatprep.subr.bf16.mxu0 0
      %4551 = vmatpush1.bf16.msra.mxu0 0
      %4552 = vmatprep.subr.bf16.mxu0 0
      %4553 = vmatpush1.bf16.msra.mxu0 0
      %4554 = vmatprep.subr.bf16.mxu0 0
      %4555 = vmatpush1.bf16.msra.mxu0 0
      %4556 = vmatprep.subr.bf16.mxu0 0
      %4557 = vmatpush1.bf16.msra.mxu0 0
      %4558 = vmatprep.subr.bf16.mxu0 0
      %4559 = vmatpush1.bf16.msra.mxu0 0
      %4560 = vmatprep.subr.bf16.mxu0 0
      %4561 = vmatpush1.bf16.msra.mxu0 0
      %4562 = vmatprep.subr.bf16.mxu0 0
      %4563 = vmatpush1.bf16.msra.mxu0 %v4546
      %4564 = vmatprep.subr.bf16.mxu0 0
      %4565 = vmatpush2.bf16.msra.mxu0 0
      %4566 = vmatprep.subr.bf16.mxu0 0
      %4567 = vmatpush2.bf16.msra.mxu0 0
      %4568 = vmatprep.subr.bf16.mxu0 0
      %4569 = vmatpush2.bf16.msra.mxu0 0
      %4570 = vmatprep.subr.bf16.mxu0 0
      %4571 = vmatpush2.bf16.msra.mxu0 0
      %4572 = vmatprep.subr.bf16.mxu0 0
      %4573 = vmatpush2.bf16.msra.mxu0 0
      %4574 = vmatprep.subr.bf16.mxu0 0
      %4575 = vmatpush2.bf16.msra.mxu0 0
      %4576 = vmatprep.subr.bf16.mxu0 0
      %4577 = vmatpush2.bf16.msra.mxu0 0
      %4578 = vmatprep.subr.bf16.mxu0 0
      %4579 = vmatpush2.bf16.msra.mxu0 0
      %4580 = vmatprep.mubr.bf16.mxu0 0
      %4581 = vmatmul.mubr.bf16.gmra.mxu0 %v4543
      %v4582 = vpop.f32.mrf.mxu0
      %v4583 = vadd.f32 %v4541, %v4582
      %v4584 = vpop.f32.mrf.mxu0
      %v4585 = vpop.f32.mrf.mxu0
      %v4586 = vpop.f32.mrf.mxu0
      %4587 = vdwg.mxu0
      %v4588 = vpack.c.bf16 %v4583, %v4583
      %v4589 = vld [vmem:[%s11] sm:$0xf]
      %v4590 = vld [vmem:[%s11 + $0x4] sm:$0xf]
      %v4591 = vld [vmem:[%s11 + $0x8] sm:$0xf]
      %v4592 = vld [vmem:[%s11 + $0xc] sm:$0xf]
      %v4593 = vld [vmem:[%s12] sm:$0x1]
      %v4598 = vunpack.c.l.b16 %v4589
      %v4599 = vunpack.c.l.b16 %v4590
      %v4600 = vunpack.c.l.b16 %v4591
      %v4601 = vunpack.c.l.b16 %v4592
      %v4602 = vpack.c.b16 %v4599, %v4598
      %v4603 = vpack.c.b16 %v4601, %v4600
      %v4607 = vsel %vm1691, %v4588, 0
      %4609 = vmatprep.subr.bf16.mxu0 0
      %4610 = vmatpush1.bf16.msra.mxu0 0
      %4611 = vmatprep.subr.bf16.mxu0 0
      %4612 = vmatpush1.bf16.msra.mxu0 0
      %4613 = vmatprep.subr.bf16.mxu0 0
      %4614 = vmatpush1.bf16.msra.mxu0 0
      %4615 = vmatprep.subr.bf16.mxu0 0
      %4616 = vmatpush1.bf16.msra.mxu0 0
      %4617 = vmatprep.subr.bf16.mxu0 0
      %4618 = vmatpush1.bf16.msra.mxu0 0
      %4619 = vmatprep.subr.bf16.mxu0 0
      %4620 = vmatpush1.bf16.msra.mxu0 0
      %4621 = vmatprep.subr.bf16.mxu0 0
      %4622 = vmatpush1.bf16.msra.mxu0 %v4603
      %4623 = vmatprep.subr.bf16.mxu0 0
      %4624 = vmatpush1.bf16.msra.mxu0 %v4602
      %4625 = vmatprep.subr.bf16.mxu0 0
      %4626 = vmatpush2.bf16.msra.mxu0 0
      %4627 = vmatprep.subr.bf16.mxu0 0
      %4628 = vmatpush2.bf16.msra.mxu0 0
      %4629 = vmatprep.subr.bf16.mxu0 0
      %4630 = vmatpush2.bf16.msra.mxu0 0
      %4631 = vmatprep.subr.bf16.mxu0 0
      %4632 = vmatpush2.bf16.msra.mxu0 0
      %4633 = vmatprep.subr.bf16.mxu0 0
      %4634 = vmatpush2.bf16.msra.mxu0 0
      %4635 = vmatprep.subr.bf16.mxu0 0
      %4636 = vmatpush2.bf16.msra.mxu0 0
      %4637 = vmatprep.subr.bf16.mxu0 0
      %4638 = vmatpush2.bf16.msra.mxu0 0
      %4639 = vmatprep.subr.bf16.mxu0 0
      %4640 = vmatpush2.bf16.msra.mxu0 0
      %4641 = vmatprep.mubr.bf16.mxu0 0
      %4642 = vmatmul.mubr.bf16.gmra.mxu0 %v4607
      %v4643 = vpop.f32.mrf.mxu0
      %v4644 = vadd.f32 %v4593, %v4643
      %v4645 = vpop.f32.mrf.mxu0
      %v4646 = vpop.f32.mrf.mxu0
      %v4647 = vpop.f32.mrf.mxu0
      %4648 = vdwg.mxu0
      %4650 = vrot.lane.b32.xlu0 %v4644, 120
      %v4651 = vpop.permute.xlu0 %4650
      %4653 = vrot.lane.b32.xlu0 %v4644, 112
      %v4654 = vpop.permute.xlu0 %4653
      %4656 = vrot.lane.b32.xlu0 %v4644, 104
      %v4657 = vpop.permute.xlu0 %4656
      %v4659 = vcombine.low %v4644, %v4654
      %v4661 = vunpack.c.l.s4 1983009808
      %v4662 = vunpack.c.0.s8 %v4661
      %v4663 = vlaneseq
      %v4664 = vshrl.u32 %v4663, 7
      %v4665 = vsub.s32 %v4662, %v4664
      %v4666 = vrot.slane %v4659, %v4665
      %v4667 = vcombine.low %v4651, %v4657
      %v4669 = vunpack.c.l.s4 1983009808
      %v4670 = vunpack.c.0.s8 %v4669
      %v4671 = vlaneseq
      %v4672 = vshrl.u32 %v4671, 7
      %v4673 = vsub.s32 %v4670, %v4672
      %v4674 = vrot.slane %v4667, %v4673
      %v4675 = vcombine.low %v4666, %v4674
      %v4677 = vunpack.c.l.s4 1934713408
      %v4678 = vunpack.c.0.s8 %v4677
      %v4679 = vlaneseq
      %v4680 = vshrl.u32 %v4679, 7
      %v4681 = vsub.s32 %v4678, %v4680
      %v4682 = vrot.slane %v4675, %v4681
      %v4683 = vsel %vm1749, %v4682, -inf
      %v4684 = vrot.slane %v4683, 4
      %v4685 = vmax.f32 %v4683, %v4684
      %v4686 = vrot.slane %v4685, 2
      %v4687 = vmax.f32 %v4685, %v4686
      %v4688 = vrot.slane %v4687, 1
      %v4689 = vmax.f32 %v4687, %v4688
      %v4690 = vsub.f32 %v4682, %v4689
      %v4691 = vmul.f32 %v4690, 1.442695
      %v4692 = vpow.pop %v4691
      %v4693 = vsel %vm1749, %v4692, 0.0
      %v4694 = vrot.slane %v4693, 4
      %v4695 = vadd.f32 %v4693, %v4694
      %v4696 = vrot.slane %v4695, 2
      %v4697 = vadd.f32 %v4695, %v4696
      %v4698 = vrot.slane %v4697, 1
      %v4699 = vadd.f32 %v4697, %v4698
      %v4700 = vrcp.pop %v4699
      %v4701 = vmul.f32 %v4692, %v4700
      %v4703 = vunpack.c.l.s4 1983009808
      %v4704 = vunpack.c.0.s8 %v4703
      %v4705 = vlaneseq
      %v4706 = vshrl.u32 %v4705, 7
      %v4707 = vsub.s32 %v4704, %v4706
      %v4708 = vrot.slane %v4701, %v4707
      %v4709 = vcombine.high %v4708, 0.0
      %v4711 = vunpack.c.l.s4 1934713408
      %v4712 = vunpack.c.0.s8 %v4711
      %v4713 = vlaneseq
      %v4714 = vshrl.u32 %v4713, 7
      %v4715 = vsub.s32 %v4712, %v4714
      %v4716 = vrot.slane %v4708, %v4715
      %v4718 = vunpack.c.l.s4 1934713408
      %v4719 = vunpack.c.0.s8 %v4718
      %v4720 = vlaneseq
      %v4721 = vshrl.u32 %v4720, 7
      %v4722 = vsub.s32 %v4719, %v4721
      %v4723 = vrot.slane %v4709, %v4722
      %v4724 = vcombine.high %v4716, 0.0
      %v4725 = vcombine.high %v4723, 0.0
      %4727 = vrot.lane.b32.xlu0 %v4724, 8
      %v4728 = vpop.permute.xlu0 %4727
      %4731 = vrot.lane.b32.xlu0 %v4723, 16
      %v4732 = vpop.permute.xlu0 %4731
      %4735 = vrot.lane.b32.xlu0 %v4725, 24
      %v4736 = vpop.permute.xlu0 %4735
      %v4738 = vsel %vm886, %v4716, %v4728
      %v4739 = vsel %vm924, %v4738, %v4732
      %v4740 = vsel %vm962, %v4739, %v4736
      %v4741 = vlaneseq
      %v4742 = vshrl.u32 %v4741, 7
      %v4743 = vsub.s32 0, %v4742
      %v4744 = vrot.slane %v4740, %v4743
      %v4745 = vmul.f32 %v4468, %v4744
      %v4746 = vmul.f32 %v4469, %v4744
      %v4747 = vmul.f32 %v4470, %v4744
      %v4748 = vmul.f32 %v4471, %v4744
      %v4749 = vmul.f32 %v4472, %v4744
      %v4750 = vmul.f32 %v4473, %v4744
      %v4751 = vmul.f32 %v4474, %v4744
      %v4752 = vmul.f32 %v4475, %v4744
      %4761 = vrot.lane.b32.xlu0 %v4745, 120
      %v4762 = vpop.permute.xlu0 %4761
      %4763 = vrot.lane.b32.xlu0 %v4746, 120
      %v4764 = vpop.permute.xlu0 %4763
      %4765 = vrot.lane.b32.xlu0 %v4747, 120
      %v4766 = vpop.permute.xlu0 %4765
      %4767 = vrot.lane.b32.xlu0 %v4748, 120
      %v4768 = vpop.permute.xlu0 %4767
      %4769 = vrot.lane.b32.xlu0 %v4749, 120
      %v4770 = vpop.permute.xlu0 %4769
      %4771 = vrot.lane.b32.xlu0 %v4750, 120
      %v4772 = vpop.permute.xlu0 %4771
      %4773 = vrot.lane.b32.xlu0 %v4751, 120
      %v4774 = vpop.permute.xlu0 %4773
      %4775 = vrot.lane.b32.xlu0 %v4752, 120
      %v4776 = vpop.permute.xlu0 %4775
      %4785 = vrot.lane.b32.xlu0 %v4745, 112
      %v4786 = vpop.permute.xlu0 %4785
      %4787 = vrot.lane.b32.xlu0 %v4746, 112
      %v4788 = vpop.permute.xlu0 %4787
      %4789 = vrot.lane.b32.xlu0 %v4747, 112
      %v4790 = vpop.permute.xlu0 %4789
      %4791 = vrot.lane.b32.xlu0 %v4748, 112
      %v4792 = vpop.permute.xlu0 %4791
      %4793 = vrot.lane.b32.xlu0 %v4749, 112
      %v4794 = vpop.permute.xlu0 %4793
      %4795 = vrot.lane.b32.xlu0 %v4750, 112
      %v4796 = vpop.permute.xlu0 %4795
      %4797 = vrot.lane.b32.xlu0 %v4751, 112
      %v4798 = vpop.permute.xlu0 %4797
      %4799 = vrot.lane.b32.xlu0 %v4752, 112
      %v4800 = vpop.permute.xlu0 %4799
      %4809 = vrot.lane.b32.xlu0 %v4745, 104
      %v4810 = vpop.permute.xlu0 %4809
      %4811 = vrot.lane.b32.xlu0 %v4746, 104
      %v4812 = vpop.permute.xlu0 %4811
      %4813 = vrot.lane.b32.xlu0 %v4747, 104
      %v4814 = vpop.permute.xlu0 %4813
      %4815 = vrot.lane.b32.xlu0 %v4748, 104
      %v4816 = vpop.permute.xlu0 %4815
      %4817 = vrot.lane.b32.xlu0 %v4749, 104
      %v4818 = vpop.permute.xlu0 %4817
      %4819 = vrot.lane.b32.xlu0 %v4750, 104
      %v4820 = vpop.permute.xlu0 %4819
      %4821 = vrot.lane.b32.xlu0 %v4751, 104
      %v4822 = vpop.permute.xlu0 %4821
      %4823 = vrot.lane.b32.xlu0 %v4752, 104
      %v4824 = vpop.permute.xlu0 %4823
      %v4833 = vcombine.low %v4745, %v4786
      %v4834 = vcombine.high %v4745, %v4786
      %v4836 = vunpack.c.l.s4 1983009808
      %v4837 = vunpack.c.0.s8 %v4836
      %v4838 = vlaneseq
      %v4839 = vshrl.u32 %v4838, 7
      %v4840 = vsub.s32 %v4837, %v4839
      %v4841 = vrot.slane %v4833, %v4840
      %v4843 = vunpack.c.l.s4 1983009808
      %v4844 = vunpack.c.0.s8 %v4843
      %v4845 = vlaneseq
      %v4846 = vshrl.u32 %v4845, 7
      %v4847 = vsub.s32 %v4844, %v4846
      %v4848 = vrot.slane %v4834, %v4847
      %v4849 = vcombine.low %v4762, %v4810
      %v4850 = vcombine.high %v4762, %v4810
      %v4852 = vunpack.c.l.s4 1983009808
      %v4853 = vunpack.c.0.s8 %v4852
      %v4854 = vlaneseq
      %v4855 = vshrl.u32 %v4854, 7
      %v4856 = vsub.s32 %v4853, %v4855
      %v4857 = vrot.slane %v4849, %v4856
      %v4859 = vunpack.c.l.s4 1983009808
      %v4860 = vunpack.c.0.s8 %v4859
      %v4861 = vlaneseq
      %v4862 = vshrl.u32 %v4861, 7
      %v4863 = vsub.s32 %v4860, %v4862
      %v4864 = vrot.slane %v4850, %v4863
      %v4865 = vcombine.low %v4841, %v4857
      %v4866 = vcombine.high %v4841, %v4857
      %v4868 = vunpack.c.l.s4 1934713408
      %v4869 = vunpack.c.0.s8 %v4868
      %v4870 = vlaneseq
      %v4871 = vshrl.u32 %v4870, 7
      %v4872 = vsub.s32 %v4869, %v4871
      %v4873 = vrot.slane %v4865, %v4872
      %v4875 = vunpack.c.l.s4 1934713408
      %v4876 = vunpack.c.0.s8 %v4875
      %v4877 = vlaneseq
      %v4878 = vshrl.u32 %v4877, 7
      %v4879 = vsub.s32 %v4876, %v4878
      %v4880 = vrot.slane %v4866, %v4879
      %v4881 = vcombine.low %v4848, %v4864
      %v4882 = vcombine.high %v4848, %v4864
      %v4884 = vunpack.c.l.s4 1934713408
      %v4885 = vunpack.c.0.s8 %v4884
      %v4886 = vlaneseq
      %v4887 = vshrl.u32 %v4886, 7
      %v4888 = vsub.s32 %v4885, %v4887
      %v4889 = vrot.slane %v4881, %v4888
      %v4891 = vunpack.c.l.s4 1934713408
      %v4892 = vunpack.c.0.s8 %v4891
      %v4893 = vlaneseq
      %v4894 = vshrl.u32 %v4893, 7
      %v4895 = vsub.s32 %v4892, %v4894
      %v4896 = vrot.slane %v4882, %v4895
      %v4897 = vcombine.high %v4873, 0.0
      %v4898 = vcombine.high %v4880, 0.0
      %v4899 = vcombine.high %v4889, 0.0
      %v4900 = vcombine.high %v4896, 0.0
      %v4901 = vcombine.low %v4746, %v4788
      %v4902 = vcombine.high %v4746, %v4788
      %v4904 = vunpack.c.l.s4 1983009808
      %v4905 = vunpack.c.0.s8 %v4904
      %v4906 = vlaneseq
      %v4907 = vshrl.u32 %v4906, 7
      %v4908 = vsub.s32 %v4905, %v4907
      %v4909 = vrot.slane %v4901, %v4908
      %v4911 = vunpack.c.l.s4 1983009808
      %v4912 = vunpack.c.0.s8 %v4911
      %v4913 = vlaneseq
      %v4914 = vshrl.u32 %v4913, 7
      %v4915 = vsub.s32 %v4912, %v4914
      %v4916 = vrot.slane %v4902, %v4915
      %v4917 = vcombine.low %v4764, %v4812
      %v4918 = vcombine.high %v4764, %v4812
      %v4920 = vunpack.c.l.s4 1983009808
      %v4921 = vunpack.c.0.s8 %v4920
      %v4922 = vlaneseq
      %v4923 = vshrl.u32 %v4922, 7
      %v4924 = vsub.s32 %v4921, %v4923
      %v4925 = vrot.slane %v4917, %v4924
      %v4927 = vunpack.c.l.s4 1983009808
      %v4928 = vunpack.c.0.s8 %v4927
      %v4929 = vlaneseq
      %v4930 = vshrl.u32 %v4929, 7
      %v4931 = vsub.s32 %v4928, %v4930
      %v4932 = vrot.slane %v4918, %v4931
      %v4933 = vcombine.low %v4909, %v4925
      %v4934 = vcombine.high %v4909, %v4925
      %v4936 = vunpack.c.l.s4 1934713408
      %v4937 = vunpack.c.0.s8 %v4936
      %v4938 = vlaneseq
      %v4939 = vshrl.u32 %v4938, 7
      %v4940 = vsub.s32 %v4937, %v4939
      %v4941 = vrot.slane %v4933, %v4940
      %v4943 = vunpack.c.l.s4 1934713408
      %v4944 = vunpack.c.0.s8 %v4943
      %v4945 = vlaneseq
      %v4946 = vshrl.u32 %v4945, 7
      %v4947 = vsub.s32 %v4944, %v4946
      %v4948 = vrot.slane %v4934, %v4947
      %v4949 = vcombine.low %v4916, %v4932
      %v4950 = vcombine.high %v4916, %v4932
      %v4952 = vunpack.c.l.s4 1934713408
      %v4953 = vunpack.c.0.s8 %v4952
      %v4954 = vlaneseq
      %v4955 = vshrl.u32 %v4954, 7
      %v4956 = vsub.s32 %v4953, %v4955
      %v4957 = vrot.slane %v4949, %v4956
      %v4959 = vunpack.c.l.s4 1934713408
      %v4960 = vunpack.c.0.s8 %v4959
      %v4961 = vlaneseq
      %v4962 = vshrl.u32 %v4961, 7
      %v4963 = vsub.s32 %v4960, %v4962
      %v4964 = vrot.slane %v4950, %v4963
      %v4965 = vcombine.high %v4941, 0.0
      %v4966 = vcombine.high %v4948, 0.0
      %v4967 = vcombine.high %v4957, 0.0
      %v4968 = vcombine.high %v4964, 0.0
      %v4969 = vcombine.low %v4747, %v4790
      %v4970 = vcombine.high %v4747, %v4790
      %v4972 = vunpack.c.l.s4 1983009808
      %v4973 = vunpack.c.0.s8 %v4972
      %v4974 = vlaneseq
      %v4975 = vshrl.u32 %v4974, 7
      %v4976 = vsub.s32 %v4973, %v4975
      %v4977 = vrot.slane %v4969, %v4976
      %v4979 = vunpack.c.l.s4 1983009808
      %v4980 = vunpack.c.0.s8 %v4979
      %v4981 = vlaneseq
      %v4982 = vshrl.u32 %v4981, 7
      %v4983 = vsub.s32 %v4980, %v4982
      %v4984 = vrot.slane %v4970, %v4983
      %v4985 = vcombine.low %v4766, %v4814
      %v4986 = vcombine.high %v4766, %v4814
      %v4988 = vunpack.c.l.s4 1983009808
      %v4989 = vunpack.c.0.s8 %v4988
      %v4990 = vlaneseq
      %v4991 = vshrl.u32 %v4990, 7
      %v4992 = vsub.s32 %v4989, %v4991
      %v4993 = vrot.slane %v4985, %v4992
      %v4995 = vunpack.c.l.s4 1983009808
      %v4996 = vunpack.c.0.s8 %v4995
      %v4997 = vlaneseq
      %v4998 = vshrl.u32 %v4997, 7
      %v4999 = vsub.s32 %v4996, %v4998
      %v5000 = vrot.slane %v4986, %v4999
      %v5001 = vcombine.low %v4977, %v4993
      %v5002 = vcombine.high %v4977, %v4993
      %v5004 = vunpack.c.l.s4 1934713408
      %v5005 = vunpack.c.0.s8 %v5004
      %v5006 = vlaneseq
      %v5007 = vshrl.u32 %v5006, 7
      %v5008 = vsub.s32 %v5005, %v5007
      %v5009 = vrot.slane %v5001, %v5008
      %v5011 = vunpack.c.l.s4 1934713408
      %v5012 = vunpack.c.0.s8 %v5011
      %v5013 = vlaneseq
      %v5014 = vshrl.u32 %v5013, 7
      %v5015 = vsub.s32 %v5012, %v5014
      %v5016 = vrot.slane %v5002, %v5015
      %v5017 = vcombine.low %v4984, %v5000
      %v5018 = vcombine.high %v4984, %v5000
      %v5020 = vunpack.c.l.s4 1934713408
      %v5021 = vunpack.c.0.s8 %v5020
      %v5022 = vlaneseq
      %v5023 = vshrl.u32 %v5022, 7
      %v5024 = vsub.s32 %v5021, %v5023
      %v5025 = vrot.slane %v5017, %v5024
      %v5027 = vunpack.c.l.s4 1934713408
      %v5028 = vunpack.c.0.s8 %v5027
      %v5029 = vlaneseq
      %v5030 = vshrl.u32 %v5029, 7
      %v5031 = vsub.s32 %v5028, %v5030
      %v5032 = vrot.slane %v5018, %v5031
      %v5033 = vcombine.high %v5009, 0.0
      %v5034 = vcombine.high %v5016, 0.0
      %v5035 = vcombine.high %v5025, 0.0
      %v5036 = vcombine.high %v5032, 0.0
      %v5037 = vcombine.low %v4748, %v4792
      %v5038 = vcombine.high %v4748, %v4792
      %v5040 = vunpack.c.l.s4 1983009808
      %v5041 = vunpack.c.0.s8 %v5040
      %v5042 = vlaneseq
      %v5043 = vshrl.u32 %v5042, 7
      %v5044 = vsub.s32 %v5041, %v5043
      %v5045 = vrot.slane %v5037, %v5044
      %v5047 = vunpack.c.l.s4 1983009808
      %v5048 = vunpack.c.0.s8 %v5047
      %v5049 = vlaneseq
      %v5050 = vshrl.u32 %v5049, 7
      %v5051 = vsub.s32 %v5048, %v5050
      %v5052 = vrot.slane %v5038, %v5051
      %v5053 = vcombine.low %v4768, %v4816
      %v5054 = vcombine.high %v4768, %v4816
      %v5056 = vunpack.c.l.s4 1983009808
      %v5057 = vunpack.c.0.s8 %v5056
      %v5058 = vlaneseq
      %v5059 = vshrl.u32 %v5058, 7
      %v5060 = vsub.s32 %v5057, %v5059
      %v5061 = vrot.slane %v5053, %v5060
      %v5063 = vunpack.c.l.s4 1983009808
      %v5064 = vunpack.c.0.s8 %v5063
      %v5065 = vlaneseq
      %v5066 = vshrl.u32 %v5065, 7
      %v5067 = vsub.s32 %v5064, %v5066
      %v5068 = vrot.slane %v5054, %v5067
      %v5069 = vcombine.low %v5045, %v5061
      %v5070 = vcombine.high %v5045, %v5061
      %v5072 = vunpack.c.l.s4 1934713408
      %v5073 = vunpack.c.0.s8 %v5072
      %v5074 = vlaneseq
      %v5075 = vshrl.u32 %v5074, 7
      %v5076 = vsub.s32 %v5073, %v5075
      %v5077 = vrot.slane %v5069, %v5076
      %v5079 = vunpack.c.l.s4 1934713408
      %v5080 = vunpack.c.0.s8 %v5079
      %v5081 = vlaneseq
      %v5082 = vshrl.u32 %v5081, 7
      %v5083 = vsub.s32 %v5080, %v5082
      %v5084 = vrot.slane %v5070, %v5083
      %v5085 = vcombine.low %v5052, %v5068
      %v5086 = vcombine.high %v5052, %v5068
      %v5088 = vunpack.c.l.s4 1934713408
      %v5089 = vunpack.c.0.s8 %v5088
      %v5090 = vlaneseq
      %v5091 = vshrl.u32 %v5090, 7
      %v5092 = vsub.s32 %v5089, %v5091
      %v5093 = vrot.slane %v5085, %v5092
      %v5095 = vunpack.c.l.s4 1934713408
      %v5096 = vunpack.c.0.s8 %v5095
      %v5097 = vlaneseq
      %v5098 = vshrl.u32 %v5097, 7
      %v5099 = vsub.s32 %v5096, %v5098
      %v5100 = vrot.slane %v5086, %v5099
      %v5101 = vcombine.high %v5077, 0.0
      %v5102 = vcombine.high %v5084, 0.0
      %v5103 = vcombine.high %v5093, 0.0
      %v5104 = vcombine.high %v5100, 0.0
      %v5105 = vcombine.low %v4749, %v4794
      %v5106 = vcombine.high %v4749, %v4794
      %v5108 = vunpack.c.l.s4 1983009808
      %v5109 = vunpack.c.0.s8 %v5108
      %v5110 = vlaneseq
      %v5111 = vshrl.u32 %v5110, 7
      %v5112 = vsub.s32 %v5109, %v5111
      %v5113 = vrot.slane %v5105, %v5112
      %v5115 = vunpack.c.l.s4 1983009808
      %v5116 = vunpack.c.0.s8 %v5115
      %v5117 = vlaneseq
      %v5118 = vshrl.u32 %v5117, 7
      %v5119 = vsub.s32 %v5116, %v5118
      %v5120 = vrot.slane %v5106, %v5119
      %v5121 = vcombine.low %v4770, %v4818
      %v5122 = vcombine.high %v4770, %v4818
      %v5124 = vunpack.c.l.s4 1983009808
      %v5125 = vunpack.c.0.s8 %v5124
      %v5126 = vlaneseq
      %v5127 = vshrl.u32 %v5126, 7
      %v5128 = vsub.s32 %v5125, %v5127
      %v5129 = vrot.slane %v5121, %v5128
      %v5131 = vunpack.c.l.s4 1983009808
      %v5132 = vunpack.c.0.s8 %v5131
      %v5133 = vlaneseq
      %v5134 = vshrl.u32 %v5133, 7
      %v5135 = vsub.s32 %v5132, %v5134
      %v5136 = vrot.slane %v5122, %v5135
      %v5137 = vcombine.low %v5113, %v5129
      %v5138 = vcombine.high %v5113, %v5129
      %v5140 = vunpack.c.l.s4 1934713408
      %v5141 = vunpack.c.0.s8 %v5140
      %v5142 = vlaneseq
      %v5143 = vshrl.u32 %v5142, 7
      %v5144 = vsub.s32 %v5141, %v5143
      %v5145 = vrot.slane %v5137, %v5144
      %v5147 = vunpack.c.l.s4 1934713408
      %v5148 = vunpack.c.0.s8 %v5147
      %v5149 = vlaneseq
      %v5150 = vshrl.u32 %v5149, 7
      %v5151 = vsub.s32 %v5148, %v5150
      %v5152 = vrot.slane %v5138, %v5151
      %v5153 = vcombine.low %v5120, %v5136
      %v5154 = vcombine.high %v5120, %v5136
      %v5156 = vunpack.c.l.s4 1934713408
      %v5157 = vunpack.c.0.s8 %v5156
      %v5158 = vlaneseq
      %v5159 = vshrl.u32 %v5158, 7
      %v5160 = vsub.s32 %v5157, %v5159
      %v5161 = vrot.slane %v5153, %v5160
      %v5163 = vunpack.c.l.s4 1934713408
      %v5164 = vunpack.c.0.s8 %v5163
      %v5165 = vlaneseq
      %v5166 = vshrl.u32 %v5165, 7
      %v5167 = vsub.s32 %v5164, %v5166
      %v5168 = vrot.slane %v5154, %v5167
      %v5169 = vcombine.high %v5145, 0.0
      %v5170 = vcombine.high %v5152, 0.0
      %v5171 = vcombine.high %v5161, 0.0
      %v5172 = vcombine.high %v5168, 0.0
      %v5173 = vcombine.low %v4750, %v4796
      %v5174 = vcombine.high %v4750, %v4796
      %v5176 = vunpack.c.l.s4 1983009808
      %v5177 = vunpack.c.0.s8 %v5176
      %v5178 = vlaneseq
      %v5179 = vshrl.u32 %v5178, 7
      %v5180 = vsub.s32 %v5177, %v5179
      %v5181 = vrot.slane %v5173, %v5180
      %v5183 = vunpack.c.l.s4 1983009808
      %v5184 = vunpack.c.0.s8 %v5183
      %v5185 = vlaneseq
      %v5186 = vshrl.u32 %v5185, 7
      %v5187 = vsub.s32 %v5184, %v5186
      %v5188 = vrot.slane %v5174, %v5187
      %v5189 = vcombine.low %v4772, %v4820
      %v5190 = vcombine.high %v4772, %v4820
      %v5192 = vunpack.c.l.s4 1983009808
      %v5193 = vunpack.c.0.s8 %v5192
      %v5194 = vlaneseq
      %v5195 = vshrl.u32 %v5194, 7
      %v5196 = vsub.s32 %v5193, %v5195
      %v5197 = vrot.slane %v5189, %v5196
      %v5199 = vunpack.c.l.s4 1983009808
      %v5200 = vunpack.c.0.s8 %v5199
      %v5201 = vlaneseq
      %v5202 = vshrl.u32 %v5201, 7
      %v5203 = vsub.s32 %v5200, %v5202
      %v5204 = vrot.slane %v5190, %v5203
      %v5205 = vcombine.low %v5181, %v5197
      %v5206 = vcombine.high %v5181, %v5197
      %v5208 = vunpack.c.l.s4 1934713408
      %v5209 = vunpack.c.0.s8 %v5208
      %v5210 = vlaneseq
      %v5211 = vshrl.u32 %v5210, 7
      %v5212 = vsub.s32 %v5209, %v5211
      %v5213 = vrot.slane %v5205, %v5212
      %v5215 = vunpack.c.l.s4 1934713408
      %v5216 = vunpack.c.0.s8 %v5215
      %v5217 = vlaneseq
      %v5218 = vshrl.u32 %v5217, 7
      %v5219 = vsub.s32 %v5216, %v5218
      %v5220 = vrot.slane %v5206, %v5219
      %v5221 = vcombine.low %v5188, %v5204
      %v5222 = vcombine.high %v5188, %v5204
      %v5224 = vunpack.c.l.s4 1934713408
      %v5225 = vunpack.c.0.s8 %v5224
      %v5226 = vlaneseq
      %v5227 = vshrl.u32 %v5226, 7
      %v5228 = vsub.s32 %v5225, %v5227
      %v5229 = vrot.slane %v5221, %v5228
      %v5231 = vunpack.c.l.s4 1934713408
      %v5232 = vunpack.c.0.s8 %v5231
      %v5233 = vlaneseq
      %v5234 = vshrl.u32 %v5233, 7
      %v5235 = vsub.s32 %v5232, %v5234
      %v5236 = vrot.slane %v5222, %v5235
      %v5237 = vcombine.high %v5213, 0.0
      %v5238 = vcombine.high %v5220, 0.0
      %v5239 = vcombine.high %v5229, 0.0
      %v5240 = vcombine.high %v5236, 0.0
      %v5241 = vcombine.low %v4751, %v4798
      %v5242 = vcombine.high %v4751, %v4798
      %v5244 = vunpack.c.l.s4 1983009808
      %v5245 = vunpack.c.0.s8 %v5244
      %v5246 = vlaneseq
      %v5247 = vshrl.u32 %v5246, 7
      %v5248 = vsub.s32 %v5245, %v5247
      %v5249 = vrot.slane %v5241, %v5248
      %v5251 = vunpack.c.l.s4 1983009808
      %v5252 = vunpack.c.0.s8 %v5251
      %v5253 = vlaneseq
      %v5254 = vshrl.u32 %v5253, 7
      %v5255 = vsub.s32 %v5252, %v5254
      %v5256 = vrot.slane %v5242, %v5255
      %v5257 = vcombine.low %v4774, %v4822
      %v5258 = vcombine.high %v4774, %v4822
      %v5260 = vunpack.c.l.s4 1983009808
      %v5261 = vunpack.c.0.s8 %v5260
      %v5262 = vlaneseq
      %v5263 = vshrl.u32 %v5262, 7
      %v5264 = vsub.s32 %v5261, %v5263
      %v5265 = vrot.slane %v5257, %v5264
      %v5267 = vunpack.c.l.s4 1983009808
      %v5268 = vunpack.c.0.s8 %v5267
      %v5269 = vlaneseq
      %v5270 = vshrl.u32 %v5269, 7
      %v5271 = vsub.s32 %v5268, %v5270
      %v5272 = vrot.slane %v5258, %v5271
      %v5273 = vcombine.low %v5249, %v5265
      %v5274 = vcombine.high %v5249, %v5265
      %v5276 = vunpack.c.l.s4 1934713408
      %v5277 = vunpack.c.0.s8 %v5276
      %v5278 = vlaneseq
      %v5279 = vshrl.u32 %v5278, 7
      %v5280 = vsub.s32 %v5277, %v5279
      %v5281 = vrot.slane %v5273, %v5280
      %v5283 = vunpack.c.l.s4 1934713408
      %v5284 = vunpack.c.0.s8 %v5283
      %v5285 = vlaneseq
      %v5286 = vshrl.u32 %v5285, 7
      %v5287 = vsub.s32 %v5284, %v5286
      %v5288 = vrot.slane %v5274, %v5287
      %v5289 = vcombine.low %v5256, %v5272
      %v5290 = vcombine.high %v5256, %v5272
      %v5292 = vunpack.c.l.s4 1934713408
      %v5293 = vunpack.c.0.s8 %v5292
      %v5294 = vlaneseq
      %v5295 = vshrl.u32 %v5294, 7
      %v5296 = vsub.s32 %v5293, %v5295
      %v5297 = vrot.slane %v5289, %v5296
      %v5299 = vunpack.c.l.s4 1934713408
      %v5300 = vunpack.c.0.s8 %v5299
      %v5301 = vlaneseq
      %v5302 = vshrl.u32 %v5301, 7
      %v5303 = vsub.s32 %v5300, %v5302
      %v5304 = vrot.slane %v5290, %v5303
      %v5305 = vcombine.high %v5281, 0.0
      %v5306 = vcombine.high %v5288, 0.0
      %v5307 = vcombine.high %v5297, 0.0
      %v5308 = vcombine.high %v5304, 0.0
      %v5309 = vcombine.low %v4752, %v4800
      %v5310 = vcombine.high %v4752, %v4800
      %v5312 = vunpack.c.l.s4 1983009808
      %v5313 = vunpack.c.0.s8 %v5312
      %v5314 = vlaneseq
      %v5315 = vshrl.u32 %v5314, 7
      %v5316 = vsub.s32 %v5313, %v5315
      %v5317 = vrot.slane %v5309, %v5316
      %v5319 = vunpack.c.l.s4 1983009808
      %v5320 = vunpack.c.0.s8 %v5319
      %v5321 = vlaneseq
      %v5322 = vshrl.u32 %v5321, 7
      %v5323 = vsub.s32 %v5320, %v5322
      %v5324 = vrot.slane %v5310, %v5323
      %v5325 = vcombine.low %v4776, %v4824
      %v5326 = vcombine.high %v4776, %v4824
      %v5328 = vunpack.c.l.s4 1983009808
      %v5329 = vunpack.c.0.s8 %v5328
      %v5330 = vlaneseq
      %v5331 = vshrl.u32 %v5330, 7
      %v5332 = vsub.s32 %v5329, %v5331
      %v5333 = vrot.slane %v5325, %v5332
      %v5335 = vunpack.c.l.s4 1983009808
      %v5336 = vunpack.c.0.s8 %v5335
      %v5337 = vlaneseq
      %v5338 = vshrl.u32 %v5337, 7
      %v5339 = vsub.s32 %v5336, %v5338
      %v5340 = vrot.slane %v5326, %v5339
      %v5341 = vcombine.low %v5317, %v5333
      %v5342 = vcombine.high %v5317, %v5333
      %v5344 = vunpack.c.l.s4 1934713408
      %v5345 = vunpack.c.0.s8 %v5344
      %v5346 = vlaneseq
      %v5347 = vshrl.u32 %v5346, 7
      %v5348 = vsub.s32 %v5345, %v5347
      %v5349 = vrot.slane %v5341, %v5348
      %v5351 = vunpack.c.l.s4 1934713408
      %v5352 = vunpack.c.0.s8 %v5351
      %v5353 = vlaneseq
      %v5354 = vshrl.u32 %v5353, 7
      %v5355 = vsub.s32 %v5352, %v5354
      %v5356 = vrot.slane %v5342, %v5355
      %v5357 = vcombine.low %v5324, %v5340
      %v5358 = vcombine.high %v5324, %v5340
      %v5360 = vunpack.c.l.s4 1934713408
      %v5361 = vunpack.c.0.s8 %v5360
      %v5362 = vlaneseq
      %v5363 = vshrl.u32 %v5362, 7
      %v5364 = vsub.s32 %v5361, %v5363
      %v5365 = vrot.slane %v5357, %v5364
      %v5367 = vunpack.c.l.s4 1934713408
      %v5368 = vunpack.c.0.s8 %v5367
      %v5369 = vlaneseq
      %v5370 = vshrl.u32 %v5369, 7
      %v5371 = vsub.s32 %v5368, %v5370
      %v5372 = vrot.slane %v5358, %v5371
      %v5373 = vcombine.high %v5349, 0.0
      %v5374 = vcombine.high %v5356, 0.0
      %v5375 = vcombine.high %v5365, 0.0
      %v5376 = vcombine.high %v5372, 0.0
      %v5377 = vsel %vm1749, %v4873, 0.0
      %v5378 = vrot.slane %v5377, 4
      %v5379 = vadd.f32 %v5377, %v5378
      %v5380 = vrot.slane %v5379, 2
      %v5381 = vadd.f32 %v5379, %v5380
      %v5382 = vrot.slane %v5381, 1
      %v5383 = vadd.f32 %v5381, %v5382
      %v5384 = vsel %vm1749, %v4897, 0.0
      %v5385 = vrot.slane %v5384, 4
      %v5386 = vadd.f32 %v5384, %v5385
      %v5387 = vrot.slane %v5386, 2
      %v5388 = vadd.f32 %v5386, %v5387
      %v5389 = vrot.slane %v5388, 1
      %v5390 = vadd.f32 %v5388, %v5389
      %v5391 = vsel %vm1749, %v4880, 0.0
      %v5392 = vrot.slane %v5391, 4
      %v5393 = vadd.f32 %v5391, %v5392
      %v5394 = vrot.slane %v5393, 2
      %v5395 = vadd.f32 %v5393, %v5394
      %v5396 = vrot.slane %v5395, 1
      %v5397 = vadd.f32 %v5395, %v5396
      %v5398 = vsel %vm1749, %v4898, 0.0
      %v5399 = vrot.slane %v5398, 4
      %v5400 = vadd.f32 %v5398, %v5399
      %v5401 = vrot.slane %v5400, 2
      %v5402 = vadd.f32 %v5400, %v5401
      %v5403 = vrot.slane %v5402, 1
      %v5404 = vadd.f32 %v5402, %v5403
      %v5405 = vsel %vm1749, %v4889, 0.0
      %v5406 = vrot.slane %v5405, 4
      %v5407 = vadd.f32 %v5405, %v5406
      %v5408 = vrot.slane %v5407, 2
      %v5409 = vadd.f32 %v5407, %v5408
      %v5410 = vrot.slane %v5409, 1
      %v5411 = vadd.f32 %v5409, %v5410
      %v5412 = vsel %vm1749, %v4899, 0.0
      %v5413 = vrot.slane %v5412, 4
      %v5414 = vadd.f32 %v5412, %v5413
      %v5415 = vrot.slane %v5414, 2
      %v5416 = vadd.f32 %v5414, %v5415
      %v5417 = vrot.slane %v5416, 1
      %v5418 = vadd.f32 %v5416, %v5417
      %v5419 = vsel %vm1749, %v4896, 0.0
      %v5420 = vrot.slane %v5419, 4
      %v5421 = vadd.f32 %v5419, %v5420
      %v5422 = vrot.slane %v5421, 2
      %v5423 = vadd.f32 %v5421, %v5422
      %v5424 = vrot.slane %v5423, 1
      %v5425 = vadd.f32 %v5423, %v5424
      %v5426 = vsel %vm1749, %v4900, 0.0
      %v5427 = vrot.slane %v5426, 4
      %v5428 = vadd.f32 %v5426, %v5427
      %v5429 = vrot.slane %v5428, 2
      %v5430 = vadd.f32 %v5428, %v5429
      %v5431 = vrot.slane %v5430, 1
      %v5432 = vadd.f32 %v5430, %v5431
      %v5433 = vsel %vm1749, %v4941, 0.0
      %v5434 = vrot.slane %v5433, 4
      %v5435 = vadd.f32 %v5433, %v5434
      %v5436 = vrot.slane %v5435, 2
      %v5437 = vadd.f32 %v5435, %v5436
      %v5438 = vrot.slane %v5437, 1
      %v5439 = vadd.f32 %v5437, %v5438
      %v5440 = vsel %vm1749, %v4965, 0.0
      %v5441 = vrot.slane %v5440, 4
      %v5442 = vadd.f32 %v5440, %v5441
      %v5443 = vrot.slane %v5442, 2
      %v5444 = vadd.f32 %v5442, %v5443
      %v5445 = vrot.slane %v5444, 1
      %v5446 = vadd.f32 %v5444, %v5445
      %v5447 = vsel %vm1749, %v4948, 0.0
      %v5448 = vrot.slane %v5447, 4
      %v5449 = vadd.f32 %v5447, %v5448
      %v5450 = vrot.slane %v5449, 2
      %v5451 = vadd.f32 %v5449, %v5450
      %v5452 = vrot.slane %v5451, 1
      %v5453 = vadd.f32 %v5451, %v5452
      %v5454 = vsel %vm1749, %v4966, 0.0
      %v5455 = vrot.slane %v5454, 4
      %v5456 = vadd.f32 %v5454, %v5455
      %v5457 = vrot.slane %v5456, 2
      %v5458 = vadd.f32 %v5456, %v5457
      %v5459 = vrot.slane %v5458, 1
      %v5460 = vadd.f32 %v5458, %v5459
      %v5461 = vsel %vm1749, %v4957, 0.0
      %v5462 = vrot.slane %v5461, 4
      %v5463 = vadd.f32 %v5461, %v5462
      %v5464 = vrot.slane %v5463, 2
      %v5465 = vadd.f32 %v5463, %v5464
      %v5466 = vrot.slane %v5465, 1
      %v5467 = vadd.f32 %v5465, %v5466
      %v5468 = vsel %vm1749, %v4967, 0.0
      %v5469 = vrot.slane %v5468, 4
      %v5470 = vadd.f32 %v5468, %v5469
      %v5471 = vrot.slane %v5470, 2
      %v5472 = vadd.f32 %v5470, %v5471
      %v5473 = vrot.slane %v5472, 1
      %v5474 = vadd.f32 %v5472, %v5473
      %v5475 = vsel %vm1749, %v4964, 0.0
      %v5476 = vrot.slane %v5475, 4
      %v5477 = vadd.f32 %v5475, %v5476
      %v5478 = vrot.slane %v5477, 2
      %v5479 = vadd.f32 %v5477, %v5478
      %v5480 = vrot.slane %v5479, 1
      %v5481 = vadd.f32 %v5479, %v5480
      %v5482 = vsel %vm1749, %v4968, 0.0
      %v5483 = vrot.slane %v5482, 4
      %v5484 = vadd.f32 %v5482, %v5483
      %v5485 = vrot.slane %v5484, 2
      %v5486 = vadd.f32 %v5484, %v5485
      %v5487 = vrot.slane %v5486, 1
      %v5488 = vadd.f32 %v5486, %v5487
      %v5489 = vsel %vm1749, %v5009, 0.0
      %v5490 = vrot.slane %v5489, 4
      %v5491 = vadd.f32 %v5489, %v5490
      %v5492 = vrot.slane %v5491, 2
      %v5493 = vadd.f32 %v5491, %v5492
      %v5494 = vrot.slane %v5493, 1
      %v5495 = vadd.f32 %v5493, %v5494
      %v5496 = vsel %vm1749, %v5033, 0.0
      %v5497 = vrot.slane %v5496, 4
      %v5498 = vadd.f32 %v5496, %v5497
      %v5499 = vrot.slane %v5498, 2
      %v5500 = vadd.f32 %v5498, %v5499
      %v5501 = vrot.slane %v5500, 1
      %v5502 = vadd.f32 %v5500, %v5501
      %v5503 = vsel %vm1749, %v5016, 0.0
      %v5504 = vrot.slane %v5503, 4
      %v5505 = vadd.f32 %v5503, %v5504
      %v5506 = vrot.slane %v5505, 2
      %v5507 = vadd.f32 %v5505, %v5506
      %v5508 = vrot.slane %v5507, 1
      %v5509 = vadd.f32 %v5507, %v5508
      %v5510 = vsel %vm1749, %v5034, 0.0
      %v5511 = vrot.slane %v5510, 4
      %v5512 = vadd.f32 %v5510, %v5511
      %v5513 = vrot.slane %v5512, 2
      %v5514 = vadd.f32 %v5512, %v5513
      %v5515 = vrot.slane %v5514, 1
      %v5516 = vadd.f32 %v5514, %v5515
      %v5517 = vsel %vm1749, %v5025, 0.0
      %v5518 = vrot.slane %v5517, 4
      %v5519 = vadd.f32 %v5517, %v5518
      %v5520 = vrot.slane %v5519, 2
      %v5521 = vadd.f32 %v5519, %v5520
      %v5522 = vrot.slane %v5521, 1
      %v5523 = vadd.f32 %v5521, %v5522
      %v5524 = vsel %vm1749, %v5035, 0.0
      %v5525 = vrot.slane %v5524, 4
      %v5526 = vadd.f32 %v5524, %v5525
      %v5527 = vrot.slane %v5526, 2
      %v5528 = vadd.f32 %v5526, %v5527
      %v5529 = vrot.slane %v5528, 1
      %v5530 = vadd.f32 %v5528, %v5529
      %v5531 = vsel %vm1749, %v5032, 0.0
      %v5532 = vrot.slane %v5531, 4
      %v5533 = vadd.f32 %v5531, %v5532
      %v5534 = vrot.slane %v5533, 2
      %v5535 = vadd.f32 %v5533, %v5534
      %v5536 = vrot.slane %v5535, 1
      %v5537 = vadd.f32 %v5535, %v5536
      %v5538 = vsel %vm1749, %v5036, 0.0
      %v5539 = vrot.slane %v5538, 4
      %v5540 = vadd.f32 %v5538, %v5539
      %v5541 = vrot.slane %v5540, 2
      %v5542 = vadd.f32 %v5540, %v5541
      %v5543 = vrot.slane %v5542, 1
      %v5544 = vadd.f32 %v5542, %v5543
      %v5545 = vsel %vm1749, %v5077, 0.0
      %v5546 = vrot.slane %v5545, 4
      %v5547 = vadd.f32 %v5545, %v5546
      %v5548 = vrot.slane %v5547, 2
      %v5549 = vadd.f32 %v5547, %v5548
      %v5550 = vrot.slane %v5549, 1
      %v5551 = vadd.f32 %v5549, %v5550
      %v5552 = vsel %vm1749, %v5101, 0.0
      %v5553 = vrot.slane %v5552, 4
      %v5554 = vadd.f32 %v5552, %v5553
      %v5555 = vrot.slane %v5554, 2
      %v5556 = vadd.f32 %v5554, %v5555
      %v5557 = vrot.slane %v5556, 1
      %v5558 = vadd.f32 %v5556, %v5557
      %v5559 = vsel %vm1749, %v5084, 0.0
      %v5560 = vrot.slane %v5559, 4
      %v5561 = vadd.f32 %v5559, %v5560
      %v5562 = vrot.slane %v5561, 2
      %v5563 = vadd.f32 %v5561, %v5562
      %v5564 = vrot.slane %v5563, 1
      %v5565 = vadd.f32 %v5563, %v5564
      %v5566 = vsel %vm1749, %v5102, 0.0
      %v5567 = vrot.slane %v5566, 4
      %v5568 = vadd.f32 %v5566, %v5567
      %v5569 = vrot.slane %v5568, 2
      %v5570 = vadd.f32 %v5568, %v5569
      %v5571 = vrot.slane %v5570, 1
      %v5572 = vadd.f32 %v5570, %v5571
      %v5573 = vsel %vm1749, %v5093, 0.0
      %v5574 = vrot.slane %v5573, 4
      %v5575 = vadd.f32 %v5573, %v5574
      %v5576 = vrot.slane %v5575, 2
      %v5577 = vadd.f32 %v5575, %v5576
      %v5578 = vrot.slane %v5577, 1
      %v5579 = vadd.f32 %v5577, %v5578
      %v5580 = vsel %vm1749, %v5103, 0.0
      %v5581 = vrot.slane %v5580, 4
      %v5582 = vadd.f32 %v5580, %v5581
      %v5583 = vrot.slane %v5582, 2
      %v5584 = vadd.f32 %v5582, %v5583
      %v5585 = vrot.slane %v5584, 1
      %v5586 = vadd.f32 %v5584, %v5585
      %v5587 = vsel %vm1749, %v5100, 0.0
      %v5588 = vrot.slane %v5587, 4
      %v5589 = vadd.f32 %v5587, %v5588
      %v5590 = vrot.slane %v5589, 2
      %v5591 = vadd.f32 %v5589, %v5590
      %v5592 = vrot.slane %v5591, 1
      %v5593 = vadd.f32 %v5591, %v5592
      %v5594 = vsel %vm1749, %v5104, 0.0
      %v5595 = vrot.slane %v5594, 4
      %v5596 = vadd.f32 %v5594, %v5595
      %v5597 = vrot.slane %v5596, 2
      %v5598 = vadd.f32 %v5596, %v5597
      %v5599 = vrot.slane %v5598, 1
      %v5600 = vadd.f32 %v5598, %v5599
      %v5601 = vsel %vm1749, %v5145, 0.0
      %v5602 = vrot.slane %v5601, 4
      %v5603 = vadd.f32 %v5601, %v5602
      %v5604 = vrot.slane %v5603, 2
      %v5605 = vadd.f32 %v5603, %v5604
      %v5606 = vrot.slane %v5605, 1
      %v5607 = vadd.f32 %v5605, %v5606
      %v5608 = vsel %vm1749, %v5169, 0.0
      %v5609 = vrot.slane %v5608, 4
      %v5610 = vadd.f32 %v5608, %v5609
      %v5611 = vrot.slane %v5610, 2
      %v5612 = vadd.f32 %v5610, %v5611
      %v5613 = vrot.slane %v5612, 1
      %v5614 = vadd.f32 %v5612, %v5613
      %v5615 = vsel %vm1749, %v5152, 0.0
      %v5616 = vrot.slane %v5615, 4
      %v5617 = vadd.f32 %v5615, %v5616
      %v5618 = vrot.slane %v5617, 2
      %v5619 = vadd.f32 %v5617, %v5618
      %v5620 = vrot.slane %v5619, 1
      %v5621 = vadd.f32 %v5619, %v5620
      %v5622 = vsel %vm1749, %v5170, 0.0
      %v5623 = vrot.slane %v5622, 4
      %v5624 = vadd.f32 %v5622, %v5623
      %v5625 = vrot.slane %v5624, 2
      %v5626 = vadd.f32 %v5624, %v5625
      %v5627 = vrot.slane %v5626, 1
      %v5628 = vadd.f32 %v5626, %v5627
      %v5629 = vsel %vm1749, %v5161, 0.0
      %v5630 = vrot.slane %v5629, 4
      %v5631 = vadd.f32 %v5629, %v5630
      %v5632 = vrot.slane %v5631, 2
      %v5633 = vadd.f32 %v5631, %v5632
      %v5634 = vrot.slane %v5633, 1
      %v5635 = vadd.f32 %v5633, %v5634
      %v5636 = vsel %vm1749, %v5171, 0.0
      %v5637 = vrot.slane %v5636, 4
      %v5638 = vadd.f32 %v5636, %v5637
      %v5639 = vrot.slane %v5638, 2
      %v5640 = vadd.f32 %v5638, %v5639
      %v5641 = vrot.slane %v5640, 1
      %v5642 = vadd.f32 %v5640, %v5641
      %v5643 = vsel %vm1749, %v5168, 0.0
      %v5644 = vrot.slane %v5643, 4
      %v5645 = vadd.f32 %v5643, %v5644
      %v5646 = vrot.slane %v5645, 2
      %v5647 = vadd.f32 %v5645, %v5646
      %v5648 = vrot.slane %v5647, 1
      %v5649 = vadd.f32 %v5647, %v5648
      %v5650 = vsel %vm1749, %v5172, 0.0
      %v5651 = vrot.slane %v5650, 4
      %v5652 = vadd.f32 %v5650, %v5651
      %v5653 = vrot.slane %v5652, 2
      %v5654 = vadd.f32 %v5652, %v5653
      %v5655 = vrot.slane %v5654, 1
      %v5656 = vadd.f32 %v5654, %v5655
      %v5657 = vsel %vm1749, %v5213, 0.0
      %v5658 = vrot.slane %v5657, 4
      %v5659 = vadd.f32 %v5657, %v5658
      %v5660 = vrot.slane %v5659, 2
      %v5661 = vadd.f32 %v5659, %v5660
      %v5662 = vrot.slane %v5661, 1
      %v5663 = vadd.f32 %v5661, %v5662
      %v5664 = vsel %vm1749, %v5237, 0.0
      %v5665 = vrot.slane %v5664, 4
      %v5666 = vadd.f32 %v5664, %v5665
      %v5667 = vrot.slane %v5666, 2
      %v5668 = vadd.f32 %v5666, %v5667
      %v5669 = vrot.slane %v5668, 1
      %v5670 = vadd.f32 %v5668, %v5669
      %v5671 = vsel %vm1749, %v5220, 0.0
      %v5672 = vrot.slane %v5671, 4
      %v5673 = vadd.f32 %v5671, %v5672
      %v5674 = vrot.slane %v5673, 2
      %v5675 = vadd.f32 %v5673, %v5674
      %v5676 = vrot.slane %v5675, 1
      %v5677 = vadd.f32 %v5675, %v5676
      %v5678 = vsel %vm1749, %v5238, 0.0
      %v5679 = vrot.slane %v5678, 4
      %v5680 = vadd.f32 %v5678, %v5679
      %v5681 = vrot.slane %v5680, 2
      %v5682 = vadd.f32 %v5680, %v5681
      %v5683 = vrot.slane %v5682, 1
      %v5684 = vadd.f32 %v5682, %v5683
      %v5685 = vsel %vm1749, %v5229, 0.0
      %v5686 = vrot.slane %v5685, 4
      %v5687 = vadd.f32 %v5685, %v5686
      %v5688 = vrot.slane %v5687, 2
      %v5689 = vadd.f32 %v5687, %v5688
      %v5690 = vrot.slane %v5689, 1
      %v5691 = vadd.f32 %v5689, %v5690
      %v5692 = vsel %vm1749, %v5239, 0.0
      %v5693 = vrot.slane %v5692, 4
      %v5694 = vadd.f32 %v5692, %v5693
      %v5695 = vrot.slane %v5694, 2
      %v5696 = vadd.f32 %v5694, %v5695
      %v5697 = vrot.slane %v5696, 1
      %v5698 = vadd.f32 %v5696, %v5697
      %v5699 = vsel %vm1749, %v5236, 0.0
      %v5700 = vrot.slane %v5699, 4
      %v5701 = vadd.f32 %v5699, %v5700
      %v5702 = vrot.slane %v5701, 2
      %v5703 = vadd.f32 %v5701, %v5702
      %v5704 = vrot.slane %v5703, 1
      %v5705 = vadd.f32 %v5703, %v5704
      %v5706 = vsel %vm1749, %v5240, 0.0
      %v5707 = vrot.slane %v5706, 4
      %v5708 = vadd.f32 %v5706, %v5707
      %v5709 = vrot.slane %v5708, 2
      %v5710 = vadd.f32 %v5708, %v5709
      %v5711 = vrot.slane %v5710, 1
      %v5712 = vadd.f32 %v5710, %v5711
      %v5713 = vsel %vm1749, %v5281, 0.0
      %v5714 = vrot.slane %v5713, 4
      %v5715 = vadd.f32 %v5713, %v5714
      %v5716 = vrot.slane %v5715, 2
      %v5717 = vadd.f32 %v5715, %v5716
      %v5718 = vrot.slane %v5717, 1
      %v5719 = vadd.f32 %v5717, %v5718
      %v5720 = vsel %vm1749, %v5305, 0.0
      %v5721 = vrot.slane %v5720, 4
      %v5722 = vadd.f32 %v5720, %v5721
      %v5723 = vrot.slane %v5722, 2
      %v5724 = vadd.f32 %v5722, %v5723
      %v5725 = vrot.slane %v5724, 1
      %v5726 = vadd.f32 %v5724, %v5725
      %v5727 = vsel %vm1749, %v5288, 0.0
      %v5728 = vrot.slane %v5727, 4
      %v5729 = vadd.f32 %v5727, %v5728
      %v5730 = vrot.slane %v5729, 2
      %v5731 = vadd.f32 %v5729, %v5730
      %v5732 = vrot.slane %v5731, 1
      %v5733 = vadd.f32 %v5731, %v5732
      %v5734 = vsel %vm1749, %v5306, 0.0
      %v5735 = vrot.slane %v5734, 4
      %v5736 = vadd.f32 %v5734, %v5735
      %v5737 = vrot.slane %v5736, 2
      %v5738 = vadd.f32 %v5736, %v5737
      %v5739 = vrot.slane %v5738, 1
      %v5740 = vadd.f32 %v5738, %v5739
      %v5741 = vsel %vm1749, %v5297, 0.0
      %v5742 = vrot.slane %v5741, 4
      %v5743 = vadd.f32 %v5741, %v5742
      %v5744 = vrot.slane %v5743, 2
      %v5745 = vadd.f32 %v5743, %v5744
      %v5746 = vrot.slane %v5745, 1
      %v5747 = vadd.f32 %v5745, %v5746
      %v5748 = vsel %vm1749, %v5307, 0.0
      %v5749 = vrot.slane %v5748, 4
      %v5750 = vadd.f32 %v5748, %v5749
      %v5751 = vrot.slane %v5750, 2
      %v5752 = vadd.f32 %v5750, %v5751
      %v5753 = vrot.slane %v5752, 1
      %v5754 = vadd.f32 %v5752, %v5753
      %v5755 = vsel %vm1749, %v5304, 0.0
      %v5756 = vrot.slane %v5755, 4
      %v5757 = vadd.f32 %v5755, %v5756
      %v5758 = vrot.slane %v5757, 2
      %v5759 = vadd.f32 %v5757, %v5758
      %v5760 = vrot.slane %v5759, 1
      %v5761 = vadd.f32 %v5759, %v5760
      %v5762 = vsel %vm1749, %v5308, 0.0
      %v5763 = vrot.slane %v5762, 4
      %v5764 = vadd.f32 %v5762, %v5763
      %v5765 = vrot.slane %v5764, 2
      %v5766 = vadd.f32 %v5764, %v5765
      %v5767 = vrot.slane %v5766, 1
      %v5768 = vadd.f32 %v5766, %v5767
      %v5769 = vsel %vm1749, %v5349, 0.0
      %v5770 = vrot.slane %v5769, 4
      %v5771 = vadd.f32 %v5769, %v5770
      %v5772 = vrot.slane %v5771, 2
      %v5773 = vadd.f32 %v5771, %v5772
      %v5774 = vrot.slane %v5773, 1
      %v5775 = vadd.f32 %v5773, %v5774
      %v5776 = vsel %vm1749, %v5373, 0.0
      %v5777 = vrot.slane %v5776, 4
      %v5778 = vadd.f32 %v5776, %v5777
      %v5779 = vrot.slane %v5778, 2
      %v5780 = vadd.f32 %v5778, %v5779
      %v5781 = vrot.slane %v5780, 1
      %v5782 = vadd.f32 %v5780, %v5781
      %v5783 = vsel %vm1749, %v5356, 0.0
      %v5784 = vrot.slane %v5783, 4
      %v5785 = vadd.f32 %v5783, %v5784
      %v5786 = vrot.slane %v5785, 2
      %v5787 = vadd.f32 %v5785, %v5786
      %v5788 = vrot.slane %v5787, 1
      %v5789 = vadd.f32 %v5787, %v5788
      %v5790 = vsel %vm1749, %v5374, 0.0
      %v5791 = vrot.slane %v5790, 4
      %v5792 = vadd.f32 %v5790, %v5791
      %v5793 = vrot.slane %v5792, 2
      %v5794 = vadd.f32 %v5792, %v5793
      %v5795 = vrot.slane %v5794, 1
      %v5796 = vadd.f32 %v5794, %v5795
      %v5797 = vsel %vm1749, %v5365, 0.0
      %v5798 = vrot.slane %v5797, 4
      %v5799 = vadd.f32 %v5797, %v5798
      %v5800 = vrot.slane %v5799, 2
      %v5801 = vadd.f32 %v5799, %v5800
      %v5802 = vrot.slane %v5801, 1
      %v5803 = vadd.f32 %v5801, %v5802
      %v5804 = vsel %vm1749, %v5375, 0.0
      %v5805 = vrot.slane %v5804, 4
      %v5806 = vadd.f32 %v5804, %v5805
      %v5807 = vrot.slane %v5806, 2
      %v5808 = vadd.f32 %v5806, %v5807
      %v5809 = vrot.slane %v5808, 1
      %v5810 = vadd.f32 %v5808, %v5809
      %v5811 = vsel %vm1749, %v5372, 0.0
      %v5812 = vrot.slane %v5811, 4
      %v5813 = vadd.f32 %v5811, %v5812
      %v5814 = vrot.slane %v5813, 2
      %v5815 = vadd.f32 %v5813, %v5814
      %v5816 = vrot.slane %v5815, 1
      %v5817 = vadd.f32 %v5815, %v5816
      %v5818 = vsel %vm1749, %v5376, 0.0
      %v5819 = vrot.slane %v5818, 4
      %v5820 = vadd.f32 %v5818, %v5819
      %v5821 = vrot.slane %v5820, 2
      %v5822 = vadd.f32 %v5820, %v5821
      %v5823 = vrot.slane %v5822, 1
      %v5824 = vadd.f32 %v5822, %v5823
      %v5889 = vsel %vm3244, %v5390, %v5383
      %v5890 = vsel %vm3246, %v5397, %v5889
      %vm5891 = vcmask 1043459
      %v5892 = vsel %vm5891, %v5404, %v5890
      %v5893 = vsel %vm3236, %v5411, %v5892
      %v5894 = vsel %vm3238, %v5418, %v5893
      %v5895 = vsel %vm3240, %v5425, %v5894
      %v5896 = vsel %vm3242, %v5432, %v5895
      %v5897 = vsel %vm3244, %v5446, %v5439
      %v5898 = vsel %vm3246, %v5453, %v5897
      %v5899 = vsel %vm5891, %v5460, %v5898
      %v5900 = vsel %vm3236, %v5467, %v5899
      %v5901 = vsel %vm3238, %v5474, %v5900
      %v5902 = vsel %vm3240, %v5481, %v5901
      %v5903 = vsel %vm3242, %v5488, %v5902
      %v5904 = vsel %vm3244, %v5502, %v5495
      %v5905 = vsel %vm3246, %v5509, %v5904
      %v5906 = vsel %vm5891, %v5516, %v5905
      %v5907 = vsel %vm3236, %v5523, %v5906
      %v5908 = vsel %vm3238, %v5530, %v5907
      %v5909 = vsel %vm3240, %v5537, %v5908
      %v5910 = vsel %vm3242, %v5544, %v5909
      %v5911 = vsel %vm3244, %v5558, %v5551
      %v5912 = vsel %vm3246, %v5565, %v5911
      %v5913 = vsel %vm5891, %v5572, %v5912
      %v5914 = vsel %vm3236, %v5579, %v5913
      %v5915 = vsel %vm3238, %v5586, %v5914
      %v5916 = vsel %vm3240, %v5593, %v5915
      %v5917 = vsel %vm3242, %v5600, %v5916
      %v5918 = vsel %vm3244, %v5614, %v5607
      %v5919 = vsel %vm3246, %v5621, %v5918
      %v5920 = vsel %vm5891, %v5628, %v5919
      %v5921 = vsel %vm3236, %v5635, %v5920
      %v5922 = vsel %vm3238, %v5642, %v5921
      %v5923 = vsel %vm3240, %v5649, %v5922
      %v5924 = vsel %vm3242, %v5656, %v5923
      %v5925 = vsel %vm3244, %v5670, %v5663
      %v5926 = vsel %vm3246, %v5677, %v5925
      %v5927 = vsel %vm5891, %v5684, %v5926
      %v5928 = vsel %vm3236, %v5691, %v5927
      %v5929 = vsel %vm3238, %v5698, %v5928
      %v5930 = vsel %vm3240, %v5705, %v5929
      %v5931 = vsel %vm3242, %v5712, %v5930
      %v5932 = vsel %vm3244, %v5726, %v5719
      %v5933 = vsel %vm3246, %v5733, %v5932
      %v5934 = vsel %vm5891, %v5740, %v5933
      %v5935 = vsel %vm3236, %v5747, %v5934
      %v5936 = vsel %vm3238, %v5754, %v5935
      %v5937 = vsel %vm3240, %v5761, %v5936
      %v5938 = vsel %vm3242, %v5768, %v5937
      %v5939 = vsel %vm3244, %v5782, %v5775
      %v5940 = vsel %vm3246, %v5789, %v5939
      %v5941 = vsel %vm5891, %v5796, %v5940
      %v5942 = vsel %vm3236, %v5803, %v5941
      %v5943 = vsel %vm3238, %v5810, %v5942
      %v5944 = vsel %vm3240, %v5817, %v5943
      %v5945 = vsel %vm3242, %v5824, %v5944
      %v5954 = vcombine.high %v5896, 0.0
      %v5956 = vunpack.c.l.s4 1983009808
      %v5957 = vunpack.c.0.s8 %v5956
      %v5958 = vlaneseq
      %v5959 = vshrl.u32 %v5958, 7
      %v5960 = vsub.s32 %v5957, %v5959
      %v5961 = vrot.slane %v5896, %v5960
      %v5963 = vunpack.c.l.s4 1983009808
      %v5964 = vunpack.c.0.s8 %v5963
      %v5965 = vlaneseq
      %v5966 = vshrl.u32 %v5965, 7
      %v5967 = vsub.s32 %v5964, %v5966
      %v5968 = vrot.slane %v5954, %v5967
      %v5969 = vcombine.high %v5961, 0.0
      %v5971 = vunpack.c.l.s4 1934713408
      %v5972 = vunpack.c.0.s8 %v5971
      %v5973 = vlaneseq
      %v5974 = vshrl.u32 %v5973, 7
      %v5975 = vsub.s32 %v5972, %v5974
      %v5976 = vrot.slane %v5961, %v5975
      %v5978 = vunpack.c.l.s4 1934713408
      %v5979 = vunpack.c.0.s8 %v5978
      %v5980 = vlaneseq
      %v5981 = vshrl.u32 %v5980, 7
      %v5982 = vsub.s32 %v5979, %v5981
      %v5983 = vrot.slane %v5969, %v5982
      %v5984 = vcombine.high %v5968, 0.0
      %v5986 = vunpack.c.l.s4 1934713408
      %v5987 = vunpack.c.0.s8 %v5986
      %v5988 = vlaneseq
      %v5989 = vshrl.u32 %v5988, 7
      %v5990 = vsub.s32 %v5987, %v5989
      %v5991 = vrot.slane %v5968, %v5990
      %v5993 = vunpack.c.l.s4 1934713408
      %v5994 = vunpack.c.0.s8 %v5993
      %v5995 = vlaneseq
      %v5996 = vshrl.u32 %v5995, 7
      %v5997 = vsub.s32 %v5994, %v5996
      %v5998 = vrot.slane %v5984, %v5997
      %v5999 = vcombine.high %v5976, 0.0
      %v6000 = vcombine.high %v5983, 0.0
      %v6001 = vcombine.high %v5991, 0.0
      %v6002 = vcombine.high %v5998, 0.0
      %v6003 = vcombine.high %v5903, 0.0
      %v6005 = vunpack.c.l.s4 1983009808
      %v6006 = vunpack.c.0.s8 %v6005
      %v6007 = vlaneseq
      %v6008 = vshrl.u32 %v6007, 7
      %v6009 = vsub.s32 %v6006, %v6008
      %v6010 = vrot.slane %v5903, %v6009
      %v6012 = vunpack.c.l.s4 1983009808
      %v6013 = vunpack.c.0.s8 %v6012
      %v6014 = vlaneseq
      %v6015 = vshrl.u32 %v6014, 7
      %v6016 = vsub.s32 %v6013, %v6015
      %v6017 = vrot.slane %v6003, %v6016
      %v6018 = vcombine.high %v6010, 0.0
      %v6020 = vunpack.c.l.s4 1934713408
      %v6021 = vunpack.c.0.s8 %v6020
      %v6022 = vlaneseq
      %v6023 = vshrl.u32 %v6022, 7
      %v6024 = vsub.s32 %v6021, %v6023
      %v6025 = vrot.slane %v6010, %v6024
      %v6027 = vunpack.c.l.s4 1934713408
      %v6028 = vunpack.c.0.s8 %v6027
      %v6029 = vlaneseq
      %v6030 = vshrl.u32 %v6029, 7
      %v6031 = vsub.s32 %v6028, %v6030
      %v6032 = vrot.slane %v6018, %v6031
      %v6033 = vcombine.high %v6017, 0.0
      %v6035 = vunpack.c.l.s4 1934713408
      %v6036 = vunpack.c.0.s8 %v6035
      %v6037 = vlaneseq
      %v6038 = vshrl.u32 %v6037, 7
      %v6039 = vsub.s32 %v6036, %v6038
      %v6040 = vrot.slane %v6017, %v6039
      %v6042 = vunpack.c.l.s4 1934713408
      %v6043 = vunpack.c.0.s8 %v6042
      %v6044 = vlaneseq
      %v6045 = vshrl.u32 %v6044, 7
      %v6046 = vsub.s32 %v6043, %v6045
      %v6047 = vrot.slane %v6033, %v6046
      %v6048 = vcombine.high %v6025, 0.0
      %v6049 = vcombine.high %v6032, 0.0
      %v6050 = vcombine.high %v6040, 0.0
      %v6051 = vcombine.high %v6047, 0.0
      %v6052 = vcombine.high %v5910, 0.0
      %v6054 = vunpack.c.l.s4 1983009808
      %v6055 = vunpack.c.0.s8 %v6054
      %v6056 = vlaneseq
      %v6057 = vshrl.u32 %v6056, 7
      %v6058 = vsub.s32 %v6055, %v6057
      %v6059 = vrot.slane %v5910, %v6058
      %v6061 = vunpack.c.l.s4 1983009808
      %v6062 = vunpack.c.0.s8 %v6061
      %v6063 = vlaneseq
      %v6064 = vshrl.u32 %v6063, 7
      %v6065 = vsub.s32 %v6062, %v6064
      %v6066 = vrot.slane %v6052, %v6065
      %v6067 = vcombine.high %v6059, 0.0
      %v6069 = vunpack.c.l.s4 1934713408
      %v6070 = vunpack.c.0.s8 %v6069
      %v6071 = vlaneseq
      %v6072 = vshrl.u32 %v6071, 7
      %v6073 = vsub.s32 %v6070, %v6072
      %v6074 = vrot.slane %v6059, %v6073
      %v6076 = vunpack.c.l.s4 1934713408
      %v6077 = vunpack.c.0.s8 %v6076
      %v6078 = vlaneseq
      %v6079 = vshrl.u32 %v6078, 7
      %v6080 = vsub.s32 %v6077, %v6079
      %v6081 = vrot.slane %v6067, %v6080
      %v6082 = vcombine.high %v6066, 0.0
      %v6084 = vunpack.c.l.s4 1934713408
      %v6085 = vunpack.c.0.s8 %v6084
      %v6086 = vlaneseq
      %v6087 = vshrl.u32 %v6086, 7
      %v6088 = vsub.s32 %v6085, %v6087
      %v6089 = vrot.slane %v6066, %v6088
      %v6091 = vunpack.c.l.s4 1934713408
      %v6092 = vunpack.c.0.s8 %v6091
      %v6093 = vlaneseq
      %v6094 = vshrl.u32 %v6093, 7
      %v6095 = vsub.s32 %v6092, %v6094
      %v6096 = vrot.slane %v6082, %v6095
      %v6097 = vcombine.high %v6074, 0.0
      %v6098 = vcombine.high %v6081, 0.0
      %v6099 = vcombine.high %v6089, 0.0
      %v6100 = vcombine.high %v6096, 0.0
      %v6101 = vcombine.high %v5917, 0.0
      %v6103 = vunpack.c.l.s4 1983009808
      %v6104 = vunpack.c.0.s8 %v6103
      %v6105 = vlaneseq
      %v6106 = vshrl.u32 %v6105, 7
      %v6107 = vsub.s32 %v6104, %v6106
      %v6108 = vrot.slane %v5917, %v6107
      %v6110 = vunpack.c.l.s4 1983009808
      %v6111 = vunpack.c.0.s8 %v6110
      %v6112 = vlaneseq
      %v6113 = vshrl.u32 %v6112, 7
      %v6114 = vsub.s32 %v6111, %v6113
      %v6115 = vrot.slane %v6101, %v6114
      %v6116 = vcombine.high %v6108, 0.0
      %v6118 = vunpack.c.l.s4 1934713408
      %v6119 = vunpack.c.0.s8 %v6118
      %v6120 = vlaneseq
      %v6121 = vshrl.u32 %v6120, 7
      %v6122 = vsub.s32 %v6119, %v6121
      %v6123 = vrot.slane %v6108, %v6122
      %v6125 = vunpack.c.l.s4 1934713408
      %v6126 = vunpack.c.0.s8 %v6125
      %v6127 = vlaneseq
      %v6128 = vshrl.u32 %v6127, 7
      %v6129 = vsub.s32 %v6126, %v6128
      %v6130 = vrot.slane %v6116, %v6129
      %v6131 = vcombine.high %v6115, 0.0
      %v6133 = vunpack.c.l.s4 1934713408
      %v6134 = vunpack.c.0.s8 %v6133
      %v6135 = vlaneseq
      %v6136 = vshrl.u32 %v6135, 7
      %v6137 = vsub.s32 %v6134, %v6136
      %v6138 = vrot.slane %v6115, %v6137
      %v6140 = vunpack.c.l.s4 1934713408
      %v6141 = vunpack.c.0.s8 %v6140
      %v6142 = vlaneseq
      %v6143 = vshrl.u32 %v6142, 7
      %v6144 = vsub.s32 %v6141, %v6143
      %v6145 = vrot.slane %v6131, %v6144
      %v6146 = vcombine.high %v6123, 0.0
      %v6147 = vcombine.high %v6130, 0.0
      %v6148 = vcombine.high %v6138, 0.0
      %v6149 = vcombine.high %v6145, 0.0
      %v6150 = vcombine.high %v5924, 0.0
      %v6152 = vunpack.c.l.s4 1983009808
      %v6153 = vunpack.c.0.s8 %v6152
      %v6154 = vlaneseq
      %v6155 = vshrl.u32 %v6154, 7
      %v6156 = vsub.s32 %v6153, %v6155
      %v6157 = vrot.slane %v5924, %v6156
      %v6159 = vunpack.c.l.s4 1983009808
      %v6160 = vunpack.c.0.s8 %v6159
      %v6161 = vlaneseq
      %v6162 = vshrl.u32 %v6161, 7
      %v6163 = vsub.s32 %v6160, %v6162
      %v6164 = vrot.slane %v6150, %v6163
      %v6165 = vcombine.high %v6157, 0.0
      %v6167 = vunpack.c.l.s4 1934713408
      %v6168 = vunpack.c.0.s8 %v6167
      %v6169 = vlaneseq
      %v6170 = vshrl.u32 %v6169, 7
      %v6171 = vsub.s32 %v6168, %v6170
      %v6172 = vrot.slane %v6157, %v6171
      %v6174 = vunpack.c.l.s4 1934713408
      %v6175 = vunpack.c.0.s8 %v6174
      %v6176 = vlaneseq
      %v6177 = vshrl.u32 %v6176, 7
      %v6178 = vsub.s32 %v6175, %v6177
      %v6179 = vrot.slane %v6165, %v6178
      %v6180 = vcombine.high %v6164, 0.0
      %v6182 = vunpack.c.l.s4 1934713408
      %v6183 = vunpack.c.0.s8 %v6182
      %v6184 = vlaneseq
      %v6185 = vshrl.u32 %v6184, 7
      %v6186 = vsub.s32 %v6183, %v6185
      %v6187 = vrot.slane %v6164, %v6186
      %v6189 = vunpack.c.l.s4 1934713408
      %v6190 = vunpack.c.0.s8 %v6189
      %v6191 = vlaneseq
      %v6192 = vshrl.u32 %v6191, 7
      %v6193 = vsub.s32 %v6190, %v6192
      %v6194 = vrot.slane %v6180, %v6193
      %v6195 = vcombine.high %v6172, 0.0
      %v6196 = vcombine.high %v6179, 0.0
      %v6197 = vcombine.high %v6187, 0.0
      %v6198 = vcombine.high %v6194, 0.0
      %v6199 = vcombine.high %v5931, 0.0
      %v6201 = vunpack.c.l.s4 1983009808
      %v6202 = vunpack.c.0.s8 %v6201
      %v6203 = vlaneseq
      %v6204 = vshrl.u32 %v6203, 7
      %v6205 = vsub.s32 %v6202, %v6204
      %v6206 = vrot.slane %v5931, %v6205
      %v6208 = vunpack.c.l.s4 1983009808
      %v6209 = vunpack.c.0.s8 %v6208
      %v6210 = vlaneseq
      %v6211 = vshrl.u32 %v6210, 7
      %v6212 = vsub.s32 %v6209, %v6211
      %v6213 = vrot.slane %v6199, %v6212
      %v6214 = vcombine.high %v6206, 0.0
      %v6216 = vunpack.c.l.s4 1934713408
      %v6217 = vunpack.c.0.s8 %v6216
      %v6218 = vlaneseq
      %v6219 = vshrl.u32 %v6218, 7
      %v6220 = vsub.s32 %v6217, %v6219
      %v6221 = vrot.slane %v6206, %v6220
      %v6223 = vunpack.c.l.s4 1934713408
      %v6224 = vunpack.c.0.s8 %v6223
      %v6225 = vlaneseq
      %v6226 = vshrl.u32 %v6225, 7
      %v6227 = vsub.s32 %v6224, %v6226
      %v6228 = vrot.slane %v6214, %v6227
      %v6229 = vcombine.high %v6213, 0.0
      %v6231 = vunpack.c.l.s4 1934713408
      %v6232 = vunpack.c.0.s8 %v6231
      %v6233 = vlaneseq
      %v6234 = vshrl.u32 %v6233, 7
      %v6235 = vsub.s32 %v6232, %v6234
      %v6236 = vrot.slane %v6213, %v6235
      %v6238 = vunpack.c.l.s4 1934713408
      %v6239 = vunpack.c.0.s8 %v6238
      %v6240 = vlaneseq
      %v6241 = vshrl.u32 %v6240, 7
      %v6242 = vsub.s32 %v6239, %v6241
      %v6243 = vrot.slane %v6229, %v6242
      %v6244 = vcombine.high %v6221, 0.0
      %v6245 = vcombine.high %v6228, 0.0
      %v6246 = vcombine.high %v6236, 0.0
      %v6247 = vcombine.high %v6243, 0.0
      %v6248 = vcombine.high %v5938, 0.0
      %v6250 = vunpack.c.l.s4 1983009808
      %v6251 = vunpack.c.0.s8 %v6250
      %v6252 = vlaneseq
      %v6253 = vshrl.u32 %v6252, 7
      %v6254 = vsub.s32 %v6251, %v6253
      %v6255 = vrot.slane %v5938, %v6254
      %v6257 = vunpack.c.l.s4 1983009808
      %v6258 = vunpack.c.0.s8 %v6257
      %v6259 = vlaneseq
      %v6260 = vshrl.u32 %v6259, 7
      %v6261 = vsub.s32 %v6258, %v6260
      %v6262 = vrot.slane %v6248, %v6261
      %v6263 = vcombine.high %v6255, 0.0
      %v6265 = vunpack.c.l.s4 1934713408
      %v6266 = vunpack.c.0.s8 %v6265
      %v6267 = vlaneseq
      %v6268 = vshrl.u32 %v6267, 7
      %v6269 = vsub.s32 %v6266, %v6268
      %v6270 = vrot.slane %v6255, %v6269
      %v6272 = vunpack.c.l.s4 1934713408
      %v6273 = vunpack.c.0.s8 %v6272
      %v6274 = vlaneseq
      %v6275 = vshrl.u32 %v6274, 7
      %v6276 = vsub.s32 %v6273, %v6275
      %v6277 = vrot.slane %v6263, %v6276
      %v6278 = vcombine.high %v6262, 0.0
      %v6280 = vunpack.c.l.s4 1934713408
      %v6281 = vunpack.c.0.s8 %v6280
      %v6282 = vlaneseq
      %v6283 = vshrl.u32 %v6282, 7
      %v6284 = vsub.s32 %v6281, %v6283
      %v6285 = vrot.slane %v6262, %v6284
      %v6287 = vunpack.c.l.s4 1934713408
      %v6288 = vunpack.c.0.s8 %v6287
      %v6289 = vlaneseq
      %v6290 = vshrl.u32 %v6289, 7
      %v6291 = vsub.s32 %v6288, %v6290
      %v6292 = vrot.slane %v6278, %v6291
      %v6293 = vcombine.high %v6270, 0.0
      %v6294 = vcombine.high %v6277, 0.0
      %v6295 = vcombine.high %v6285, 0.0
      %v6296 = vcombine.high %v6292, 0.0
      %v6297 = vcombine.high %v5945, 0.0
      %v6299 = vunpack.c.l.s4 1983009808
      %v6300 = vunpack.c.0.s8 %v6299
      %v6301 = vlaneseq
      %v6302 = vshrl.u32 %v6301, 7
      %v6303 = vsub.s32 %v6300, %v6302
      %v6304 = vrot.slane %v5945, %v6303
      %v6306 = vunpack.c.l.s4 1983009808
      %v6307 = vunpack.c.0.s8 %v6306
      %v6308 = vlaneseq
      %v6309 = vshrl.u32 %v6308, 7
      %v6310 = vsub.s32 %v6307, %v6309
      %v6311 = vrot.slane %v6297, %v6310
      %v6312 = vcombine.high %v6304, 0.0
      %v6314 = vunpack.c.l.s4 1934713408
      %v6315 = vunpack.c.0.s8 %v6314
      %v6316 = vlaneseq
      %v6317 = vshrl.u32 %v6316, 7
      %v6318 = vsub.s32 %v6315, %v6317
      %v6319 = vrot.slane %v6304, %v6318
      %v6321 = vunpack.c.l.s4 1934713408
      %v6322 = vunpack.c.0.s8 %v6321
      %v6323 = vlaneseq
      %v6324 = vshrl.u32 %v6323, 7
      %v6325 = vsub.s32 %v6322, %v6324
      %v6326 = vrot.slane %v6312, %v6325
      %v6327 = vcombine.high %v6311, 0.0
      %v6329 = vunpack.c.l.s4 1934713408
      %v6330 = vunpack.c.0.s8 %v6329
      %v6331 = vlaneseq
      %v6332 = vshrl.u32 %v6331, 7
      %v6333 = vsub.s32 %v6330, %v6332
      %v6334 = vrot.slane %v6311, %v6333
      %v6336 = vunpack.c.l.s4 1934713408
      %v6337 = vunpack.c.0.s8 %v6336
      %v6338 = vlaneseq
      %v6339 = vshrl.u32 %v6338, 7
      %v6340 = vsub.s32 %v6337, %v6339
      %v6341 = vrot.slane %v6327, %v6340
      %v6342 = vcombine.high %v6319, 0.0
      %v6343 = vcombine.high %v6326, 0.0
      %v6344 = vcombine.high %v6334, 0.0
      %v6345 = vcombine.high %v6341, 0.0
      %6347 = vrot.lane.b32.xlu0 %v5999, 8
      %v6348 = vpop.permute.xlu0 %6347
      %6351 = vrot.lane.b32.xlu0 %v5983, 16
      %v6352 = vpop.permute.xlu0 %6351
      %6355 = vrot.lane.b32.xlu0 %v6000, 24
      %v6356 = vpop.permute.xlu0 %6355
      %6359 = vrot.lane.b32.xlu0 %v5991, 32
      %v6360 = vpop.permute.xlu0 %6359
      %6363 = vrot.lane.b32.xlu0 %v6001, 40
      %v6364 = vpop.permute.xlu0 %6363
      %6367 = vrot.lane.b32.xlu0 %v5998, 48
      %v6368 = vpop.permute.xlu0 %6367
      %6371 = vrot.lane.b32.xlu0 %v6002, 56
      %v6372 = vpop.permute.xlu0 %6371
      %6375 = vrot.lane.b32.xlu0 %v6025, 64
      %v6376 = vpop.permute.xlu0 %6375
      %6379 = vrot.lane.b32.xlu0 %v6048, 72
      %v6380 = vpop.permute.xlu0 %6379
      %6383 = vrot.lane.b32.xlu0 %v6032, 80
      %v6384 = vpop.permute.xlu0 %6383
      %6387 = vrot.lane.b32.xlu0 %v6049, 88
      %v6388 = vpop.permute.xlu0 %6387
      %6391 = vrot.lane.b32.xlu0 %v6040, 96
      %v6392 = vpop.permute.xlu0 %6391
      %6395 = vrot.lane.b32.xlu0 %v6050, 104
      %v6396 = vpop.permute.xlu0 %6395
      %6399 = vrot.lane.b32.xlu0 %v6047, 112
      %v6400 = vpop.permute.xlu0 %6399
      %6403 = vrot.lane.b32.xlu0 %v6051, 120
      %v6404 = vpop.permute.xlu0 %6403
      %6407 = vrot.lane.b32.xlu0 %v6097, 8
      %v6408 = vpop.permute.xlu0 %6407
      %6411 = vrot.lane.b32.xlu0 %v6081, 16
      %v6412 = vpop.permute.xlu0 %6411
      %6415 = vrot.lane.b32.xlu0 %v6098, 24
      %v6416 = vpop.permute.xlu0 %6415
      %6419 = vrot.lane.b32.xlu0 %v6089, 32
      %v6420 = vpop.permute.xlu0 %6419
      %6423 = vrot.lane.b32.xlu0 %v6099, 40
      %v6424 = vpop.permute.xlu0 %6423
      %6427 = vrot.lane.b32.xlu0 %v6096, 48
      %v6428 = vpop.permute.xlu0 %6427
      %6431 = vrot.lane.b32.xlu0 %v6100, 56
      %v6432 = vpop.permute.xlu0 %6431
      %6435 = vrot.lane.b32.xlu0 %v6123, 64
      %v6436 = vpop.permute.xlu0 %6435
      %6439 = vrot.lane.b32.xlu0 %v6146, 72
      %v6440 = vpop.permute.xlu0 %6439
      %6443 = vrot.lane.b32.xlu0 %v6130, 80
      %v6444 = vpop.permute.xlu0 %6443
      %6447 = vrot.lane.b32.xlu0 %v6147, 88
      %v6448 = vpop.permute.xlu0 %6447
      %6451 = vrot.lane.b32.xlu0 %v6138, 96
      %v6452 = vpop.permute.xlu0 %6451
      %6455 = vrot.lane.b32.xlu0 %v6148, 104
      %v6456 = vpop.permute.xlu0 %6455
      %6459 = vrot.lane.b32.xlu0 %v6145, 112
      %v6460 = vpop.permute.xlu0 %6459
      %6463 = vrot.lane.b32.xlu0 %v6149, 120
      %v6464 = vpop.permute.xlu0 %6463
      %6467 = vrot.lane.b32.xlu0 %v6195, 8
      %v6468 = vpop.permute.xlu0 %6467
      %6471 = vrot.lane.b32.xlu0 %v6179, 16
      %v6472 = vpop.permute.xlu0 %6471
      %6475 = vrot.lane.b32.xlu0 %v6196, 24
      %v6476 = vpop.permute.xlu0 %6475
      %6479 = vrot.lane.b32.xlu0 %v6187, 32
      %v6480 = vpop.permute.xlu0 %6479
      %6483 = vrot.lane.b32.xlu0 %v6197, 40
      %v6484 = vpop.permute.xlu0 %6483
      %6487 = vrot.lane.b32.xlu0 %v6194, 48
      %v6488 = vpop.permute.xlu0 %6487
      %6491 = vrot.lane.b32.xlu0 %v6198, 56
      %v6492 = vpop.permute.xlu0 %6491
      %6495 = vrot.lane.b32.xlu0 %v6221, 64
      %v6496 = vpop.permute.xlu0 %6495
      %6499 = vrot.lane.b32.xlu0 %v6244, 72
      %v6500 = vpop.permute.xlu0 %6499
      %6503 = vrot.lane.b32.xlu0 %v6228, 80
      %v6504 = vpop.permute.xlu0 %6503
      %6507 = vrot.lane.b32.xlu0 %v6245, 88
      %v6508 = vpop.permute.xlu0 %6507
      %6511 = vrot.lane.b32.xlu0 %v6236, 96
      %v6512 = vpop.permute.xlu0 %6511
      %6515 = vrot.lane.b32.xlu0 %v6246, 104
      %v6516 = vpop.permute.xlu0 %6515
      %6519 = vrot.lane.b32.xlu0 %v6243, 112
      %v6520 = vpop.permute.xlu0 %6519
      %6523 = vrot.lane.b32.xlu0 %v6247, 120
      %v6524 = vpop.permute.xlu0 %6523
      %6527 = vrot.lane.b32.xlu0 %v6293, 8
      %v6528 = vpop.permute.xlu0 %6527
      %6531 = vrot.lane.b32.xlu0 %v6277, 16
      %v6532 = vpop.permute.xlu0 %6531
      %6535 = vrot.lane.b32.xlu0 %v6294, 24
      %v6536 = vpop.permute.xlu0 %6535
      %6539 = vrot.lane.b32.xlu0 %v6285, 32
      %v6540 = vpop.permute.xlu0 %6539
      %6543 = vrot.lane.b32.xlu0 %v6295, 40
      %v6544 = vpop.permute.xlu0 %6543
      %6547 = vrot.lane.b32.xlu0 %v6292, 48
      %v6548 = vpop.permute.xlu0 %6547
      %6551 = vrot.lane.b32.xlu0 %v6296, 56
      %v6552 = vpop.permute.xlu0 %6551
      %6555 = vrot.lane.b32.xlu0 %v6319, 64
      %v6556 = vpop.permute.xlu0 %6555
      %6559 = vrot.lane.b32.xlu0 %v6342, 72
      %v6560 = vpop.permute.xlu0 %6559
      %6563 = vrot.lane.b32.xlu0 %v6326, 80
      %v6564 = vpop.permute.xlu0 %6563
      %6567 = vrot.lane.b32.xlu0 %v6343, 88
      %v6568 = vpop.permute.xlu0 %6567
      %6571 = vrot.lane.b32.xlu0 %v6334, 96
      %v6572 = vpop.permute.xlu0 %6571
      %6575 = vrot.lane.b32.xlu0 %v6344, 104
      %v6576 = vpop.permute.xlu0 %6575
      %6579 = vrot.lane.b32.xlu0 %v6341, 112
      %v6580 = vpop.permute.xlu0 %6579
      %6583 = vrot.lane.b32.xlu0 %v6345, 120
      %v6584 = vpop.permute.xlu0 %6583
      %v6586 = vsel %vm886, %v5976, %v6348
      %v6587 = vsel %vm924, %v6586, %v6352
      %v6588 = vsel %vm962, %v6587, %v6356
      %v6589 = vsel %vm1691, %v6588, %v6360
      %v6590 = vsel %vm3638, %v6589, %v6364
      %v6591 = vsel %vm3657, %v6590, %v6368
      %v6592 = vsel %vm3730, %v6591, %v6372
      %vm6593 = vcmask 523264
      %v6594 = vsel %vm6593, %v6592, %v6376
      %vm6595 = vcmask 588800
      %v6596 = vsel %vm6595, %v6594, %v6380
      %vm6597 = vcmask 654336
      %v6598 = vsel %vm6597, %v6596, %v6384
      %vm6599 = vcmask 719872
      %v6600 = vsel %vm6599, %v6598, %v6388
      %vm6601 = vcmask 785408
      %v6602 = vsel %vm6601, %v6600, %v6392
      %vm6603 = vcmask 850944
      %v6604 = vsel %vm6603, %v6602, %v6396
      %vm6605 = vcmask 916480
      %v6606 = vsel %vm6605, %v6604, %v6400
      %vm6607 = vcmask 982016
      %v6608 = vsel %vm6607, %v6606, %v6404
      %v6609 = vsel %vm886, %v6074, %v6408
      %v6610 = vsel %vm924, %v6609, %v6412
      %v6611 = vsel %vm962, %v6610, %v6416
      %v6612 = vsel %vm1691, %v6611, %v6420
      %v6613 = vsel %vm3638, %v6612, %v6424
      %v6614 = vsel %vm3657, %v6613, %v6428
      %v6615 = vsel %vm3730, %v6614, %v6432
      %v6616 = vsel %vm6593, %v6615, %v6436
      %v6617 = vsel %vm6595, %v6616, %v6440
      %v6618 = vsel %vm6597, %v6617, %v6444
      %v6619 = vsel %vm6599, %v6618, %v6448
      %v6620 = vsel %vm6601, %v6619, %v6452
      %v6621 = vsel %vm6603, %v6620, %v6456
      %v6622 = vsel %vm6605, %v6621, %v6460
      %v6623 = vsel %vm6607, %v6622, %v6464
      %v6624 = vsel %vm886, %v6172, %v6468
      %v6625 = vsel %vm924, %v6624, %v6472
      %v6626 = vsel %vm962, %v6625, %v6476
      %v6627 = vsel %vm1691, %v6626, %v6480
      %v6628 = vsel %vm3638, %v6627, %v6484
      %v6629 = vsel %vm3657, %v6628, %v6488
      %v6630 = vsel %vm3730, %v6629, %v6492
      %v6631 = vsel %vm6593, %v6630, %v6496
      %v6632 = vsel %vm6595, %v6631, %v6500
      %v6633 = vsel %vm6597, %v6632, %v6504
      %v6634 = vsel %vm6599, %v6633, %v6508
      %v6635 = vsel %vm6601, %v6634, %v6512
      %v6636 = vsel %vm6603, %v6635, %v6516
      %v6637 = vsel %vm6605, %v6636, %v6520
      %v6638 = vsel %vm6607, %v6637, %v6524
      %v6639 = vsel %vm886, %v6270, %v6528
      %v6640 = vsel %vm924, %v6639, %v6532
      %v6641 = vsel %vm962, %v6640, %v6536
      %v6642 = vsel %vm1691, %v6641, %v6540
      %v6643 = vsel %vm3638, %v6642, %v6544
      %v6644 = vsel %vm3657, %v6643, %v6548
      %v6645 = vsel %vm3730, %v6644, %v6552
      %v6646 = vsel %vm6593, %v6645, %v6556
      %v6647 = vsel %vm6595, %v6646, %v6560
      %v6648 = vsel %vm6597, %v6647, %v6564
      %v6649 = vsel %vm6599, %v6648, %v6568
      %v6650 = vsel %vm6601, %v6649, %v6572
      %v6651 = vsel %vm6603, %v6650, %v6576
      %v6652 = vsel %vm6605, %v6651, %v6580
      %v6653 = vsel %vm6607, %v6652, %v6584
      %v6658 = vcombine.low %v6608, %v6623
      %v6659 = vcombine.low %v6638, %v6653
      %v6661 = vunpack.c.l.s4 1966171168
      %v6662 = vunpack.c.0.s8 %v6661
      %v6663 = vlaneseq
      %v6664 = vshrl.u32 %v6663, 7
      %v6665 = vsub.s32 %v6662, %v6664
      %v6666 = vrot.slane %v6658, %v6665
      %v6668 = vunpack.c.l.s4 1966171168
      %v6669 = vunpack.c.0.s8 %v6668
      %v6670 = vlaneseq
      %v6671 = vshrl.u32 %v6670, 7
      %v6672 = vsub.s32 %v6669, %v6671
      %v6673 = vrot.slane %v6659, %v6672
      %v6674 = vcombine.low %v6666, %v6673
      %v6676 = vunpack.c.l.s4 1966171168
      %v6677 = vunpack.c.0.s8 %v6676
      %v6678 = vlaneseq
      %v6679 = vshrl.u32 %v6678, 7
      %v6680 = vsub.s32 %v6677, %v6679
      %v6681 = vrot.slane %v6674, %v6680
      %v6683 = vlaneseq
      %vm6684 = vcmp.ge.s32.totalorder %v6683, 0
      %vm6685 = vcmp.lt.s32.totalorder %v6683, 512
      %vm6686 = vmand %vm6684, %vm6685
      %6687 = vst.msk [vmem:[%s438] sm:$0xf] %vm6686, %v6681
      %p6688 = scmp.lt.s32.totalorder %s24, 1
      %s6689 = scalar_select %p6688, %s24, 1
      %s6690 = smul.addr %s6689, 4
      %s6691 = scalar_lea.vmem %s13, %s6690
      // Predicated region
      $region73: #{down_forward.1} parent=71 // pred_check
        %p6692 = pneg %p320
      $region74: #{down_forward.1} parent=71 // pred_check_branch
        %6694 = sbr.rel (%p6692) target = $region76
      $region75: #{down_forward.1} parent=71 // pred_region
        _
      $region76: #{down_forward.1} parent=71 // pred_fallthru
        _
    $region72: #{down_forward.1} parent=5 // pred_fallthru
      _
    %p6695 = scmp.le.s32.totalorder 2, %s19
    // Predicated region
    $region77: #{down_forward.1} parent=5 // pred_check
      %p6696 = pneg %p6695
    $region78: #{down_forward.1} parent=5 // pred_check_branch
      %6698 = sbr.rel (%p6696) target = $region80
    $region79: #{down_forward.1} parent=5 // pred_region
      %s6699 = ssub.s32 %s19, 2
      // Predicated region
      $region81: #{down_forward.1} parent=79 // pred_check
        %p6700 = pneg %p326
      $region82: #{down_forward.1} parent=79 // pred_check_branch
        %6702 = sbr.rel (%p6700) target = $region84
      $region83: #{down_forward.1} parent=79 // pred_region
        %p6703 = scmp.lt.s32.totalorder %s25, 1
        %s6704 = scalar_select %p6703, %s25, 1
        %s6705 = smul.addr %s6704, 4
        %s6706 = scalar_lea.vmem %s13, %s6705
      $region84: #{down_forward.1} parent=79 // pred_fallthru
        _
    $region80: #{down_forward.1} parent=5 // pred_fallthru
      _
  $region6: #{down_forward.1} parent=0 // loop_footer
    %s23 = sadd.s32 1, %s19
  $region7: #{down_forward.1} parent=0 // loop_footer_branch
    %18 = sbr.rel target = $region3
  $region8: #{down_forward.1} parent=0 // loop_exit
    _

</llo_original>
